<compile_context>
chip_gen: v6e
topology: v6e:2x2x1
jax: 0.10.0
libtpu: 0.0.40
codegen_flags: <defaults>
</compile_context>

<pallas_src>
import jax
import jax.numpy as jnp
from jax.experimental import pallas as pl
from jax.experimental.pallas import tpu as pltpu

# Scratch rows per resident padded plane: 18 real rows (9 taps x 2 channels)
# + 14 zero filler rows.  32 = 2 bf16 sublane tiles, so every 3-plane (96-row)
# matmul window starts tile-aligned and needs no relayout copy.
RPP = 32


def _make_brainreg_kernel(Wp: int, Lo: int, planes: int):
    """Fused conv3x3x3 + ReLU + both SVF heads + 2x2x2 pool / nearest upsample.

    One grid step produces `planes` consecutive output z-planes (planes // 2
    pooling cells).  Layout: the flattened padded (y, x) plane is the lane
    dimension; im2col taps / channels live on sublanes, so both matmuls stream
    the big dimension through the MXU and all stores are lane-dense.
    """
    n_res = planes + 2          # resident padded planes per step (incl. z halo)

    def kernel(xa_ref, xb_ref, wc_ref, bc_ref, wh_ref, bh_ref, par_ref,
               out_ref, taps_ref):
        zpad = jnp.zeros((RPP - 18, Lo), jnp.bfloat16)

        # ---- im2col: build the 9 (dy,dx) taps of every resident plane ONCE --
        # (shared by all output planes that need that padded plane: ~2.4x fewer
        #  unaligned slice+store row builds than rebuilding 54 rows per output
        #  plane).  bf16 scratch; 2-row stores land on packed 32-bit sublanes.
        for p in range(n_res):
            src = xa_ref[p] if p < planes else xb_ref[p - planes]   # (2, L) bf16
            base = RPP * p
            for dy in range(3):
                for dx in range(3):
                    t = dy * 3 + dx
                    off = dy * Wp + dx
                    taps_ref[base + 2 * t: base + 2 * t + 2, :] = \
                        src[:, off:off + Lo]
            # filler rows multiply all-zero weight columns; they only need to
            # be finite (uninitialized VMEM could hold NaN bit patterns).
            taps_ref[base + 18: base + RPP, :] = zpad

        wc = wc_ref[...]                 # (hidden, 3*RPP) bf16, zero-padded cols
        bc = bc_ref[...]                 # (hidden, 1)     f32
        wh = wh_ref[...]                 # (6, hidden)     bf16 (both heads)
        bh = bh_ref[...]                 # (3, 1)          f32  b_scale1+b_scale2
        xmask = par_ref[0:1, :] > 0.5    # (1, Lo) bool : lane has odd x
        ymask = par_ref[1:2, :] > 0.5    # (1, Lo) bool : lane has odd y

        def head_out(j):
            # output plane j uses padded planes j, j+1, j+2 -> one contiguous,
            # tile-aligned 3*RPP-row window of the shared tap scratch.
            win = taps_ref[RPP * j: RPP * (j + 3), :]                  # (96, Lo)
            f = jnp.dot(wc, win, preferred_element_type=jnp.float32)   # (h, Lo)
            f = jnp.maximum(f + bc, 0.0)                               # bias+ReLU
            # both SVF heads in one small MXU pass
            return jnp.dot(wh, f.astype(jnp.bfloat16),
                           preferred_element_type=jnp.float32)         # (6, Lo)

        for c in range(planes // 2):     # one 2x2x2 pooling cell per iteration
            j0 = 2 * c
            h0 = head_out(j0)            # output plane z = base + j0
            h1 = head_out(j0 + 1)        # output plane z = base + j0 + 1

            # scale-2 head: 2x2x2 average pool + nearest upsample, entirely in
            # registers via XLU rolls + parity selects.  Roll wrap-around only
            # ever mixes lanes inside the same 2x2 cell because W and H are
            # even and the padded x columns are stripped afterwards.
            a = 0.5 * (h0[3:6, :] + h1[3:6, :])                        # z-pair mean
            nx = jnp.where(xmask, pltpu.roll(a, 1, axis=1),
                           pltpu.roll(a, Lo - 1, axis=1))              # x partner
            a = 0.5 * (a + nx)
            ny = jnp.where(ymask, pltpu.roll(a, Wp, axis=1),
                           pltpu.roll(a, Lo - Wp, axis=1))             # y partner
            a = 0.5 * (a + ny) + bh                                    # + biases

            out_ref[j0, :, :] = h0[0:3, :] + a
            out_ref[j0 + 1, :, :] = h1[0:3, :] + a

    return kernel


class BrainRegPallas:
    """Synthetic BrainReg: body = 3x3x3 conv (2->hidden) + ReLU with decoder
    scales (4, 2, 1); two 1x1x1 SVF heads at decoder scales (2, 1)."""

    def __init__(self, key, hidden=32):
        self.hidden = hidden
        self.decoder_scale = (4, 2, 1)
        self.svf_scales = self.decoder_scale[-2:]            # (2, 1)
        k1, k2, k3, k4, k5, k6 = jax.random.split(key, 6)
        self.conv_w = jax.random.normal(k1, (hidden, 2, 3, 3, 3), jnp.float32) * 0.1
        self.conv_b = jax.random.normal(k2, (hidden,), jnp.float32) * 0.01
        # svf[0] -> decoder scale 2 (pooled features), svf[1] -> scale 1
        self.svf_w = [jax.random.normal(k3, (3, hidden), jnp.float32) * 0.05,
                      jax.random.normal(k5, (3, hidden), jnp.float32) * 0.05]
        self.svf_b = [jax.random.normal(k4, (3,), jnp.float32) * 0.01,
                      jax.random.normal(k6, (3,), jnp.float32) * 0.01]

    def forward(self, images):
        # images: (N, 1 or 2, S0, S1, S2)   (PyTorch NC(W,H,D) layout)
        assert images.ndim == 5 and images.shape[1] in (1, 2)
        if images.shape[1] == 1:
            assert images.shape[0] % 2 == 0, "C==1 requires an even batch"
        D, H, W = images.shape[-3:]
        assert D % 2 == 0 and H % 2 == 0 and W % 2 == 0, \
            "spatial dims must be even (2x pooled decoder scale)"

        images = images.reshape(-1, 2, D, H, W)
        B = images.shape[0]

        # output z-planes produced per grid step.  8 amortizes per-step
        # overhead; `planes = D` is the legal fallback (a block dim equal to
        # the full array dim is exempt from alignment rules).
        planes = 8 if D % 8 == 0 else D
        nz = D // planes

        Wp = W + 2              # padded row length        (x pad 1+1)
        Hp = H + 3              # padded rows per plane    (y pad 1+2; +1 slack
                                #  row for the flat-offset im2col trick)
        L = Hp * Wp             # flattened padded input plane (lane dim)
        Lo = H * Wp             # flattened output plane       (lane dim)

        # ---- layout-only glue on the small 2-channel bf16 input stream -----
        x = jnp.pad(images, ((0, 0), (0, 0), (1, 1), (1, 2), (1, 1)))
        x = jnp.transpose(x, (0, 2, 1, 3, 4)).reshape(B, D + 2, 2, L)
        x = x.astype(jnp.bfloat16)

        # conv weight -> (hidden, 3*RPP): one RPP-column block per dz; taps in
        # im2col order (dy, dx, c_in) in the first 18 columns, rest zero.
        wt = jnp.transpose(self.conv_w, (0, 2, 3, 4, 1)).reshape(self.hidden, 3, 18)
        wc = jnp.zeros((self.hidden, 3 * RPP), jnp.float32)
        for dz in range(3):
            wc = wc.at[:, RPP * dz: RPP * dz + 18].set(wt[:, dz])
        wc = wc.astype(jnp.bfloat16)
        bc = self.conv_b.reshape(self.hidden, 1).astype(jnp.float32)
        # heads stacked: rows 0:3 = scale-1 head, rows 3:6 = scale-2 head.
        # Biases are summed and added once (nearest upsampling is
        # constant-preserving, so the scale-2 bias commutes with pool+up).
        wh = jnp.concatenate([self.svf_w[1], self.svf_w[0]], axis=0)
        wh = wh.astype(jnp.bfloat16)
        bh = (self.svf_b[0] + self.svf_b[1]).reshape(3, 1).astype(jnp.float32)

        # x / y parity of each output lane (m = y*Wp + x) for the pool/upsample
        m = jnp.arange(Lo, dtype=jnp.int32)
        par = jnp.stack([(m % 2).astype(jnp.float32),
                         ((m // Wp) % 2).astype(jnp.float32)], axis=0)

        kernel = _make_brainreg_kernel(Wp, Lo, planes)
        halo_blk = planes // 2   # halo BlockSpec has z-block 2, so block index
                                 # (planes//2)*(i+1) == element offset planes*(i+1)

        out = pl.pallas_call(
            kernel,
            out_shape=jax.ShapeDtypeStruct((B, D, 3, Lo), jnp.float32),
            grid_spec=pltpu.PrefetchScalarGridSpec(
                num_scalar_prefetch=0,
                grid=(B, nz),
                in_specs=[
                    # main block: `planes` padded z-planes, each fetched once
                    pl.BlockSpec((None, planes, 2, L), lambda b, i: (b, i, 0, 0)),
                    # 2-plane z halo (the only re-fetched planes: 2 per step)
                    pl.BlockSpec((None, 2, 2, L),
                                 lambda b, i: (b, halo_blk * (i + 1), 0, 0)),
                    pl.BlockSpec((self.hidden, 3 * RPP), lambda b, i: (0, 0)),
                    pl.BlockSpec((self.hidden, 1), lambda b, i: (0, 0)),
                    pl.BlockSpec((6, self.hidden), lambda b, i: (0, 0)),
                    pl.BlockSpec((3, 1), lambda b, i: (0, 0)),
                    pl.BlockSpec((2, Lo), lambda b, i: (0, 0)),
                ],
                out_specs=pl.BlockSpec((None, planes, 3, Lo),
                                       lambda b, i: (b, i, 0, 0)),
                scratch_shapes=[
                    # shared bf16 im2col tap scratch (planes + 2 halo planes)
                    pltpu.VMEM(((planes + 2) * RPP, Lo), jnp.bfloat16)],
            ),
            compiler_params=pltpu.CompilerParams(
                dimension_semantics=("parallel", "parallel"),
                # fits v7x's 64 MiB physical VMEM with headroom; plenty on
                # v5e/v6e (128 MiB).
                vmem_limit_bytes=48 * 1024 * 1024,
            ),
        )(x, x, wc, bc, wh, bh, par)

        # Strip padded x columns and go channel-first.  The strip forces one
        # wrapper copy regardless; XLA folds the transpose into that same copy.
        svf = out.reshape(B, D, 3, H, Wp)[..., :W]
        return jnp.transpose(svf, (0, 2, 1, 3, 4))


if __name__ == "__main__":
    key = jax.random.PRNGKey(0)
    kp, kx = jax.random.split(key)
    model = BrainRegPallas(kp, hidden=32)
    # (N=2, C=2, spatial 16^3) -> B = 2 image pairs
    images = jax.random.normal(kx, (2, 2, 16, 16, 16), jnp.float32)
    out = jax.jit(model.forward)(images)
    out = jax.block_until_ready(out)
    assert out.shape == (2, 3, 16, 16, 16), out.shape
    assert jnp.all(jnp.isfinite(out))
    print("KERNEL_OK")
</pallas_src>

<mosaic_0001>
module attributes {stable_mosaic.version = 11 : i64} {
  func.func @kernel(%arg0: i32, %arg1: i32, %arg2: memref<1x8x2x342xbf16, #tpu.memory_space<vmem>>, %arg3: memref<1x2x2x342xbf16, #tpu.memory_space<vmem>>, %arg4: memref<32x96xbf16, #tpu.memory_space<vmem>>, %arg5: memref<32x1xf32, #tpu.memory_space<vmem>>, %arg6: memref<6x32xbf16, #tpu.memory_space<vmem>>, %arg7: memref<3x1xf32, #tpu.memory_space<vmem>>, %arg8: memref<2x288xf32, #tpu.memory_space<vmem>>, %arg9: memref<1x8x3x288xf32, #tpu.memory_space<vmem>>, %arg10: memref<320x288xbf16, #tpu.memory_space<vmem>>) attributes {dimension_semantics = [#tpu.dimension_semantics<parallel>, #tpu.dimension_semantics<parallel>], iteration_bounds = array<i64: 2, 2>, scalar_prefetch = 0 : i64, scratch_operands = 1 : i64, tpu.core_type = #tpu.core_type<tc>, window_params = [{transform_indices = @transform_0, window_bounds = array<i64: 1, 8, 2, 342>}, {transform_indices = @transform_1, window_bounds = array<i64: 1, 2, 2, 342>}, {pipeline_mode = #tpu.pipeline_mode<synchronous>, transform_indices = @transform_2, window_bounds = array<i64: 32, 96>}, {pipeline_mode = #tpu.pipeline_mode<synchronous>, transform_indices = @transform_3, window_bounds = array<i64: 32, 1>}, {pipeline_mode = #tpu.pipeline_mode<synchronous>, transform_indices = @transform_4, window_bounds = array<i64: 6, 32>}, {pipeline_mode = #tpu.pipeline_mode<synchronous>, transform_indices = @transform_5, window_bounds = array<i64: 3, 1>}, {pipeline_mode = #tpu.pipeline_mode<synchronous>, transform_indices = @transform_6, window_bounds = array<i64: 2, 288>}, {transform_indices = @transform_7, window_bounds = array<i64: 1, 8, 3, 288>}]} {
    %cst = arith.constant 0.000000e+00 : bf16
    %0 = vector.broadcast %cst : bf16 to vector<14x288xbf16>
    %c0 = arith.constant 0 : index
    %c0_0 = arith.constant 0 : index
    %c0_1 = arith.constant 0 : index
    %c0_2 = arith.constant 0 : index
    %1 = vector.load %arg2[%c0, %c0_0, %c0_1, %c0_2] : memref<1x8x2x342xbf16, #tpu.memory_space<vmem>>, vector<1x1x2x342xbf16>
    %2 = vector.shape_cast %1 : vector<1x1x2x342xbf16> to vector<2x342xbf16>
    %3 = vector.extract_strided_slice %2 {offsets = [0, 0], sizes = [2, 288], strides = [1, 1]} : vector<2x342xbf16> to vector<2x288xbf16>
    %c0_3 = arith.constant 0 : index
    %c0_4 = arith.constant 0 : index
    %4 = vector.load %arg10[%c0_3, %c0_4] : memref<320x288xbf16, #tpu.memory_space<vmem>>, vector<2x288xbf16>
    tpu.vector_store %arg10[%c0_3, %c0_4], %3 {strides = array<i32>} : memref<320x288xbf16, #tpu.memory_space<vmem>>, vector<2x288xbf16>,
    %5 = vector.extract_strided_slice %2 {offsets = [0, 1], sizes = [2, 288], strides = [1, 1]} : vector<2x342xbf16> to vector<2x288xbf16>
    %c2 = arith.constant 2 : index
    %c0_5 = arith.constant 0 : index
    %6 = vector.load %arg10[%c2, %c0_5] : memref<320x288xbf16, #tpu.memory_space<vmem>>, vector<2x288xbf16>
    tpu.vector_store %arg10[%c2, %c0_5], %5 {strides = array<i32>} : memref<320x288xbf16, #tpu.memory_space<vmem>>, vector<2x288xbf16>,
    %7 = vector.extract_strided_slice %2 {offsets = [0, 2], sizes = [2, 288], strides = [1, 1]} : vector<2x342xbf16> to vector<2x288xbf16>
    %c4 = arith.constant 4 : index
    %c0_6 = arith.constant 0 : index
    %8 = vector.load %arg10[%c4, %c0_6] : memref<320x288xbf16, #tpu.memory_space<vmem>>, vector<2x288xbf16>
    tpu.vector_store %arg10[%c4, %c0_6], %7 {strides = array<i32>} : memref<320x288xbf16, #tpu.memory_space<vmem>>, vector<2x288xbf16>,
    %9 = vector.extract_strided_slice %2 {offsets = [0, 18], sizes = [2, 288], strides = [1, 1]} : vector<2x342xbf16> to vector<2x288xbf16>
    %c6 = arith.constant 6 : index
    %c0_7 = arith.constant 0 : index
    %10 = vector.load %arg10[%c6, %c0_7] : memref<320x288xbf16, #tpu.memory_space<vmem>>, vector<2x288xbf16>
    tpu.vector_store %arg10[%c6, %c0_7], %9 {strides = array<i32>} : memref<320x288xbf16, #tpu.memory_space<vmem>>, vector<2x288xbf16>,
    %11 = vector.extract_strided_slice %2 {offsets = [0, 19], sizes = [2, 288], strides = [1, 1]} : vector<2x342xbf16> to vector<2x288xbf16>
    %c8 = arith.constant 8 : index
    %c0_8 = arith.constant 0 : index
    %12 = vector.load %arg10[%c8, %c0_8] : memref<320x288xbf16, #tpu.memory_space<vmem>>, vector<2x288xbf16>
    tpu.vector_store %arg10[%c8, %c0_8], %11 {strides = array<i32>} : memref<320x288xbf16, #tpu.memory_space<vmem>>, vector<2x288xbf16>,
    %13 = vector.extract_strided_slice %2 {offsets = [0, 20], sizes = [2, 288], strides = [1, 1]} : vector<2x342xbf16> to vector<2x288xbf16>
    %c10 = arith.constant 10 : index
    %c0_9 = arith.constant 0 : index
    %14 = vector.load %arg10[%c10, %c0_9] : memref<320x288xbf16, #tpu.memory_space<vmem>>, vector<2x288xbf16>
    tpu.vector_store %arg10[%c10, %c0_9], %13 {strides = array<i32>} : memref<320x288xbf16, #tpu.memory_space<vmem>>, vector<2x288xbf16>,
    %15 = vector.extract_strided_slice %2 {offsets = [0, 36], sizes = [2, 288], strides = [1, 1]} : vector<2x342xbf16> to vector<2x288xbf16>
    %c12 = arith.constant 12 : index
    %c0_10 = arith.constant 0 : index
    %16 = vector.load %arg10[%c12, %c0_10] : memref<320x288xbf16, #tpu.memory_space<vmem>>, vector<2x288xbf16>
    tpu.vector_store %arg10[%c12, %c0_10], %15 {strides = array<i32>} : memref<320x288xbf16, #tpu.memory_space<vmem>>, vector<2x288xbf16>,
    %17 = vector.extract_strided_slice %2 {offsets = [0, 37], sizes = [2, 288], strides = [1, 1]} : vector<2x342xbf16> to vector<2x288xbf16>
    %c14 = arith.constant 14 : index
    %c0_11 = arith.constant 0 : index
    %18 = vector.load %arg10[%c14, %c0_11] : memref<320x288xbf16, #tpu.memory_space<vmem>>, vector<2x288xbf16>
    tpu.vector_store %arg10[%c14, %c0_11], %17 {strides = array<i32>} : memref<320x288xbf16, #tpu.memory_space<vmem>>, vector<2x288xbf16>,
    %19 = vector.extract_strided_slice %2 {offsets = [0, 38], sizes = [2, 288], strides = [1, 1]} : vector<2x342xbf16> to vector<2x288xbf16>
    %c16 = arith.constant 16 : index
    %c0_12 = arith.constant 0 : index
    %20 = vector.load %arg10[%c16, %c0_12] : memref<320x288xbf16, #tpu.memory_space<vmem>>, vector<2x288xbf16>
    tpu.vector_store %arg10[%c16, %c0_12], %19 {strides = array<i32>} : memref<320x288xbf16, #tpu.memory_space<vmem>>, vector<2x288xbf16>,
    %c18 = arith.constant 18 : index
    %c0_13 = arith.constant 0 : index
    %21 = vector.load %arg10[%c18, %c0_13] : memref<320x288xbf16, #tpu.memory_space<vmem>>, vector<14x288xbf16>
    tpu.vector_store %arg10[%c18, %c0_13], %0 {strides = array<i32>} : memref<320x288xbf16, #tpu.memory_space<vmem>>, vector<14x288xbf16>,
    %c0_14 = arith.constant 0 : index
    %c1 = arith.constant 1 : index
    %c0_15 = arith.constant 0 : index
    %c0_16 = arith.constant 0 : index
    %22 = vector.load %arg2[%c0_14, %c1, %c0_15, %c0_16] : memref<1x8x2x342xbf16, #tpu.memory_space<vmem>>, vector<1x1x2x342xbf16>
    %23 = vector.shape_cast %22 : vector<1x1x2x342xbf16> to vector<2x342xbf16>
    %24 = vector.extract_strided_slice %23 {offsets = [0, 0], sizes = [2, 288], strides = [1, 1]} : vector<2x342xbf16> to vector<2x288xbf16>
    %c32 = arith.constant 32 : index
    %c0_17 = arith.constant 0 : index
    %25 = vector.load %arg10[%c32, %c0_17] : memref<320x288xbf16, #tpu.memory_space<vmem>>, vector<2x288xbf16>
    tpu.vector_store %arg10[%c32, %c0_17], %24 {strides = array<i32>} : memref<320x288xbf16, #tpu.memory_space<vmem>>, vector<2x288xbf16>,
    %26 = vector.extract_strided_slice %23 {offsets = [0, 1], sizes = [2, 288], strides = [1, 1]} : vector<2x342xbf16> to vector<2x288xbf16>
    %c34 = arith.constant 34 : index
    %c0_18 = arith.constant 0 : index
    %27 = vector.load %arg10[%c34, %c0_18] : memref<320x288xbf16, #tpu.memory_space<vmem>>, vector<2x288xbf16>
    tpu.vector_store %arg10[%c34, %c0_18], %26 {strides = array<i32>} : memref<320x288xbf16, #tpu.memory_space<vmem>>, vector<2x288xbf16>,
    %28 = vector.extract_strided_slice %23 {offsets = [0, 2], sizes = [2, 288], strides = [1, 1]} : vector<2x342xbf16> to vector<2x288xbf16>
    %c36 = arith.constant 36 : index
    %c0_19 = arith.constant 0 : index
    %29 = vector.load %arg10[%c36, %c0_19] : memref<320x288xbf16, #tpu.memory_space<vmem>>, vector<2x288xbf16>
    tpu.vector_store %arg10[%c36, %c0_19], %28 {strides = array<i32>} : memref<320x288xbf16, #tpu.memory_space<vmem>>, vector<2x288xbf16>,
    %30 = vector.extract_strided_slice %23 {offsets = [0, 18], sizes = [2, 288], strides = [1, 1]} : vector<2x342xbf16> to vector<2x288xbf16>
    %c38 = arith.constant 38 : index
    %c0_20 = arith.constant 0 : index
    %31 = vector.load %arg10[%c38, %c0_20] : memref<320x288xbf16, #tpu.memory_space<vmem>>, vector<2x288xbf16>
    tpu.vector_store %arg10[%c38, %c0_20], %30 {strides = array<i32>} : memref<320x288xbf16, #tpu.memory_space<vmem>>, vector<2x288xbf16>,
    %32 = vector.extract_strided_slice %23 {offsets = [0, 19], sizes = [2, 288], strides = [1, 1]} : vector<2x342xbf16> to vector<2x288xbf16>
    %c40 = arith.constant 40 : index
    %c0_21 = arith.constant 0 : index
    %33 = vector.load %arg10[%c40, %c0_21] : memref<320x288xbf16, #tpu.memory_space<vmem>>, vector<2x288xbf16>
    tpu.vector_store %arg10[%c40, %c0_21], %32 {strides = array<i32>} : memref<320x288xbf16, #tpu.memory_space<vmem>>, vector<2x288xbf16>,
    %34 = vector.extract_strided_slice %23 {offsets = [0, 20], sizes = [2, 288], strides = [1, 1]} : vector<2x342xbf16> to vector<2x288xbf16>
    %c42 = arith.constant 42 : index
    %c0_22 = arith.constant 0 : index
    %35 = vector.load %arg10[%c42, %c0_22] : memref<320x288xbf16, #tpu.memory_space<vmem>>, vector<2x288xbf16>
    tpu.vector_store %arg10[%c42, %c0_22], %34 {strides = array<i32>} : memref<320x288xbf16, #tpu.memory_space<vmem>>, vector<2x288xbf16>,
    %36 = vector.extract_strided_slice %23 {offsets = [0, 36], sizes = [2, 288], strides = [1, 1]} : vector<2x342xbf16> to vector<2x288xbf16>
    %c44 = arith.constant 44 : index
    %c0_23 = arith.constant 0 : index
    %37 = vector.load %arg10[%c44, %c0_23] : memref<320x288xbf16, #tpu.memory_space<vmem>>, vector<2x288xbf16>
    tpu.vector_store %arg10[%c44, %c0_23], %36 {strides = array<i32>} : memref<320x288xbf16, #tpu.memory_space<vmem>>, vector<2x288xbf16>,
    %38 = vector.extract_strided_slice %23 {offsets = [0, 37], sizes = [2, 288], strides = [1, 1]} : vector<2x342xbf16> to vector<2x288xbf16>
    %c46 = arith.constant 46 : index
    %c0_24 = arith.constant 0 : index
    %39 = vector.load %arg10[%c46, %c0_24] : memref<320x288xbf16, #tpu.memory_space<vmem>>, vector<2x288xbf16>
    tpu.vector_store %arg10[%c46, %c0_24], %38 {strides = array<i32>} : memref<320x288xbf16, #tpu.memory_space<vmem>>, vector<2x288xbf16>,
    %40 = vector.extract_strided_slice %23 {offsets = [0, 38], sizes = [2, 288], strides = [1, 1]} : vector<2x342xbf16> to vector<2x288xbf16>
    %c48 = arith.constant 48 : index
    %c0_25 = arith.constant 0 : index
    %41 = vector.load %arg10[%c48, %c0_25] : memref<320x288xbf16, #tpu.memory_space<vmem>>, vector<2x288xbf16>
    tpu.vector_store %arg10[%c48, %c0_25], %40 {strides = array<i32>} : memref<320x288xbf16, #tpu.memory_space<vmem>>, vector<2x288xbf16>,
    %c50 = arith.constant 50 : index
    %c0_26 = arith.constant 0 : index
    %42 = vector.load %arg10[%c50, %c0_26] : memref<320x288xbf16, #tpu.memory_space<vmem>>, vector<14x288xbf16>
    tpu.vector_store %arg10[%c50, %c0_26], %0 {strides = array<i32>} : memref<320x288xbf16, #tpu.memory_space<vmem>>, vector<14x288xbf16>,
    %c0_27 = arith.constant 0 : index
    %c2_28 = arith.constant 2 : index
    %c0_29 = arith.constant 0 : index
    %c0_30 = arith.constant 0 : index
    %43 = vector.load %arg2[%c0_27, %c2_28, %c0_29, %c0_30] : memref<1x8x2x342xbf16, #tpu.memory_space<vmem>>, vector<1x1x2x342xbf16>
    %44 = vector.shape_cast %43 : vector<1x1x2x342xbf16> to vector<2x342xbf16>
    %45 = vector.extract_strided_slice %44 {offsets = [0, 0], sizes = [2, 288], strides = [1, 1]} : vector<2x342xbf16> to vector<2x288xbf16>
    %c64 = arith.constant 64 : index
    %c0_31 = arith.constant 0 : index
    %46 = vector.load %arg10[%c64, %c0_31] : memref<320x288xbf16, #tpu.memory_space<vmem>>, vector<2x288xbf16>
    tpu.vector_store %arg10[%c64, %c0_31], %45 {strides = array<i32>} : memref<320x288xbf16, #tpu.memory_space<vmem>>, vector<2x288xbf16>,
    %47 = vector.extract_strided_slice %44 {offsets = [0, 1], sizes = [2, 288], strides = [1, 1]} : vector<2x342xbf16> to vector<2x288xbf16>
    %c66 = arith.constant 66 : index
    %c0_32 = arith.constant 0 : index
    %48 = vector.load %arg10[%c66, %c0_32] : memref<320x288xbf16, #tpu.memory_space<vmem>>, vector<2x288xbf16>
    tpu.vector_store %arg10[%c66, %c0_32], %47 {strides = array<i32>} : memref<320x288xbf16, #tpu.memory_space<vmem>>, vector<2x288xbf16>,
    %49 = vector.extract_strided_slice %44 {offsets = [0, 2], sizes = [2, 288], strides = [1, 1]} : vector<2x342xbf16> to vector<2x288xbf16>
    %c68 = arith.constant 68 : index
    %c0_33 = arith.constant 0 : index
    %50 = vector.load %arg10[%c68, %c0_33] : memref<320x288xbf16, #tpu.memory_space<vmem>>, vector<2x288xbf16>
    tpu.vector_store %arg10[%c68, %c0_33], %49 {strides = array<i32>} : memref<320x288xbf16, #tpu.memory_space<vmem>>, vector<2x288xbf16>,
    %51 = vector.extract_strided_slice %44 {offsets = [0, 18], sizes = [2, 288], strides = [1, 1]} : vector<2x342xbf16> to vector<2x288xbf16>
    %c70 = arith.constant 70 : index
    %c0_34 = arith.constant 0 : index
    %52 = vector.load %arg10[%c70, %c0_34] : memref<320x288xbf16, #tpu.memory_space<vmem>>, vector<2x288xbf16>
    tpu.vector_store %arg10[%c70, %c0_34], %51 {strides = array<i32>} : memref<320x288xbf16, #tpu.memory_space<vmem>>, vector<2x288xbf16>,
    %53 = vector.extract_strided_slice %44 {offsets = [0, 19], sizes = [2, 288], strides = [1, 1]} : vector<2x342xbf16> to vector<2x288xbf16>
    %c72 = arith.constant 72 : index
    %c0_35 = arith.constant 0 : index
    %54 = vector.load %arg10[%c72, %c0_35] : memref<320x288xbf16, #tpu.memory_space<vmem>>, vector<2x288xbf16>
    tpu.vector_store %arg10[%c72, %c0_35], %53 {strides = array<i32>} : memref<320x288xbf16, #tpu.memory_space<vmem>>, vector<2x288xbf16>,
    %55 = vector.extract_strided_slice %44 {offsets = [0, 20], sizes = [2, 288], strides = [1, 1]} : vector<2x342xbf16> to vector<2x288xbf16>
    %c74 = arith.constant 74 : index
    %c0_36 = arith.constant 0 : index
    %56 = vector.load %arg10[%c74, %c0_36] : memref<320x288xbf16, #tpu.memory_space<vmem>>, vector<2x288xbf16>
    tpu.vector_store %arg10[%c74, %c0_36], %55 {strides = array<i32>} : memref<320x288xbf16, #tpu.memory_space<vmem>>, vector<2x288xbf16>,
    %57 = vector.extract_strided_slice %44 {offsets = [0, 36], sizes = [2, 288], strides = [1, 1]} : vector<2x342xbf16> to vector<2x288xbf16>
    %c76 = arith.constant 76 : index
    %c0_37 = arith.constant 0 : index
    %58 = vector.load %arg10[%c76, %c0_37] : memref<320x288xbf16, #tpu.memory_space<vmem>>, vector<2x288xbf16>
    tpu.vector_store %arg10[%c76, %c0_37], %57 {strides = array<i32>} : memref<320x288xbf16, #tpu.memory_space<vmem>>, vector<2x288xbf16>,
    %59 = vector.extract_strided_slice %44 {offsets = [0, 37], sizes = [2, 288], strides = [1, 1]} : vector<2x342xbf16> to vector<2x288xbf16>
    %c78 = arith.constant 78 : index
    %c0_38 = arith.constant 0 : index
    %60 = vector.load %arg10[%c78, %c0_38] : memref<320x288xbf16, #tpu.memory_space<vmem>>, vector<2x288xbf16>
    tpu.vector_store %arg10[%c78, %c0_38], %59 {strides = array<i32>} : memref<320x288xbf16, #tpu.memory_space<vmem>>, vector<2x288xbf16>,
    %61 = vector.extract_strided_slice %44 {offsets = [0, 38], sizes = [2, 288], strides = [1, 1]} : vector<2x342xbf16> to vector<2x288xbf16>
    %c80 = arith.constant 80 : index
    %c0_39 = arith.constant 0 : index
    %62 = vector.load %arg10[%c80, %c0_39] : memref<320x288xbf16, #tpu.memory_space<vmem>>, vector<2x288xbf16>
    tpu.vector_store %arg10[%c80, %c0_39], %61 {strides = array<i32>} : memref<320x288xbf16, #tpu.memory_space<vmem>>, vector<2x288xbf16>,
    %c82 = arith.constant 82 : index
    %c0_40 = arith.constant 0 : index
    %63 = vector.load %arg10[%c82, %c0_40] : memref<320x288xbf16, #tpu.memory_space<vmem>>, vector<14x288xbf16>
    tpu.vector_store %arg10[%c82, %c0_40], %0 {strides = array<i32>} : memref<320x288xbf16, #tpu.memory_space<vmem>>, vector<14x288xbf16>,
    %c0_41 = arith.constant 0 : index
    %c3 = arith.constant 3 : index
    %c0_42 = arith.constant 0 : index
    %c0_43 = arith.constant 0 : index
    %64 = vector.load %arg2[%c0_41, %c3, %c0_42, %c0_43] : memref<1x8x2x342xbf16, #tpu.memory_space<vmem>>, vector<1x1x2x342xbf16>
    %65 = vector.shape_cast %64 : vector<1x1x2x342xbf16> to vector<2x342xbf16>
    %66 = vector.extract_strided_slice %65 {offsets = [0, 0], sizes = [2, 288], strides = [1, 1]} : vector<2x342xbf16> to vector<2x288xbf16>
    %c96 = arith.constant 96 : index
    %c0_44 = arith.constant 0 : index
    %67 = vector.load %arg10[%c96, %c0_44] : memref<320x288xbf16, #tpu.memory_space<vmem>>, vector<2x288xbf16>
    tpu.vector_store %arg10[%c96, %c0_44], %66 {strides = array<i32>} : memref<320x288xbf16, #tpu.memory_space<vmem>>, vector<2x288xbf16>,
    %68 = vector.extract_strided_slice %65 {offsets = [0, 1], sizes = [2, 288], strides = [1, 1]} : vector<2x342xbf16> to vector<2x288xbf16>
    %c98 = arith.constant 98 : index
    %c0_45 = arith.constant 0 : index
    %69 = vector.load %arg10[%c98, %c0_45] : memref<320x288xbf16, #tpu.memory_space<vmem>>, vector<2x288xbf16>
    tpu.vector_store %arg10[%c98, %c0_45], %68 {strides = array<i32>} : memref<320x288xbf16, #tpu.memory_space<vmem>>, vector<2x288xbf16>,
    %70 = vector.extract_strided_slice %65 {offsets = [0, 2], sizes = [2, 288], strides = [1, 1]} : vector<2x342xbf16> to vector<2x288xbf16>
    %c100 = arith.constant 100 : index
    %c0_46 = arith.constant 0 : index
    %71 = vector.load %arg10[%c100, %c0_46] : memref<320x288xbf16, #tpu.memory_space<vmem>>, vector<2x288xbf16>
    tpu.vector_store %arg10[%c100, %c0_46], %70 {strides = array<i32>} : memref<320x288xbf16, #tpu.memory_space<vmem>>, vector<2x288xbf16>,
    %72 = vector.extract_strided_slice %65 {offsets = [0, 18], sizes = [2, 288], strides = [1, 1]} : vector<2x342xbf16> to vector<2x288xbf16>
    %c102 = arith.constant 102 : index
    %c0_47 = arith.constant 0 : index
    %73 = vector.load %arg10[%c102, %c0_47] : memref<320x288xbf16, #tpu.memory_space<vmem>>, vector<2x288xbf16>
    tpu.vector_store %arg10[%c102, %c0_47], %72 {strides = array<i32>} : memref<320x288xbf16, #tpu.memory_space<vmem>>, vector<2x288xbf16>,
    %74 = vector.extract_strided_slice %65 {offsets = [0, 19], sizes = [2, 288], strides = [1, 1]} : vector<2x342xbf16> to vector<2x288xbf16>
    %c104 = arith.constant 104 : index
    %c0_48 = arith.constant 0 : index
    %75 = vector.load %arg10[%c104, %c0_48] : memref<320x288xbf16, #tpu.memory_space<vmem>>, vector<2x288xbf16>
    tpu.vector_store %arg10[%c104, %c0_48], %74 {strides = array<i32>} : memref<320x288xbf16, #tpu.memory_space<vmem>>, vector<2x288xbf16>,
    %76 = vector.extract_strided_slice %65 {offsets = [0, 20], sizes = [2, 288], strides = [1, 1]} : vector<2x342xbf16> to vector<2x288xbf16>
    %c106 = arith.constant 106 : index
    %c0_49 = arith.constant 0 : index
    %77 = vector.load %arg10[%c106, %c0_49] : memref<320x288xbf16, #tpu.memory_space<vmem>>, vector<2x288xbf16>
    tpu.vector_store %arg10[%c106, %c0_49], %76 {strides = array<i32>} : memref<320x288xbf16, #tpu.memory_space<vmem>>, vector<2x288xbf16>,
    %78 = vector.extract_strided_slice %65 {offsets = [0, 36], sizes = [2, 288], strides = [1, 1]} : vector<2x342xbf16> to vector<2x288xbf16>
    %c108 = arith.constant 108 : index
    %c0_50 = arith.constant 0 : index
    %79 = vector.load %arg10[%c108, %c0_50] : memref<320x288xbf16, #tpu.memory_space<vmem>>, vector<2x288xbf16>
    tpu.vector_store %arg10[%c108, %c0_50], %78 {strides = array<i32>} : memref<320x288xbf16, #tpu.memory_space<vmem>>, vector<2x288xbf16>,
    %80 = vector.extract_strided_slice %65 {offsets = [0, 37], sizes = [2, 288], strides = [1, 1]} : vector<2x342xbf16> to vector<2x288xbf16>
    %c110 = arith.constant 110 : index
    %c0_51 = arith.constant 0 : index
    %81 = vector.load %arg10[%c110, %c0_51] : memref<320x288xbf16, #tpu.memory_space<vmem>>, vector<2x288xbf16>
    tpu.vector_store %arg10[%c110, %c0_51], %80 {strides = array<i32>} : memref<320x288xbf16, #tpu.memory_space<vmem>>, vector<2x288xbf16>,
    %82 = vector.extract_strided_slice %65 {offsets = [0, 38], sizes = [2, 288], strides = [1, 1]} : vector<2x342xbf16> to vector<2x288xbf16>
    %c112 = arith.constant 112 : index
    %c0_52 = arith.constant 0 : index
    %83 = vector.load %arg10[%c112, %c0_52] : memref<320x288xbf16, #tpu.memory_space<vmem>>, vector<2x288xbf16>
    tpu.vector_store %arg10[%c112, %c0_52], %82 {strides = array<i32>} : memref<320x288xbf16, #tpu.memory_space<vmem>>, vector<2x288xbf16>,
    %c114 = arith.constant 114 : index
    %c0_53 = arith.constant 0 : index
    %84 = vector.load %arg10[%c114, %c0_53] : memref<320x288xbf16, #tpu.memory_space<vmem>>, vector<14x288xbf16>
    tpu.vector_store %arg10[%c114, %c0_53], %0 {strides = array<i32>} : memref<320x288xbf16, #tpu.memory_space<vmem>>, vector<14x288xbf16>,
    %c0_54 = arith.constant 0 : index
    %c4_55 = arith.constant 4 : index
    %c0_56 = arith.constant 0 : index
    %c0_57 = arith.constant 0 : index
    %85 = vector.load %arg2[%c0_54, %c4_55, %c0_56, %c0_57] : memref<1x8x2x342xbf16, #tpu.memory_space<vmem>>, vector<1x1x2x342xbf16>
    %86 = vector.shape_cast %85 : vector<1x1x2x342xbf16> to vector<2x342xbf16>
    %87 = vector.extract_strided_slice %86 {offsets = [0, 0], sizes = [2, 288], strides = [1, 1]} : vector<2x342xbf16> to vector<2x288xbf16>
    %c128 = arith.constant 128 : index
    %c0_58 = arith.constant 0 : index
    %88 = vector.load %arg10[%c128, %c0_58] : memref<320x288xbf16, #tpu.memory_space<vmem>>, vector<2x288xbf16>
    tpu.vector_store %arg10[%c128, %c0_58], %87 {strides = array<i32>} : memref<320x288xbf16, #tpu.memory_space<vmem>>, vector<2x288xbf16>,
    %89 = vector.extract_strided_slice %86 {offsets = [0, 1], sizes = [2, 288], strides = [1, 1]} : vector<2x342xbf16> to vector<2x288xbf16>
    %c130 = arith.constant 130 : index
    %c0_59 = arith.constant 0 : index
    %90 = vector.load %arg10[%c130, %c0_59] : memref<320x288xbf16, #tpu.memory_space<vmem>>, vector<2x288xbf16>
    tpu.vector_store %arg10[%c130, %c0_59], %89 {strides = array<i32>} : memref<320x288xbf16, #tpu.memory_space<vmem>>, vector<2x288xbf16>,
    %91 = vector.extract_strided_slice %86 {offsets = [0, 2], sizes = [2, 288], strides = [1, 1]} : vector<2x342xbf16> to vector<2x288xbf16>
    %c132 = arith.constant 132 : index
    %c0_60 = arith.constant 0 : index
    %92 = vector.load %arg10[%c132, %c0_60] : memref<320x288xbf16, #tpu.memory_space<vmem>>, vector<2x288xbf16>
    tpu.vector_store %arg10[%c132, %c0_60], %91 {strides = array<i32>} : memref<320x288xbf16, #tpu.memory_space<vmem>>, vector<2x288xbf16>,
    %93 = vector.extract_strided_slice %86 {offsets = [0, 18], sizes = [2, 288], strides = [1, 1]} : vector<2x342xbf16> to vector<2x288xbf16>
    %c134 = arith.constant 134 : index
    %c0_61 = arith.constant 0 : index
    %94 = vector.load %arg10[%c134, %c0_61] : memref<320x288xbf16, #tpu.memory_space<vmem>>, vector<2x288xbf16>
    tpu.vector_store %arg10[%c134, %c0_61], %93 {strides = array<i32>} : memref<320x288xbf16, #tpu.memory_space<vmem>>, vector<2x288xbf16>,
    %95 = vector.extract_strided_slice %86 {offsets = [0, 19], sizes = [2, 288], strides = [1, 1]} : vector<2x342xbf16> to vector<2x288xbf16>
    %c136 = arith.constant 136 : index
    %c0_62 = arith.constant 0 : index
    %96 = vector.load %arg10[%c136, %c0_62] : memref<320x288xbf16, #tpu.memory_space<vmem>>, vector<2x288xbf16>
    tpu.vector_store %arg10[%c136, %c0_62], %95 {strides = array<i32>} : memref<320x288xbf16, #tpu.memory_space<vmem>>, vector<2x288xbf16>,
    %97 = vector.extract_strided_slice %86 {offsets = [0, 20], sizes = [2, 288], strides = [1, 1]} : vector<2x342xbf16> to vector<2x288xbf16>
    %c138 = arith.constant 138 : index
    %c0_63 = arith.constant 0 : index
    %98 = vector.load %arg10[%c138, %c0_63] : memref<320x288xbf16, #tpu.memory_space<vmem>>, vector<2x288xbf16>
    tpu.vector_store %arg10[%c138, %c0_63], %97 {strides = array<i32>} : memref<320x288xbf16, #tpu.memory_space<vmem>>, vector<2x288xbf16>,
    %99 = vector.extract_strided_slice %86 {offsets = [0, 36], sizes = [2, 288], strides = [1, 1]} : vector<2x342xbf16> to vector<2x288xbf16>
    %c140 = arith.constant 140 : index
    %c0_64 = arith.constant 0 : index
    %100 = vector.load %arg10[%c140, %c0_64] : memref<320x288xbf16, #tpu.memory_space<vmem>>, vector<2x288xbf16>
    tpu.vector_store %arg10[%c140, %c0_64], %99 {strides = array<i32>} : memref<320x288xbf16, #tpu.memory_space<vmem>>, vector<2x288xbf16>,
    %101 = vector.extract_strided_slice %86 {offsets = [0, 37], sizes = [2, 288], strides = [1, 1]} : vector<2x342xbf16> to vector<2x288xbf16>
    %c142 = arith.constant 142 : index
    %c0_65 = arith.constant 0 : index
    %102 = vector.load %arg10[%c142, %c0_65] : memref<320x288xbf16, #tpu.memory_space<vmem>>, vector<2x288xbf16>
    tpu.vector_store %arg10[%c142, %c0_65], %101 {strides = array<i32>} : memref<320x288xbf16, #tpu.memory_space<vmem>>, vector<2x288xbf16>,
    %103 = vector.extract_strided_slice %86 {offsets = [0, 38], sizes = [2, 288], strides = [1, 1]} : vector<2x342xbf16> to vector<2x288xbf16>
    %c144 = arith.constant 144 : index
    %c0_66 = arith.constant 0 : index
    %104 = vector.load %arg10[%c144, %c0_66] : memref<320x288xbf16, #tpu.memory_space<vmem>>, vector<2x288xbf16>
    tpu.vector_store %arg10[%c144, %c0_66], %103 {strides = array<i32>} : memref<320x288xbf16, #tpu.memory_space<vmem>>, vector<2x288xbf16>,
    %c146 = arith.constant 146 : index
    %c0_67 = arith.constant 0 : index
    %105 = vector.load %arg10[%c146, %c0_67] : memref<320x288xbf16, #tpu.memory_space<vmem>>, vector<14x288xbf16>
    tpu.vector_store %arg10[%c146, %c0_67], %0 {strides = array<i32>} : memref<320x288xbf16, #tpu.memory_space<vmem>>, vector<14x288xbf16>,
    %c0_68 = arith.constant 0 : index
    %c5 = arith.constant 5 : index
    %c0_69 = arith.constant 0 : index
    %c0_70 = arith.constant 0 : index
    %106 = vector.load %arg2[%c0_68, %c5, %c0_69, %c0_70] : memref<1x8x2x342xbf16, #tpu.memory_space<vmem>>, vector<1x1x2x342xbf16>
    %107 = vector.shape_cast %106 : vector<1x1x2x342xbf16> to vector<2x342xbf16>
    %108 = vector.extract_strided_slice %107 {offsets = [0, 0], sizes = [2, 288], strides = [1, 1]} : vector<2x342xbf16> to vector<2x288xbf16>
    %c160 = arith.constant 160 : index
    %c0_71 = arith.constant 0 : index
    %109 = vector.load %arg10[%c160, %c0_71] : memref<320x288xbf16, #tpu.memory_space<vmem>>, vector<2x288xbf16>
    tpu.vector_store %arg10[%c160, %c0_71], %108 {strides = array<i32>} : memref<320x288xbf16, #tpu.memory_space<vmem>>, vector<2x288xbf16>,
    %110 = vector.extract_strided_slice %107 {offsets = [0, 1], sizes = [2, 288], strides = [1, 1]} : vector<2x342xbf16> to vector<2x288xbf16>
    %c162 = arith.constant 162 : index
    %c0_72 = arith.constant 0 : index
    %111 = vector.load %arg10[%c162, %c0_72] : memref<320x288xbf16, #tpu.memory_space<vmem>>, vector<2x288xbf16>
    tpu.vector_store %arg10[%c162, %c0_72], %110 {strides = array<i32>} : memref<320x288xbf16, #tpu.memory_space<vmem>>, vector<2x288xbf16>,
    %112 = vector.extract_strided_slice %107 {offsets = [0, 2], sizes = [2, 288], strides = [1, 1]} : vector<2x342xbf16> to vector<2x288xbf16>
    %c164 = arith.constant 164 : index
    %c0_73 = arith.constant 0 : index
    %113 = vector.load %arg10[%c164, %c0_73] : memref<320x288xbf16, #tpu.memory_space<vmem>>, vector<2x288xbf16>
    tpu.vector_store %arg10[%c164, %c0_73], %112 {strides = array<i32>} : memref<320x288xbf16, #tpu.memory_space<vmem>>, vector<2x288xbf16>,
    %114 = vector.extract_strided_slice %107 {offsets = [0, 18], sizes = [2, 288], strides = [1, 1]} : vector<2x342xbf16> to vector<2x288xbf16>
    %c166 = arith.constant 166 : index
    %c0_74 = arith.constant 0 : index
    %115 = vector.load %arg10[%c166, %c0_74] : memref<320x288xbf16, #tpu.memory_space<vmem>>, vector<2x288xbf16>
    tpu.vector_store %arg10[%c166, %c0_74], %114 {strides = array<i32>} : memref<320x288xbf16, #tpu.memory_space<vmem>>, vector<2x288xbf16>,
    %116 = vector.extract_strided_slice %107 {offsets = [0, 19], sizes = [2, 288], strides = [1, 1]} : vector<2x342xbf16> to vector<2x288xbf16>
    %c168 = arith.constant 168 : index
    %c0_75 = arith.constant 0 : index
    %117 = vector.load %arg10[%c168, %c0_75] : memref<320x288xbf16, #tpu.memory_space<vmem>>, vector<2x288xbf16>
    tpu.vector_store %arg10[%c168, %c0_75], %116 {strides = array<i32>} : memref<320x288xbf16, #tpu.memory_space<vmem>>, vector<2x288xbf16>,
    %118 = vector.extract_strided_slice %107 {offsets = [0, 20], sizes = [2, 288], strides = [1, 1]} : vector<2x342xbf16> to vector<2x288xbf16>
    %c170 = arith.constant 170 : index
    %c0_76 = arith.constant 0 : index
    %119 = vector.load %arg10[%c170, %c0_76] : memref<320x288xbf16, #tpu.memory_space<vmem>>, vector<2x288xbf16>
    tpu.vector_store %arg10[%c170, %c0_76], %118 {strides = array<i32>} : memref<320x288xbf16, #tpu.memory_space<vmem>>, vector<2x288xbf16>,
    %120 = vector.extract_strided_slice %107 {offsets = [0, 36], sizes = [2, 288], strides = [1, 1]} : vector<2x342xbf16> to vector<2x288xbf16>
    %c172 = arith.constant 172 : index
    %c0_77 = arith.constant 0 : index
    %121 = vector.load %arg10[%c172, %c0_77] : memref<320x288xbf16, #tpu.memory_space<vmem>>, vector<2x288xbf16>
    tpu.vector_store %arg10[%c172, %c0_77], %120 {strides = array<i32>} : memref<320x288xbf16, #tpu.memory_space<vmem>>, vector<2x288xbf16>,
    %122 = vector.extract_strided_slice %107 {offsets = [0, 37], sizes = [2, 288], strides = [1, 1]} : vector<2x342xbf16> to vector<2x288xbf16>
    %c174 = arith.constant 174 : index
    %c0_78 = arith.constant 0 : index
    %123 = vector.load %arg10[%c174, %c0_78] : memref<320x288xbf16, #tpu.memory_space<vmem>>, vector<2x288xbf16>
    tpu.vector_store %arg10[%c174, %c0_78], %122 {strides = array<i32>} : memref<320x288xbf16, #tpu.memory_space<vmem>>, vector<2x288xbf16>,
    %124 = vector.extract_strided_slice %107 {offsets = [0, 38], sizes = [2, 288], strides = [1, 1]} : vector<2x342xbf16> to vector<2x288xbf16>
    %c176 = arith.constant 176 : index
    %c0_79 = arith.constant 0 : index
    %125 = vector.load %arg10[%c176, %c0_79] : memref<320x288xbf16, #tpu.memory_space<vmem>>, vector<2x288xbf16>
    tpu.vector_store %arg10[%c176, %c0_79], %124 {strides = array<i32>} : memref<320x288xbf16, #tpu.memory_space<vmem>>, vector<2x288xbf16>,
    %c178 = arith.constant 178 : index
    %c0_80 = arith.constant 0 : index
    %126 = vector.load %arg10[%c178, %c0_80] : memref<320x288xbf16, #tpu.memory_space<vmem>>, vector<14x288xbf16>
    tpu.vector_store %arg10[%c178, %c0_80], %0 {strides = array<i32>} : memref<320x288xbf16, #tpu.memory_space<vmem>>, vector<14x288xbf16>,
    %c0_81 = arith.constant 0 : index
    %c6_82 = arith.constant 6 : index
    %c0_83 = arith.constant 0 : index
    %c0_84 = arith.constant 0 : index
    %127 = vector.load %arg2[%c0_81, %c6_82, %c0_83, %c0_84] : memref<1x8x2x342xbf16, #tpu.memory_space<vmem>>, vector<1x1x2x342xbf16>
    %128 = vector.shape_cast %127 : vector<1x1x2x342xbf16> to vector<2x342xbf16>
    %129 = vector.extract_strided_slice %128 {offsets = [0, 0], sizes = [2, 288], strides = [1, 1]} : vector<2x342xbf16> to vector<2x288xbf16>
    %c192 = arith.constant 192 : index
    %c0_85 = arith.constant 0 : index
    %130 = vector.load %arg10[%c192, %c0_85] : memref<320x288xbf16, #tpu.memory_space<vmem>>, vector<2x288xbf16>
    tpu.vector_store %arg10[%c192, %c0_85], %129 {strides = array<i32>} : memref<320x288xbf16, #tpu.memory_space<vmem>>, vector<2x288xbf16>,
    %131 = vector.extract_strided_slice %128 {offsets = [0, 1], sizes = [2, 288], strides = [1, 1]} : vector<2x342xbf16> to vector<2x288xbf16>
    %c194 = arith.constant 194 : index
    %c0_86 = arith.constant 0 : index
    %132 = vector.load %arg10[%c194, %c0_86] : memref<320x288xbf16, #tpu.memory_space<vmem>>, vector<2x288xbf16>
    tpu.vector_store %arg10[%c194, %c0_86], %131 {strides = array<i32>} : memref<320x288xbf16, #tpu.memory_space<vmem>>, vector<2x288xbf16>,
    %133 = vector.extract_strided_slice %128 {offsets = [0, 2], sizes = [2, 288], strides = [1, 1]} : vector<2x342xbf16> to vector<2x288xbf16>
    %c196 = arith.constant 196 : index
    %c0_87 = arith.constant 0 : index
    %134 = vector.load %arg10[%c196, %c0_87] : memref<320x288xbf16, #tpu.memory_space<vmem>>, vector<2x288xbf16>
    tpu.vector_store %arg10[%c196, %c0_87], %133 {strides = array<i32>} : memref<320x288xbf16, #tpu.memory_space<vmem>>, vector<2x288xbf16>,
    %135 = vector.extract_strided_slice %128 {offsets = [0, 18], sizes = [2, 288], strides = [1, 1]} : vector<2x342xbf16> to vector<2x288xbf16>
    %c198 = arith.constant 198 : index
    %c0_88 = arith.constant 0 : index
    %136 = vector.load %arg10[%c198, %c0_88] : memref<320x288xbf16, #tpu.memory_space<vmem>>, vector<2x288xbf16>
    tpu.vector_store %arg10[%c198, %c0_88], %135 {strides = array<i32>} : memref<320x288xbf16, #tpu.memory_space<vmem>>, vector<2x288xbf16>,
    %137 = vector.extract_strided_slice %128 {offsets = [0, 19], sizes = [2, 288], strides = [1, 1]} : vector<2x342xbf16> to vector<2x288xbf16>
    %c200 = arith.constant 200 : index
    %c0_89 = arith.constant 0 : index
    %138 = vector.load %arg10[%c200, %c0_89] : memref<320x288xbf16, #tpu.memory_space<vmem>>, vector<2x288xbf16>
    tpu.vector_store %arg10[%c200, %c0_89], %137 {strides = array<i32>} : memref<320x288xbf16, #tpu.memory_space<vmem>>, vector<2x288xbf16>,
    %139 = vector.extract_strided_slice %128 {offsets = [0, 20], sizes = [2, 288], strides = [1, 1]} : vector<2x342xbf16> to vector<2x288xbf16>
    %c202 = arith.constant 202 : index
    %c0_90 = arith.constant 0 : index
    %140 = vector.load %arg10[%c202, %c0_90] : memref<320x288xbf16, #tpu.memory_space<vmem>>, vector<2x288xbf16>
    tpu.vector_store %arg10[%c202, %c0_90], %139 {strides = array<i32>} : memref<320x288xbf16, #tpu.memory_space<vmem>>, vector<2x288xbf16>,
    %141 = vector.extract_strided_slice %128 {offsets = [0, 36], sizes = [2, 288], strides = [1, 1]} : vector<2x342xbf16> to vector<2x288xbf16>
    %c204 = arith.constant 204 : index
    %c0_91 = arith.constant 0 : index
    %142 = vector.load %arg10[%c204, %c0_91] : memref<320x288xbf16, #tpu.memory_space<vmem>>, vector<2x288xbf16>
    tpu.vector_store %arg10[%c204, %c0_91], %141 {strides = array<i32>} : memref<320x288xbf16, #tpu.memory_space<vmem>>, vector<2x288xbf16>,
    %143 = vector.extract_strided_slice %128 {offsets = [0, 37], sizes = [2, 288], strides = [1, 1]} : vector<2x342xbf16> to vector<2x288xbf16>
    %c206 = arith.constant 206 : index
    %c0_92 = arith.constant 0 : index
    %144 = vector.load %arg10[%c206, %c0_92] : memref<320x288xbf16, #tpu.memory_space<vmem>>, vector<2x288xbf16>
    tpu.vector_store %arg10[%c206, %c0_92], %143 {strides = array<i32>} : memref<320x288xbf16, #tpu.memory_space<vmem>>, vector<2x288xbf16>,
    %145 = vector.extract_strided_slice %128 {offsets = [0, 38], sizes = [2, 288], strides = [1, 1]} : vector<2x342xbf16> to vector<2x288xbf16>
    %c208 = arith.constant 208 : index
    %c0_93 = arith.constant 0 : index
    %146 = vector.load %arg10[%c208, %c0_93] : memref<320x288xbf16, #tpu.memory_space<vmem>>, vector<2x288xbf16>
    tpu.vector_store %arg10[%c208, %c0_93], %145 {strides = array<i32>} : memref<320x288xbf16, #tpu.memory_space<vmem>>, vector<2x288xbf16>,
    %c210 = arith.constant 210 : index
    %c0_94 = arith.constant 0 : index
    %147 = vector.load %arg10[%c210, %c0_94] : memref<320x288xbf16, #tpu.memory_space<vmem>>, vector<14x288xbf16>
    tpu.vector_store %arg10[%c210, %c0_94], %0 {strides = array<i32>} : memref<320x288xbf16, #tpu.memory_space<vmem>>, vector<14x288xbf16>,
    %c0_95 = arith.constant 0 : index
    %c7 = arith.constant 7 : index
    %c0_96 = arith.constant 0 : index
    %c0_97 = arith.constant 0 : index
    %148 = vector.load %arg2[%c0_95, %c7, %c0_96, %c0_97] : memref<1x8x2x342xbf16, #tpu.memory_space<vmem>>, vector<1x1x2x342xbf16>
    %149 = vector.shape_cast %148 : vector<1x1x2x342xbf16> to vector<2x342xbf16>
    %150 = vector.extract_strided_slice %149 {offsets = [0, 0], sizes = [2, 288], strides = [1, 1]} : vector<2x342xbf16> to vector<2x288xbf16>
    %c224 = arith.constant 224 : index
    %c0_98 = arith.constant 0 : index
    %151 = vector.load %arg10[%c224, %c0_98] : memref<320x288xbf16, #tpu.memory_space<vmem>>, vector<2x288xbf16>
    tpu.vector_store %arg10[%c224, %c0_98], %150 {strides = array<i32>} : memref<320x288xbf16, #tpu.memory_space<vmem>>, vector<2x288xbf16>,
    %152 = vector.extract_strided_slice %149 {offsets = [0, 1], sizes = [2, 288], strides = [1, 1]} : vector<2x342xbf16> to vector<2x288xbf16>
    %c226 = arith.constant 226 : index
    %c0_99 = arith.constant 0 : index
    %153 = vector.load %arg10[%c226, %c0_99] : memref<320x288xbf16, #tpu.memory_space<vmem>>, vector<2x288xbf16>
    tpu.vector_store %arg10[%c226, %c0_99], %152 {strides = array<i32>} : memref<320x288xbf16, #tpu.memory_space<vmem>>, vector<2x288xbf16>,
    %154 = vector.extract_strided_slice %149 {offsets = [0, 2], sizes = [2, 288], strides = [1, 1]} : vector<2x342xbf16> to vector<2x288xbf16>
    %c228 = arith.constant 228 : index
    %c0_100 = arith.constant 0 : index
    %155 = vector.load %arg10[%c228, %c0_100] : memref<320x288xbf16, #tpu.memory_space<vmem>>, vector<2x288xbf16>
    tpu.vector_store %arg10[%c228, %c0_100], %154 {strides = array<i32>} : memref<320x288xbf16, #tpu.memory_space<vmem>>, vector<2x288xbf16>,
    %156 = vector.extract_strided_slice %149 {offsets = [0, 18], sizes = [2, 288], strides = [1, 1]} : vector<2x342xbf16> to vector<2x288xbf16>
    %c230 = arith.constant 230 : index
    %c0_101 = arith.constant 0 : index
    %157 = vector.load %arg10[%c230, %c0_101] : memref<320x288xbf16, #tpu.memory_space<vmem>>, vector<2x288xbf16>
    tpu.vector_store %arg10[%c230, %c0_101], %156 {strides = array<i32>} : memref<320x288xbf16, #tpu.memory_space<vmem>>, vector<2x288xbf16>,
    %158 = vector.extract_strided_slice %149 {offsets = [0, 19], sizes = [2, 288], strides = [1, 1]} : vector<2x342xbf16> to vector<2x288xbf16>
    %c232 = arith.constant 232 : index
    %c0_102 = arith.constant 0 : index
    %159 = vector.load %arg10[%c232, %c0_102] : memref<320x288xbf16, #tpu.memory_space<vmem>>, vector<2x288xbf16>
    tpu.vector_store %arg10[%c232, %c0_102], %158 {strides = array<i32>} : memref<320x288xbf16, #tpu.memory_space<vmem>>, vector<2x288xbf16>,
    %160 = vector.extract_strided_slice %149 {offsets = [0, 20], sizes = [2, 288], strides = [1, 1]} : vector<2x342xbf16> to vector<2x288xbf16>
    %c234 = arith.constant 234 : index
    %c0_103 = arith.constant 0 : index
    %161 = vector.load %arg10[%c234, %c0_103] : memref<320x288xbf16, #tpu.memory_space<vmem>>, vector<2x288xbf16>
    tpu.vector_store %arg10[%c234, %c0_103], %160 {strides = array<i32>} : memref<320x288xbf16, #tpu.memory_space<vmem>>, vector<2x288xbf16>,
    %162 = vector.extract_strided_slice %149 {offsets = [0, 36], sizes = [2, 288], strides = [1, 1]} : vector<2x342xbf16> to vector<2x288xbf16>
    %c236 = arith.constant 236 : index
    %c0_104 = arith.constant 0 : index
    %163 = vector.load %arg10[%c236, %c0_104] : memref<320x288xbf16, #tpu.memory_space<vmem>>, vector<2x288xbf16>
    tpu.vector_store %arg10[%c236, %c0_104], %162 {strides = array<i32>} : memref<320x288xbf16, #tpu.memory_space<vmem>>, vector<2x288xbf16>,
    %164 = vector.extract_strided_slice %149 {offsets = [0, 37], sizes = [2, 288], strides = [1, 1]} : vector<2x342xbf16> to vector<2x288xbf16>
    %c238 = arith.constant 238 : index
    %c0_105 = arith.constant 0 : index
    %165 = vector.load %arg10[%c238, %c0_105] : memref<320x288xbf16, #tpu.memory_space<vmem>>, vector<2x288xbf16>
    tpu.vector_store %arg10[%c238, %c0_105], %164 {strides = array<i32>} : memref<320x288xbf16, #tpu.memory_space<vmem>>, vector<2x288xbf16>,
    %166 = vector.extract_strided_slice %149 {offsets = [0, 38], sizes = [2, 288], strides = [1, 1]} : vector<2x342xbf16> to vector<2x288xbf16>
    %c240 = arith.constant 240 : index
    %c0_106 = arith.constant 0 : index
    %167 = vector.load %arg10[%c240, %c0_106] : memref<320x288xbf16, #tpu.memory_space<vmem>>, vector<2x288xbf16>
    tpu.vector_store %arg10[%c240, %c0_106], %166 {strides = array<i32>} : memref<320x288xbf16, #tpu.memory_space<vmem>>, vector<2x288xbf16>,
    %c242 = arith.constant 242 : index
    %c0_107 = arith.constant 0 : index
    %168 = vector.load %arg10[%c242, %c0_107] : memref<320x288xbf16, #tpu.memory_space<vmem>>, vector<14x288xbf16>
    tpu.vector_store %arg10[%c242, %c0_107], %0 {strides = array<i32>} : memref<320x288xbf16, #tpu.memory_space<vmem>>, vector<14x288xbf16>,
    %c0_108 = arith.constant 0 : index
    %c0_109 = arith.constant 0 : index
    %c0_110 = arith.constant 0 : index
    %c0_111 = arith.constant 0 : index
    %169 = vector.load %arg3[%c0_108, %c0_109, %c0_110, %c0_111] : memref<1x2x2x342xbf16, #tpu.memory_space<vmem>>, vector<1x1x2x342xbf16>
    %170 = vector.shape_cast %169 : vector<1x1x2x342xbf16> to vector<2x342xbf16>
    %171 = vector.extract_strided_slice %170 {offsets = [0, 0], sizes = [2, 288], strides = [1, 1]} : vector<2x342xbf16> to vector<2x288xbf16>
    %c256 = arith.constant 256 : index
    %c0_112 = arith.constant 0 : index
    %172 = vector.load %arg10[%c256, %c0_112] : memref<320x288xbf16, #tpu.memory_space<vmem>>, vector<2x288xbf16>
    tpu.vector_store %arg10[%c256, %c0_112], %171 {strides = array<i32>} : memref<320x288xbf16, #tpu.memory_space<vmem>>, vector<2x288xbf16>,
    %173 = vector.extract_strided_slice %170 {offsets = [0, 1], sizes = [2, 288], strides = [1, 1]} : vector<2x342xbf16> to vector<2x288xbf16>
    %c258 = arith.constant 258 : index
    %c0_113 = arith.constant 0 : index
    %174 = vector.load %arg10[%c258, %c0_113] : memref<320x288xbf16, #tpu.memory_space<vmem>>, vector<2x288xbf16>
    tpu.vector_store %arg10[%c258, %c0_113], %173 {strides = array<i32>} : memref<320x288xbf16, #tpu.memory_space<vmem>>, vector<2x288xbf16>,
    %175 = vector.extract_strided_slice %170 {offsets = [0, 2], sizes = [2, 288], strides = [1, 1]} : vector<2x342xbf16> to vector<2x288xbf16>
    %c260 = arith.constant 260 : index
    %c0_114 = arith.constant 0 : index
    %176 = vector.load %arg10[%c260, %c0_114] : memref<320x288xbf16, #tpu.memory_space<vmem>>, vector<2x288xbf16>
    tpu.vector_store %arg10[%c260, %c0_114], %175 {strides = array<i32>} : memref<320x288xbf16, #tpu.memory_space<vmem>>, vector<2x288xbf16>,
    %177 = vector.extract_strided_slice %170 {offsets = [0, 18], sizes = [2, 288], strides = [1, 1]} : vector<2x342xbf16> to vector<2x288xbf16>
    %c262 = arith.constant 262 : index
    %c0_115 = arith.constant 0 : index
    %178 = vector.load %arg10[%c262, %c0_115] : memref<320x288xbf16, #tpu.memory_space<vmem>>, vector<2x288xbf16>
    tpu.vector_store %arg10[%c262, %c0_115], %177 {strides = array<i32>} : memref<320x288xbf16, #tpu.memory_space<vmem>>, vector<2x288xbf16>,
    %179 = vector.extract_strided_slice %170 {offsets = [0, 19], sizes = [2, 288], strides = [1, 1]} : vector<2x342xbf16> to vector<2x288xbf16>
    %c264 = arith.constant 264 : index
    %c0_116 = arith.constant 0 : index
    %180 = vector.load %arg10[%c264, %c0_116] : memref<320x288xbf16, #tpu.memory_space<vmem>>, vector<2x288xbf16>
    tpu.vector_store %arg10[%c264, %c0_116], %179 {strides = array<i32>} : memref<320x288xbf16, #tpu.memory_space<vmem>>, vector<2x288xbf16>,
    %181 = vector.extract_strided_slice %170 {offsets = [0, 20], sizes = [2, 288], strides = [1, 1]} : vector<2x342xbf16> to vector<2x288xbf16>
    %c266 = arith.constant 266 : index
    %c0_117 = arith.constant 0 : index
    %182 = vector.load %arg10[%c266, %c0_117] : memref<320x288xbf16, #tpu.memory_space<vmem>>, vector<2x288xbf16>
    tpu.vector_store %arg10[%c266, %c0_117], %181 {strides = array<i32>} : memref<320x288xbf16, #tpu.memory_space<vmem>>, vector<2x288xbf16>,
    %183 = vector.extract_strided_slice %170 {offsets = [0, 36], sizes = [2, 288], strides = [1, 1]} : vector<2x342xbf16> to vector<2x288xbf16>
    %c268 = arith.constant 268 : index
    %c0_118 = arith.constant 0 : index
    %184 = vector.load %arg10[%c268, %c0_118] : memref<320x288xbf16, #tpu.memory_space<vmem>>, vector<2x288xbf16>
    tpu.vector_store %arg10[%c268, %c0_118], %183 {strides = array<i32>} : memref<320x288xbf16, #tpu.memory_space<vmem>>, vector<2x288xbf16>,
    %185 = vector.extract_strided_slice %170 {offsets = [0, 37], sizes = [2, 288], strides = [1, 1]} : vector<2x342xbf16> to vector<2x288xbf16>
    %c270 = arith.constant 270 : index
    %c0_119 = arith.constant 0 : index
    %186 = vector.load %arg10[%c270, %c0_119] : memref<320x288xbf16, #tpu.memory_space<vmem>>, vector<2x288xbf16>
    tpu.vector_store %arg10[%c270, %c0_119], %185 {strides = array<i32>} : memref<320x288xbf16, #tpu.memory_space<vmem>>, vector<2x288xbf16>,
    %187 = vector.extract_strided_slice %170 {offsets = [0, 38], sizes = [2, 288], strides = [1, 1]} : vector<2x342xbf16> to vector<2x288xbf16>
    %c272 = arith.constant 272 : index
    %c0_120 = arith.constant 0 : index
    %188 = vector.load %arg10[%c272, %c0_120] : memref<320x288xbf16, #tpu.memory_space<vmem>>, vector<2x288xbf16>
    tpu.vector_store %arg10[%c272, %c0_120], %187 {strides = array<i32>} : memref<320x288xbf16, #tpu.memory_space<vmem>>, vector<2x288xbf16>,
    %c274 = arith.constant 274 : index
    %c0_121 = arith.constant 0 : index
    %189 = vector.load %arg10[%c274, %c0_121] : memref<320x288xbf16, #tpu.memory_space<vmem>>, vector<14x288xbf16>
    tpu.vector_store %arg10[%c274, %c0_121], %0 {strides = array<i32>} : memref<320x288xbf16, #tpu.memory_space<vmem>>, vector<14x288xbf16>,
    %c0_122 = arith.constant 0 : index
    %c1_123 = arith.constant 1 : index
    %c0_124 = arith.constant 0 : index
    %c0_125 = arith.constant 0 : index
    %190 = vector.load %arg3[%c0_122, %c1_123, %c0_124, %c0_125] : memref<1x2x2x342xbf16, #tpu.memory_space<vmem>>, vector<1x1x2x342xbf16>
    %191 = vector.shape_cast %190 : vector<1x1x2x342xbf16> to vector<2x342xbf16>
    %192 = vector.extract_strided_slice %191 {offsets = [0, 0], sizes = [2, 288], strides = [1, 1]} : vector<2x342xbf16> to vector<2x288xbf16>
    %c288 = arith.constant 288 : index
    %c0_126 = arith.constant 0 : index
    %193 = vector.load %arg10[%c288, %c0_126] : memref<320x288xbf16, #tpu.memory_space<vmem>>, vector<2x288xbf16>
    tpu.vector_store %arg10[%c288, %c0_126], %192 {strides = array<i32>} : memref<320x288xbf16, #tpu.memory_space<vmem>>, vector<2x288xbf16>,
    %194 = vector.extract_strided_slice %191 {offsets = [0, 1], sizes = [2, 288], strides = [1, 1]} : vector<2x342xbf16> to vector<2x288xbf16>
    %c290 = arith.constant 290 : index
    %c0_127 = arith.constant 0 : index
    %195 = vector.load %arg10[%c290, %c0_127] : memref<320x288xbf16, #tpu.memory_space<vmem>>, vector<2x288xbf16>
    tpu.vector_store %arg10[%c290, %c0_127], %194 {strides = array<i32>} : memref<320x288xbf16, #tpu.memory_space<vmem>>, vector<2x288xbf16>,
    %196 = vector.extract_strided_slice %191 {offsets = [0, 2], sizes = [2, 288], strides = [1, 1]} : vector<2x342xbf16> to vector<2x288xbf16>
    %c292 = arith.constant 292 : index
    %c0_128 = arith.constant 0 : index
    %197 = vector.load %arg10[%c292, %c0_128] : memref<320x288xbf16, #tpu.memory_space<vmem>>, vector<2x288xbf16>
    tpu.vector_store %arg10[%c292, %c0_128], %196 {strides = array<i32>} : memref<320x288xbf16, #tpu.memory_space<vmem>>, vector<2x288xbf16>,
    %198 = vector.extract_strided_slice %191 {offsets = [0, 18], sizes = [2, 288], strides = [1, 1]} : vector<2x342xbf16> to vector<2x288xbf16>
    %c294 = arith.constant 294 : index
    %c0_129 = arith.constant 0 : index
    %199 = vector.load %arg10[%c294, %c0_129] : memref<320x288xbf16, #tpu.memory_space<vmem>>, vector<2x288xbf16>
    tpu.vector_store %arg10[%c294, %c0_129], %198 {strides = array<i32>} : memref<320x288xbf16, #tpu.memory_space<vmem>>, vector<2x288xbf16>,
    %200 = vector.extract_strided_slice %191 {offsets = [0, 19], sizes = [2, 288], strides = [1, 1]} : vector<2x342xbf16> to vector<2x288xbf16>
    %c296 = arith.constant 296 : index
    %c0_130 = arith.constant 0 : index
    %201 = vector.load %arg10[%c296, %c0_130] : memref<320x288xbf16, #tpu.memory_space<vmem>>, vector<2x288xbf16>
    tpu.vector_store %arg10[%c296, %c0_130], %200 {strides = array<i32>} : memref<320x288xbf16, #tpu.memory_space<vmem>>, vector<2x288xbf16>,
    %202 = vector.extract_strided_slice %191 {offsets = [0, 20], sizes = [2, 288], strides = [1, 1]} : vector<2x342xbf16> to vector<2x288xbf16>
    %c298 = arith.constant 298 : index
    %c0_131 = arith.constant 0 : index
    %203 = vector.load %arg10[%c298, %c0_131] : memref<320x288xbf16, #tpu.memory_space<vmem>>, vector<2x288xbf16>
    tpu.vector_store %arg10[%c298, %c0_131], %202 {strides = array<i32>} : memref<320x288xbf16, #tpu.memory_space<vmem>>, vector<2x288xbf16>,
    %204 = vector.extract_strided_slice %191 {offsets = [0, 36], sizes = [2, 288], strides = [1, 1]} : vector<2x342xbf16> to vector<2x288xbf16>
    %c300 = arith.constant 300 : index
    %c0_132 = arith.constant 0 : index
    %205 = vector.load %arg10[%c300, %c0_132] : memref<320x288xbf16, #tpu.memory_space<vmem>>, vector<2x288xbf16>
    tpu.vector_store %arg10[%c300, %c0_132], %204 {strides = array<i32>} : memref<320x288xbf16, #tpu.memory_space<vmem>>, vector<2x288xbf16>,
    %206 = vector.extract_strided_slice %191 {offsets = [0, 37], sizes = [2, 288], strides = [1, 1]} : vector<2x342xbf16> to vector<2x288xbf16>
    %c302 = arith.constant 302 : index
    %c0_133 = arith.constant 0 : index
    %207 = vector.load %arg10[%c302, %c0_133] : memref<320x288xbf16, #tpu.memory_space<vmem>>, vector<2x288xbf16>
    tpu.vector_store %arg10[%c302, %c0_133], %206 {strides = array<i32>} : memref<320x288xbf16, #tpu.memory_space<vmem>>, vector<2x288xbf16>,
    %208 = vector.extract_strided_slice %191 {offsets = [0, 38], sizes = [2, 288], strides = [1, 1]} : vector<2x342xbf16> to vector<2x288xbf16>
    %c304 = arith.constant 304 : index
    %c0_134 = arith.constant 0 : index
    %209 = vector.load %arg10[%c304, %c0_134] : memref<320x288xbf16, #tpu.memory_space<vmem>>, vector<2x288xbf16>
    tpu.vector_store %arg10[%c304, %c0_134], %208 {strides = array<i32>} : memref<320x288xbf16, #tpu.memory_space<vmem>>, vector<2x288xbf16>,
    %c306 = arith.constant 306 : index
    %c0_135 = arith.constant 0 : index
    %210 = vector.load %arg10[%c306, %c0_135] : memref<320x288xbf16, #tpu.memory_space<vmem>>, vector<14x288xbf16>
    tpu.vector_store %arg10[%c306, %c0_135], %0 {strides = array<i32>} : memref<320x288xbf16, #tpu.memory_space<vmem>>, vector<14x288xbf16>,
    %c0_136 = arith.constant 0 : index
    %c0_137 = arith.constant 0 : index
    %211 = vector.load %arg4[%c0_136, %c0_137] : memref<32x96xbf16, #tpu.memory_space<vmem>>, vector<32x96xbf16>
    %c0_138 = arith.constant 0 : index
    %c0_139 = arith.constant 0 : index
    %212 = vector.load %arg5[%c0_138, %c0_139] : memref<32x1xf32, #tpu.memory_space<vmem>>, vector<32x1xf32>
    %c0_140 = arith.constant 0 : index
    %c0_141 = arith.constant 0 : index
    %213 = vector.load %arg6[%c0_140, %c0_141] : memref<6x32xbf16, #tpu.memory_space<vmem>>, vector<6x32xbf16>
    %c0_142 = arith.constant 0 : index
    %c0_143 = arith.constant 0 : index
    %214 = vector.load %arg7[%c0_142, %c0_143] : memref<3x1xf32, #tpu.memory_space<vmem>>, vector<3x1xf32>
    %c0_144 = arith.constant 0 : index
    %c0_145 = arith.constant 0 : index
    %215 = vector.load %arg8[%c0_144, %c0_145] : memref<2x288xf32, #tpu.memory_space<vmem>>, vector<1x288xf32>
    %cst_146 = arith.constant 5.000000e-01 : f32
    %216 = vector.broadcast %cst_146 : f32 to vector<1x288xf32>
    %217 = arith.cmpf ogt, %215, %216 : vector<1x288xf32>
    %c1_147 = arith.constant 1 : index
    %c0_148 = arith.constant 0 : index
    %218 = vector.load %arg8[%c1_147, %c0_148] : memref<2x288xf32, #tpu.memory_space<vmem>>, vector<1x288xf32>
    %cst_149 = arith.constant 5.000000e-01 : f32
    %219 = vector.broadcast %cst_149 : f32 to vector<1x288xf32>
    %220 = arith.cmpf ogt, %218, %219 : vector<1x288xf32>
    %c0_150 = arith.constant 0 : index
    %c0_151 = arith.constant 0 : index
    %221 = vector.load %arg10[%c0_150, %c0_151] : memref<320x288xbf16, #tpu.memory_space<vmem>>, vector<96x288xbf16>
    %cst_152 = arith.constant dense<0.000000e+00> : vector<32x288xf32>
    %222 = tpu.matmul %211, %221, %cst_152 {dimension_numbers = #tpu.dot_dimension_numbers<[1], [0], [0], [1], [0, 0, 1, 1], [], []>} : vector<32x96xbf16>, vector<96x288xbf16>, vector<32x288xf32> -> vector<32x288xf32>
    %223 = vector.broadcast %212 : vector<32x1xf32> to vector<32x288xf32>
    %224 = arith.addf %222, %223 : vector<32x288xf32>
    %cst_153 = arith.constant 0.000000e+00 : f32
    %225 = vector.broadcast %cst_153 : f32 to vector<32x288xf32>
    %226 = arith.maximumf %224, %225 : vector<32x288xf32>
    %227 = arith.truncf %226 : vector<32x288xf32> to vector<32x288xbf16>
    %cst_154 = arith.constant dense<0.000000e+00> : vector<6x288xf32>
    %228 = tpu.matmul %213, %227, %cst_154 {dimension_numbers = #tpu.dot_dimension_numbers<[1], [0], [0], [1], [0, 0, 1, 1], [], []>} : vector<6x32xbf16>, vector<32x288xbf16>, vector<6x288xf32> -> vector<6x288xf32>
    %c32_155 = arith.constant 32 : index
    %c0_156 = arith.constant 0 : index
    %229 = vector.load %arg10[%c32_155, %c0_156] : memref<320x288xbf16, #tpu.memory_space<vmem>>, vector<96x288xbf16>
    %cst_157 = arith.constant dense<0.000000e+00> : vector<32x288xf32>
    %230 = tpu.matmul %211, %229, %cst_157 {dimension_numbers = #tpu.dot_dimension_numbers<[1], [0], [0], [1], [0, 0, 1, 1], [], []>} : vector<32x96xbf16>, vector<96x288xbf16>, vector<32x288xf32> -> vector<32x288xf32>
    %231 = vector.broadcast %212 : vector<32x1xf32> to vector<32x288xf32>
    %232 = arith.addf %230, %231 : vector<32x288xf32>
    %cst_158 = arith.constant 0.000000e+00 : f32
    %233 = vector.broadcast %cst_158 : f32 to vector<32x288xf32>
    %234 = arith.maximumf %232, %233 : vector<32x288xf32>
    %235 = arith.truncf %234 : vector<32x288xf32> to vector<32x288xbf16>
    %cst_159 = arith.constant dense<0.000000e+00> : vector<6x288xf32>
    %236 = tpu.matmul %213, %235, %cst_159 {dimension_numbers = #tpu.dot_dimension_numbers<[1], [0], [0], [1], [0, 0, 1, 1], [], []>} : vector<6x32xbf16>, vector<32x288xbf16>, vector<6x288xf32> -> vector<6x288xf32>
    %237 = vector.extract_strided_slice %228 {offsets = [3, 0], sizes = [3, 288], strides = [1, 1]} : vector<6x288xf32> to vector<3x288xf32>
    %238 = vector.extract_strided_slice %236 {offsets = [3, 0], sizes = [3, 288], strides = [1, 1]} : vector<6x288xf32> to vector<3x288xf32>
    %239 = arith.addf %237, %238 : vector<3x288xf32>
    %cst_160 = arith.constant 5.000000e-01 : f32
    %240 = vector.broadcast %cst_160 : f32 to vector<3x288xf32>
    %241 = arith.mulf %240, %239 : vector<3x288xf32>
    %c1_i32 = arith.constant 1 : i32
    %242 = tpu.dynamic_rotate %241 by %c1_i32 dim 1 : vector<3x288xf32>, i32 -> vector<3x288xf32>
    %c287_i32 = arith.constant 287 : i32
    %243 = tpu.dynamic_rotate %241 by %c287_i32 dim 1 : vector<3x288xf32>, i32 -> vector<3x288xf32>
    %244 = vector.shape_cast %217 : vector<1x288xi1> to vector<1x288xi1>
    %245 = vector.broadcast %244 : vector<1x288xi1> to vector<3x288xi1>
    %246 = arith.select %245, %242, %243 : vector<3x288xi1>, vector<3x288xf32>
    %247 = arith.addf %241, %246 : vector<3x288xf32>
    %cst_161 = arith.constant 5.000000e-01 : f32
    %248 = vector.broadcast %cst_161 : f32 to vector<3x288xf32>
    %249 = arith.mulf %248, %247 : vector<3x288xf32>
    %c18_i32 = arith.constant 18 : i32
    %250 = tpu.dynamic_rotate %249 by %c18_i32 dim 1 : vector<3x288xf32>, i32 -> vector<3x288xf32>
    %c270_i32 = arith.constant 270 : i32
    %251 = tpu.dynamic_rotate %249 by %c270_i32 dim 1 : vector<3x288xf32>, i32 -> vector<3x288xf32>
    %252 = vector.shape_cast %220 : vector<1x288xi1> to vector<1x288xi1>
    %253 = vector.broadcast %252 : vector<1x288xi1> to vector<3x288xi1>
    %254 = arith.select %253, %250, %251 : vector<3x288xi1>, vector<3x288xf32>
    %255 = arith.addf %249, %254 : vector<3x288xf32>
    %cst_162 = arith.constant 5.000000e-01 : f32
    %256 = vector.broadcast %cst_162 : f32 to vector<3x288xf32>
    %257 = arith.mulf %256, %255 : vector<3x288xf32>
    %258 = vector.broadcast %214 : vector<3x1xf32> to vector<3x288xf32>
    %259 = arith.addf %257, %258 : vector<3x288xf32>
    %260 = vector.extract_strided_slice %228 {offsets = [0, 0], sizes = [3, 288], strides = [1, 1]} : vector<6x288xf32> to vector<3x288xf32>
    %261 = arith.addf %260, %259 : vector<3x288xf32>
    %c0_163 = arith.constant 0 : index
    %c0_164 = arith.constant 0 : index
    %c0_165 = arith.constant 0 : index
    %c0_166 = arith.constant 0 : index
    %262 = vector.load %arg9[%c0_163, %c0_164, %c0_165, %c0_166] : memref<1x8x3x288xf32, #tpu.memory_space<vmem>>, vector<1x1x3x288xf32>
    %263 = vector.shape_cast %262 : vector<1x1x3x288xf32> to vector<3x288xf32>
    %264 = vector.shape_cast %261 : vector<3x288xf32> to vector<1x1x3x288xf32>
    tpu.vector_store %arg9[%c0_163, %c0_164, %c0_165, %c0_166], %264 {strides = array<i32>} : memref<1x8x3x288xf32, #tpu.memory_space<vmem>>, vector<1x1x3x288xf32>,
    %265 = vector.extract_strided_slice %236 {offsets = [0, 0], sizes = [3, 288], strides = [1, 1]} : vector<6x288xf32> to vector<3x288xf32>
    %266 = arith.addf %265, %259 : vector<3x288xf32>
    %c0_167 = arith.constant 0 : index
    %c1_168 = arith.constant 1 : index
    %c0_169 = arith.constant 0 : index
    %c0_170 = arith.constant 0 : index
    %267 = vector.load %arg9[%c0_167, %c1_168, %c0_169, %c0_170] : memref<1x8x3x288xf32, #tpu.memory_space<vmem>>, vector<1x1x3x288xf32>
    %268 = vector.shape_cast %267 : vector<1x1x3x288xf32> to vector<3x288xf32>
    %269 = vector.shape_cast %266 : vector<3x288xf32> to vector<1x1x3x288xf32>
    tpu.vector_store %arg9[%c0_167, %c1_168, %c0_169, %c0_170], %269 {strides = array<i32>} : memref<1x8x3x288xf32, #tpu.memory_space<vmem>>, vector<1x1x3x288xf32>,
    %c64_171 = arith.constant 64 : index
    %c0_172 = arith.constant 0 : index
    %270 = vector.load %arg10[%c64_171, %c0_172] : memref<320x288xbf16, #tpu.memory_space<vmem>>, vector<96x288xbf16>
    %cst_173 = arith.constant dense<0.000000e+00> : vector<32x288xf32>
    %271 = tpu.matmul %211, %270, %cst_173 {dimension_numbers = #tpu.dot_dimension_numbers<[1], [0], [0], [1], [0, 0, 1, 1], [], []>} : vector<32x96xbf16>, vector<96x288xbf16>, vector<32x288xf32> -> vector<32x288xf32>
    %272 = vector.broadcast %212 : vector<32x1xf32> to vector<32x288xf32>
    %273 = arith.addf %271, %272 : vector<32x288xf32>
    %cst_174 = arith.constant 0.000000e+00 : f32
    %274 = vector.broadcast %cst_174 : f32 to vector<32x288xf32>
    %275 = arith.maximumf %273, %274 : vector<32x288xf32>
    %276 = arith.truncf %275 : vector<32x288xf32> to vector<32x288xbf16>
    %cst_175 = arith.constant dense<0.000000e+00> : vector<6x288xf32>
    %277 = tpu.matmul %213, %276, %cst_175 {dimension_numbers = #tpu.dot_dimension_numbers<[1], [0], [0], [1], [0, 0, 1, 1], [], []>} : vector<6x32xbf16>, vector<32x288xbf16>, vector<6x288xf32> -> vector<6x288xf32>
    %c96_176 = arith.constant 96 : index
    %c0_177 = arith.constant 0 : index
    %278 = vector.load %arg10[%c96_176, %c0_177] : memref<320x288xbf16, #tpu.memory_space<vmem>>, vector<96x288xbf16>
    %cst_178 = arith.constant dense<0.000000e+00> : vector<32x288xf32>
    %279 = tpu.matmul %211, %278, %cst_178 {dimension_numbers = #tpu.dot_dimension_numbers<[1], [0], [0], [1], [0, 0, 1, 1], [], []>} : vector<32x96xbf16>, vector<96x288xbf16>, vector<32x288xf32> -> vector<32x288xf32>
    %280 = vector.broadcast %212 : vector<32x1xf32> to vector<32x288xf32>
    %281 = arith.addf %279, %280 : vector<32x288xf32>
    %cst_179 = arith.constant 0.000000e+00 : f32
    %282 = vector.broadcast %cst_179 : f32 to vector<32x288xf32>
    %283 = arith.maximumf %281, %282 : vector<32x288xf32>
    %284 = arith.truncf %283 : vector<32x288xf32> to vector<32x288xbf16>
    %cst_180 = arith.constant dense<0.000000e+00> : vector<6x288xf32>
    %285 = tpu.matmul %213, %284, %cst_180 {dimension_numbers = #tpu.dot_dimension_numbers<[1], [0], [0], [1], [0, 0, 1, 1], [], []>} : vector<6x32xbf16>, vector<32x288xbf16>, vector<6x288xf32> -> vector<6x288xf32>
    %286 = vector.extract_strided_slice %277 {offsets = [3, 0], sizes = [3, 288], strides = [1, 1]} : vector<6x288xf32> to vector<3x288xf32>
    %287 = vector.extract_strided_slice %285 {offsets = [3, 0], sizes = [3, 288], strides = [1, 1]} : vector<6x288xf32> to vector<3x288xf32>
    %288 = arith.addf %286, %287 : vector<3x288xf32>
    %cst_181 = arith.constant 5.000000e-01 : f32
    %289 = vector.broadcast %cst_181 : f32 to vector<3x288xf32>
    %290 = arith.mulf %289, %288 : vector<3x288xf32>
    %c1_i32_182 = arith.constant 1 : i32
    %291 = tpu.dynamic_rotate %290 by %c1_i32_182 dim 1 : vector<3x288xf32>, i32 -> vector<3x288xf32>
    %c287_i32_183 = arith.constant 287 : i32
    %292 = tpu.dynamic_rotate %290 by %c287_i32_183 dim 1 : vector<3x288xf32>, i32 -> vector<3x288xf32>
    %293 = vector.shape_cast %217 : vector<1x288xi1> to vector<1x288xi1>
    %294 = vector.broadcast %293 : vector<1x288xi1> to vector<3x288xi1>
    %295 = arith.select %294, %291, %292 : vector<3x288xi1>, vector<3x288xf32>
    %296 = arith.addf %290, %295 : vector<3x288xf32>
    %cst_184 = arith.constant 5.000000e-01 : f32
    %297 = vector.broadcast %cst_184 : f32 to vector<3x288xf32>
    %298 = arith.mulf %297, %296 : vector<3x288xf32>
    %c18_i32_185 = arith.constant 18 : i32
    %299 = tpu.dynamic_rotate %298 by %c18_i32_185 dim 1 : vector<3x288xf32>, i32 -> vector<3x288xf32>
    %c270_i32_186 = arith.constant 270 : i32
    %300 = tpu.dynamic_rotate %298 by %c270_i32_186 dim 1 : vector<3x288xf32>, i32 -> vector<3x288xf32>
    %301 = vector.shape_cast %220 : vector<1x288xi1> to vector<1x288xi1>
    %302 = vector.broadcast %301 : vector<1x288xi1> to vector<3x288xi1>
    %303 = arith.select %302, %299, %300 : vector<3x288xi1>, vector<3x288xf32>
    %304 = arith.addf %298, %303 : vector<3x288xf32>
    %cst_187 = arith.constant 5.000000e-01 : f32
    %305 = vector.broadcast %cst_187 : f32 to vector<3x288xf32>
    %306 = arith.mulf %305, %304 : vector<3x288xf32>
    %307 = vector.broadcast %214 : vector<3x1xf32> to vector<3x288xf32>
    %308 = arith.addf %306, %307 : vector<3x288xf32>
    %309 = vector.extract_strided_slice %277 {offsets = [0, 0], sizes = [3, 288], strides = [1, 1]} : vector<6x288xf32> to vector<3x288xf32>
    %310 = arith.addf %309, %308 : vector<3x288xf32>
    %c0_188 = arith.constant 0 : index
    %c2_189 = arith.constant 2 : index
    %c0_190 = arith.constant 0 : index
    %c0_191 = arith.constant 0 : index
    %311 = vector.load %arg9[%c0_188, %c2_189, %c0_190, %c0_191] : memref<1x8x3x288xf32, #tpu.memory_space<vmem>>, vector<1x1x3x288xf32>
    %312 = vector.shape_cast %311 : vector<1x1x3x288xf32> to vector<3x288xf32>
    %313 = vector.shape_cast %310 : vector<3x288xf32> to vector<1x1x3x288xf32>
    tpu.vector_store %arg9[%c0_188, %c2_189, %c0_190, %c0_191], %313 {strides = array<i32>} : memref<1x8x3x288xf32, #tpu.memory_space<vmem>>, vector<1x1x3x288xf32>,
    %314 = vector.extract_strided_slice %285 {offsets = [0, 0], sizes = [3, 288], strides = [1, 1]} : vector<6x288xf32> to vector<3x288xf32>
    %315 = arith.addf %314, %308 : vector<3x288xf32>
    %c0_192 = arith.constant 0 : index
    %c3_193 = arith.constant 3 : index
    %c0_194 = arith.constant 0 : index
    %c0_195 = arith.constant 0 : index
    %316 = vector.load %arg9[%c0_192, %c3_193, %c0_194, %c0_195] : memref<1x8x3x288xf32, #tpu.memory_space<vmem>>, vector<1x1x3x288xf32>
    %317 = vector.shape_cast %316 : vector<1x1x3x288xf32> to vector<3x288xf32>
    %318 = vector.shape_cast %315 : vector<3x288xf32> to vector<1x1x3x288xf32>
    tpu.vector_store %arg9[%c0_192, %c3_193, %c0_194, %c0_195], %318 {strides = array<i32>} : memref<1x8x3x288xf32, #tpu.memory_space<vmem>>, vector<1x1x3x288xf32>,
    %c128_196 = arith.constant 128 : index
    %c0_197 = arith.constant 0 : index
    %319 = vector.load %arg10[%c128_196, %c0_197] : memref<320x288xbf16, #tpu.memory_space<vmem>>, vector<96x288xbf16>
    %cst_198 = arith.constant dense<0.000000e+00> : vector<32x288xf32>
    %320 = tpu.matmul %211, %319, %cst_198 {dimension_numbers = #tpu.dot_dimension_numbers<[1], [0], [0], [1], [0, 0, 1, 1], [], []>} : vector<32x96xbf16>, vector<96x288xbf16>, vector<32x288xf32> -> vector<32x288xf32>
    %321 = vector.broadcast %212 : vector<32x1xf32> to vector<32x288xf32>
    %322 = arith.addf %320, %321 : vector<32x288xf32>
    %cst_199 = arith.constant 0.000000e+00 : f32
    %323 = vector.broadcast %cst_199 : f32 to vector<32x288xf32>
    %324 = arith.maximumf %322, %323 : vector<32x288xf32>
    %325 = arith.truncf %324 : vector<32x288xf32> to vector<32x288xbf16>
    %cst_200 = arith.constant dense<0.000000e+00> : vector<6x288xf32>
    %326 = tpu.matmul %213, %325, %cst_200 {dimension_numbers = #tpu.dot_dimension_numbers<[1], [0], [0], [1], [0, 0, 1, 1], [], []>} : vector<6x32xbf16>, vector<32x288xbf16>, vector<6x288xf32> -> vector<6x288xf32>
    %c160_201 = arith.constant 160 : index
    %c0_202 = arith.constant 0 : index
    %327 = vector.load %arg10[%c160_201, %c0_202] : memref<320x288xbf16, #tpu.memory_space<vmem>>, vector<96x288xbf16>
    %cst_203 = arith.constant dense<0.000000e+00> : vector<32x288xf32>
    %328 = tpu.matmul %211, %327, %cst_203 {dimension_numbers = #tpu.dot_dimension_numbers<[1], [0], [0], [1], [0, 0, 1, 1], [], []>} : vector<32x96xbf16>, vector<96x288xbf16>, vector<32x288xf32> -> vector<32x288xf32>
    %329 = vector.broadcast %212 : vector<32x1xf32> to vector<32x288xf32>
    %330 = arith.addf %328, %329 : vector<32x288xf32>
    %cst_204 = arith.constant 0.000000e+00 : f32
    %331 = vector.broadcast %cst_204 : f32 to vector<32x288xf32>
    %332 = arith.maximumf %330, %331 : vector<32x288xf32>
    %333 = arith.truncf %332 : vector<32x288xf32> to vector<32x288xbf16>
    %cst_205 = arith.constant dense<0.000000e+00> : vector<6x288xf32>
    %334 = tpu.matmul %213, %333, %cst_205 {dimension_numbers = #tpu.dot_dimension_numbers<[1], [0], [0], [1], [0, 0, 1, 1], [], []>} : vector<6x32xbf16>, vector<32x288xbf16>, vector<6x288xf32> -> vector<6x288xf32>
    %335 = vector.extract_strided_slice %326 {offsets = [3, 0], sizes = [3, 288], strides = [1, 1]} : vector<6x288xf32> to vector<3x288xf32>
    %336 = vector.extract_strided_slice %334 {offsets = [3, 0], sizes = [3, 288], strides = [1, 1]} : vector<6x288xf32> to vector<3x288xf32>
    %337 = arith.addf %335, %336 : vector<3x288xf32>
    %cst_206 = arith.constant 5.000000e-01 : f32
    %338 = vector.broadcast %cst_206 : f32 to vector<3x288xf32>
    %339 = arith.mulf %338, %337 : vector<3x288xf32>
    %c1_i32_207 = arith.constant 1 : i32
    %340 = tpu.dynamic_rotate %339 by %c1_i32_207 dim 1 : vector<3x288xf32>, i32 -> vector<3x288xf32>
    %c287_i32_208 = arith.constant 287 : i32
    %341 = tpu.dynamic_rotate %339 by %c287_i32_208 dim 1 : vector<3x288xf32>, i32 -> vector<3x288xf32>
    %342 = vector.shape_cast %217 : vector<1x288xi1> to vector<1x288xi1>
    %343 = vector.broadcast %342 : vector<1x288xi1> to vector<3x288xi1>
    %344 = arith.select %343, %340, %341 : vector<3x288xi1>, vector<3x288xf32>
    %345 = arith.addf %339, %344 : vector<3x288xf32>
    %cst_209 = arith.constant 5.000000e-01 : f32
    %346 = vector.broadcast %cst_209 : f32 to vector<3x288xf32>
    %347 = arith.mulf %346, %345 : vector<3x288xf32>
    %c18_i32_210 = arith.constant 18 : i32
    %348 = tpu.dynamic_rotate %347 by %c18_i32_210 dim 1 : vector<3x288xf32>, i32 -> vector<3x288xf32>
    %c270_i32_211 = arith.constant 270 : i32
    %349 = tpu.dynamic_rotate %347 by %c270_i32_211 dim 1 : vector<3x288xf32>, i32 -> vector<3x288xf32>
    %350 = vector.shape_cast %220 : vector<1x288xi1> to vector<1x288xi1>
    %351 = vector.broadcast %350 : vector<1x288xi1> to vector<3x288xi1>
    %352 = arith.select %351, %348, %349 : vector<3x288xi1>, vector<3x288xf32>
    %353 = arith.addf %347, %352 : vector<3x288xf32>
    %cst_212 = arith.constant 5.000000e-01 : f32
    %354 = vector.broadcast %cst_212 : f32 to vector<3x288xf32>
    %355 = arith.mulf %354, %353 : vector<3x288xf32>
    %356 = vector.broadcast %214 : vector<3x1xf32> to vector<3x288xf32>
    %357 = arith.addf %355, %356 : vector<3x288xf32>
    %358 = vector.extract_strided_slice %326 {offsets = [0, 0], sizes = [3, 288], strides = [1, 1]} : vector<6x288xf32> to vector<3x288xf32>
    %359 = arith.addf %358, %357 : vector<3x288xf32>
    %c0_213 = arith.constant 0 : index
    %c4_214 = arith.constant 4 : index
    %c0_215 = arith.constant 0 : index
    %c0_216 = arith.constant 0 : index
    %360 = vector.load %arg9[%c0_213, %c4_214, %c0_215, %c0_216] : memref<1x8x3x288xf32, #tpu.memory_space<vmem>>, vector<1x1x3x288xf32>
    %361 = vector.shape_cast %360 : vector<1x1x3x288xf32> to vector<3x288xf32>
    %362 = vector.shape_cast %359 : vector<3x288xf32> to vector<1x1x3x288xf32>
    tpu.vector_store %arg9[%c0_213, %c4_214, %c0_215, %c0_216], %362 {strides = array<i32>} : memref<1x8x3x288xf32, #tpu.memory_space<vmem>>, vector<1x1x3x288xf32>,
    %363 = vector.extract_strided_slice %334 {offsets = [0, 0], sizes = [3, 288], strides = [1, 1]} : vector<6x288xf32> to vector<3x288xf32>
    %364 = arith.addf %363, %357 : vector<3x288xf32>
    %c0_217 = arith.constant 0 : index
    %c5_218 = arith.constant 5 : index
    %c0_219 = arith.constant 0 : index
    %c0_220 = arith.constant 0 : index
    %365 = vector.load %arg9[%c0_217, %c5_218, %c0_219, %c0_220] : memref<1x8x3x288xf32, #tpu.memory_space<vmem>>, vector<1x1x3x288xf32>
    %366 = vector.shape_cast %365 : vector<1x1x3x288xf32> to vector<3x288xf32>
    %367 = vector.shape_cast %364 : vector<3x288xf32> to vector<1x1x3x288xf32>
    tpu.vector_store %arg9[%c0_217, %c5_218, %c0_219, %c0_220], %367 {strides = array<i32>} : memref<1x8x3x288xf32, #tpu.memory_space<vmem>>, vector<1x1x3x288xf32>,
    %c192_221 = arith.constant 192 : index
    %c0_222 = arith.constant 0 : index
    %368 = vector.load %arg10[%c192_221, %c0_222] : memref<320x288xbf16, #tpu.memory_space<vmem>>, vector<96x288xbf16>
    %cst_223 = arith.constant dense<0.000000e+00> : vector<32x288xf32>
    %369 = tpu.matmul %211, %368, %cst_223 {dimension_numbers = #tpu.dot_dimension_numbers<[1], [0], [0], [1], [0, 0, 1, 1], [], []>} : vector<32x96xbf16>, vector<96x288xbf16>, vector<32x288xf32> -> vector<32x288xf32>
    %370 = vector.broadcast %212 : vector<32x1xf32> to vector<32x288xf32>
    %371 = arith.addf %369, %370 : vector<32x288xf32>
    %cst_224 = arith.constant 0.000000e+00 : f32
    %372 = vector.broadcast %cst_224 : f32 to vector<32x288xf32>
    %373 = arith.maximumf %371, %372 : vector<32x288xf32>
    %374 = arith.truncf %373 : vector<32x288xf32> to vector<32x288xbf16>
    %cst_225 = arith.constant dense<0.000000e+00> : vector<6x288xf32>
    %375 = tpu.matmul %213, %374, %cst_225 {dimension_numbers = #tpu.dot_dimension_numbers<[1], [0], [0], [1], [0, 0, 1, 1], [], []>} : vector<6x32xbf16>, vector<32x288xbf16>, vector<6x288xf32> -> vector<6x288xf32>
    %c224_226 = arith.constant 224 : index
    %c0_227 = arith.constant 0 : index
    %376 = vector.load %arg10[%c224_226, %c0_227] : memref<320x288xbf16, #tpu.memory_space<vmem>>, vector<96x288xbf16>
    %cst_228 = arith.constant dense<0.000000e+00> : vector<32x288xf32>
    %377 = tpu.matmul %211, %376, %cst_228 {dimension_numbers = #tpu.dot_dimension_numbers<[1], [0], [0], [1], [0, 0, 1, 1], [], []>} : vector<32x96xbf16>, vector<96x288xbf16>, vector<32x288xf32> -> vector<32x288xf32>
    %378 = vector.broadcast %212 : vector<32x1xf32> to vector<32x288xf32>
    %379 = arith.addf %377, %378 : vector<32x288xf32>
    %cst_229 = arith.constant 0.000000e+00 : f32
    %380 = vector.broadcast %cst_229 : f32 to vector<32x288xf32>
    %381 = arith.maximumf %379, %380 : vector<32x288xf32>
    %382 = arith.truncf %381 : vector<32x288xf32> to vector<32x288xbf16>
    %cst_230 = arith.constant dense<0.000000e+00> : vector<6x288xf32>
    %383 = tpu.matmul %213, %382, %cst_230 {dimension_numbers = #tpu.dot_dimension_numbers<[1], [0], [0], [1], [0, 0, 1, 1], [], []>} : vector<6x32xbf16>, vector<32x288xbf16>, vector<6x288xf32> -> vector<6x288xf32>
    %384 = vector.extract_strided_slice %375 {offsets = [3, 0], sizes = [3, 288], strides = [1, 1]} : vector<6x288xf32> to vector<3x288xf32>
    %385 = vector.extract_strided_slice %383 {offsets = [3, 0], sizes = [3, 288], strides = [1, 1]} : vector<6x288xf32> to vector<3x288xf32>
    %386 = arith.addf %384, %385 : vector<3x288xf32>
    %cst_231 = arith.constant 5.000000e-01 : f32
    %387 = vector.broadcast %cst_231 : f32 to vector<3x288xf32>
    %388 = arith.mulf %387, %386 : vector<3x288xf32>
    %c1_i32_232 = arith.constant 1 : i32
    %389 = tpu.dynamic_rotate %388 by %c1_i32_232 dim 1 : vector<3x288xf32>, i32 -> vector<3x288xf32>
    %c287_i32_233 = arith.constant 287 : i32
    %390 = tpu.dynamic_rotate %388 by %c287_i32_233 dim 1 : vector<3x288xf32>, i32 -> vector<3x288xf32>
    %391 = vector.shape_cast %217 : vector<1x288xi1> to vector<1x288xi1>
    %392 = vector.broadcast %391 : vector<1x288xi1> to vector<3x288xi1>
    %393 = arith.select %392, %389, %390 : vector<3x288xi1>, vector<3x288xf32>
    %394 = arith.addf %388, %393 : vector<3x288xf32>
    %cst_234 = arith.constant 5.000000e-01 : f32
    %395 = vector.broadcast %cst_234 : f32 to vector<3x288xf32>
    %396 = arith.mulf %395, %394 : vector<3x288xf32>
    %c18_i32_235 = arith.constant 18 : i32
    %397 = tpu.dynamic_rotate %396 by %c18_i32_235 dim 1 : vector<3x288xf32>, i32 -> vector<3x288xf32>
    %c270_i32_236 = arith.constant 270 : i32
    %398 = tpu.dynamic_rotate %396 by %c270_i32_236 dim 1 : vector<3x288xf32>, i32 -> vector<3x288xf32>
    %399 = vector.shape_cast %220 : vector<1x288xi1> to vector<1x288xi1>
    %400 = vector.broadcast %399 : vector<1x288xi1> to vector<3x288xi1>
    %401 = arith.select %400, %397, %398 : vector<3x288xi1>, vector<3x288xf32>
    %402 = arith.addf %396, %401 : vector<3x288xf32>
    %cst_237 = arith.constant 5.000000e-01 : f32
    %403 = vector.broadcast %cst_237 : f32 to vector<3x288xf32>
    %404 = arith.mulf %403, %402 : vector<3x288xf32>
    %405 = vector.broadcast %214 : vector<3x1xf32> to vector<3x288xf32>
    %406 = arith.addf %404, %405 : vector<3x288xf32>
    %407 = vector.extract_strided_slice %375 {offsets = [0, 0], sizes = [3, 288], strides = [1, 1]} : vector<6x288xf32> to vector<3x288xf32>
    %408 = arith.addf %407, %406 : vector<3x288xf32>
    %c0_238 = arith.constant 0 : index
    %c6_239 = arith.constant 6 : index
    %c0_240 = arith.constant 0 : index
    %c0_241 = arith.constant 0 : index
    %409 = vector.load %arg9[%c0_238, %c6_239, %c0_240, %c0_241] : memref<1x8x3x288xf32, #tpu.memory_space<vmem>>, vector<1x1x3x288xf32>
    %410 = vector.shape_cast %409 : vector<1x1x3x288xf32> to vector<3x288xf32>
    %411 = vector.shape_cast %408 : vector<3x288xf32> to vector<1x1x3x288xf32>
    tpu.vector_store %arg9[%c0_238, %c6_239, %c0_240, %c0_241], %411 {strides = array<i32>} : memref<1x8x3x288xf32, #tpu.memory_space<vmem>>, vector<1x1x3x288xf32>,
    %412 = vector.extract_strided_slice %383 {offsets = [0, 0], sizes = [3, 288], strides = [1, 1]} : vector<6x288xf32> to vector<3x288xf32>
    %413 = arith.addf %412, %406 : vector<3x288xf32>
    %c0_242 = arith.constant 0 : index
    %c7_243 = arith.constant 7 : index
    %c0_244 = arith.constant 0 : index
    %c0_245 = arith.constant 0 : index
    %414 = vector.load %arg9[%c0_242, %c7_243, %c0_244, %c0_245] : memref<1x8x3x288xf32, #tpu.memory_space<vmem>>, vector<1x1x3x288xf32>
    %415 = vector.shape_cast %414 : vector<1x1x3x288xf32> to vector<3x288xf32>
    %416 = vector.shape_cast %413 : vector<3x288xf32> to vector<1x1x3x288xf32>
    tpu.vector_store %arg9[%c0_242, %c7_243, %c0_244, %c0_245], %416 {strides = array<i32>} : memref<1x8x3x288xf32, #tpu.memory_space<vmem>>, vector<1x1x3x288xf32>,
    return
  }
  func.func @transform_0(%arg0: i32, %arg1: i32) -> (i32, i32, i32, i32) {
    %c0_i32 = arith.constant 0 : i32
    %c0_i32_0 = arith.constant 0 : i32
    %c0_i32_1 = arith.constant 0 : i32
    return %arg0, %arg1, %c0_i32, %c0_i32_0 : i32, i32, i32, i32
  }
  func.func @transform_1(%arg0: i32, %arg1: i32) -> (i32, i32, i32, i32) {
    %c1_i32 = arith.constant 1 : i32
    %0 = arith.addi %arg1, %c1_i32 : i32
    %c4_i32 = arith.constant 4 : i32
    %1 = arith.muli %c4_i32, %0 : i32
    %c0_i32 = arith.constant 0 : i32
    %c0_i32_0 = arith.constant 0 : i32
    %c0_i32_1 = arith.constant 0 : i32
    return %arg0, %1, %c0_i32, %c0_i32_0 : i32, i32, i32, i32
  }
  func.func @transform_2(%arg0: i32, %arg1: i32) -> (i32, i32) {
    %c0_i32 = arith.constant 0 : i32
    %c0_i32_0 = arith.constant 0 : i32
    %c0_i32_1 = arith.constant 0 : i32
    return %c0_i32, %c0_i32_0 : i32, i32
  }
  func.func @transform_3(%arg0: i32, %arg1: i32) -> (i32, i32) {
    %c0_i32 = arith.constant 0 : i32
    %c0_i32_0 = arith.constant 0 : i32
    %c0_i32_1 = arith.constant 0 : i32
    return %c0_i32, %c0_i32_0 : i32, i32
  }
  func.func @transform_4(%arg0: i32, %arg1: i32) -> (i32, i32) {
    %c0_i32 = arith.constant 0 : i32
    %c0_i32_0 = arith.constant 0 : i32
    %c0_i32_1 = arith.constant 0 : i32
    return %c0_i32, %c0_i32_0 : i32, i32
  }
  func.func @transform_5(%arg0: i32, %arg1: i32) -> (i32, i32) {
    %c0_i32 = arith.constant 0 : i32
    %c0_i32_0 = arith.constant 0 : i32
    %c0_i32_1 = arith.constant 0 : i32
    return %c0_i32, %c0_i32_0 : i32, i32
  }
  func.func @transform_6(%arg0: i32, %arg1: i32) -> (i32, i32) {
    %c0_i32 = arith.constant 0 : i32
    %c0_i32_0 = arith.constant 0 : i32
    %c0_i32_1 = arith.constant 0 : i32
    return %c0_i32, %c0_i32_0 : i32, i32
  }
  func.func @transform_7(%arg0: i32, %arg1: i32) -> (i32, i32, i32, i32) {
    %c0_i32 = arith.constant 0 : i32
    %c0_i32_0 = arith.constant 0 : i32
    %c0_i32_1 = arith.constant 0 : i32
    return %arg0, %arg1, %c0_i32, %c0_i32_0 : i32, i32, i32, i32
  }
}

</mosaic_0001>

<llo_original>
// kernel: forward.1
$region0: #{forward.1}
  #allocation0 [shape = 'u32[]', space=smem, size = 0x4, offset = 0x4, fixed_abs, tag = 'smem constant byte address 0x4 - core index']
  #allocation1 [shape = 'u32[144,128]{1,0:T(1,128)}', space=vmem, size = 0x12000, scoped, tag = 'internal scratch']
  #allocation2 [shape = 'bf16[320,288]{1,0:T(8,128)(2,1)}', space=vmem, size = 0x3c000, scoped, tag = 'scratch operand']
  %s0 = inlined_call_operand.vmem [shape: bf16[2,18,2,342], index: 0, kind: input, shape index: {}, may-alias: {0,1}]
  %s1 = inlined_call_operand.vmem [shape: bf16[2,18,2,342], index: 1, kind: input, shape index: {}, may-alias: {0,1}]
  %s2 = inlined_call_operand.vmem [shape: bf16[32,96], index: 2, kind: input, shape index: {}]
  %s3 = inlined_call_operand.vmem [shape: f32[32,1], index: 3, kind: input, shape index: {}]
  %s4 = inlined_call_operand.vmem [shape: bf16[6,32], index: 4, kind: input, shape index: {}]
  %s5 = inlined_call_operand.vmem [shape: f32[3,1], index: 5, kind: input, shape index: {}]
  %s6 = inlined_call_operand.vmem [shape: f32[2,288], index: 6, kind: input, shape index: {}]
  %s7 = inlined_call_operand.vmem [shape: f32[2,16,3,288], index: 7, kind: output, shape index: {}]
  %s8 = sld [smem:[#allocation0]]
  $region61: #{forward.1} parent=0
    _
  %s10 = ssub.s32 1, %s8
  %s11 = scalar_select 0, %s10, %s8
  loop: start=0, step=1, limit=6
  $region2: #{forward.1} parent=0 // loop_pre_header
    _
  $region3: #{forward.1} parent=0 // loop_header
    %s13 = sphi 0, %s17
    %p14 = scmp.ge.s32.totalorder %s13, 6
    %s20 = sphi 0, %s32
    %s21 = sphi 0, %s28
    %s22 = sphi 0, %s20
    %s23 = sphi 0, %s21
    %s24 = sphi 0, %s22
    %s25 = sphi 0, %s23
    %s37 = sphi 0, %s39
    %s40 = sphi 0, %s37
    %s41 = sphi 0, %s40
    %s57 = sphi 0, %s41
    %s69 = sphi 0, %s71
    %s72 = sphi 0, %s69
    %s73 = sphi 0, %s72
    %s89 = sphi 0, %s73
    %s93 = sphi 0, %s93
    %s95 = sphi 0, %s93
    %s96 = sphi 0, %s95
    %s110 = sphi 0, %s96
    %s114 = sphi 0, %s114
    %s116 = sphi 0, %s114
    %s117 = sphi 0, %s116
    %s131 = sphi 0, %s117
    %s135 = sphi 0, %s135
    %s137 = sphi 0, %s135
    %s138 = sphi 0, %s137
    %s152 = sphi 0, %s138
    %s156 = sphi 0, %s156
    %s158 = sphi 0, %s156
    %s159 = sphi 0, %s158
    %s173 = sphi 0, %s159
    %s177 = sphi 0, %s177
    %s179 = sphi 0, %s177
    %s180 = sphi 0, %s179
    %s194 = sphi 0, %s180
    %s202 = sphi 0, %s204
    %s205 = sphi 0, %s202
    %s206 = sphi 0, %s205
    %s222 = sphi 0, %s206
  $region4: #{forward.1} parent=0 // loop_header_branch
    %16 = sbr.rel (%p14) target = $region8
  $region5: #{forward.1} parent=0 // loop_body
    %s18 = ssub.s32 %s13, 1
    %s19 = ssub.s32 %s13, 2
    %s26 = sadd.s32 1, %s21
    %p27 = scmp.ge.s32.totalorder %s26, 2
    %s28 = scalar_select %p27, 0, %s26
    %s29 = sadd.s32 1, %s20
    %s30 = scalar_select %p27, %s29, %s20
    %p31 = scmp.ge.s32.totalorder %s30, 2
    %s32 = scalar_select %p31, 0, %s30
    %s33 = ssub.s32 %s20, %s32
    %s34 = ssub.s32 %s21, %s28
    %s35 = sor.u32 %s33, %s34
    %p36 = scmp.eq.s32.totalorder %s35, 0
    %s38 = sadd.s32 %s37, 1
    %s39 = scalar_select %p36, %s37, %s38
    %p42 = pneg %p36
    %p43 = scmp.eq.s32.totalorder %s13, 3
    %p44 = por %p42, %p43
    %p45 = scmp.ne.s32.totalorder %s37, %s40
    %p46 = scmp.eq.s32.totalorder %s13, 0
    %p47 = por %p45, %p46
    %p48 = scmp.ne.s32.totalorder %s37, %s40
    %p49 = scmp.eq.s32.totalorder %s18, 3
    %p50 = por %p48, %p49
    %p51 = scmp.ne.s32.totalorder %s40, %s41
    %p52 = scmp.eq.s32.totalorder %s18, 0
    %p53 = por %p51, %p52
    %p54 = scmp.ne.s32.totalorder %s40, %s41
    %p55 = scmp.eq.s32.totalorder %s19, 3
    %p56 = por %p54, %p55
    %p58 = scmp.ne.s32.totalorder %s41, %s57
    %p59 = scmp.eq.s32.totalorder %s19, 0
    %p60 = por %p58, %p59
    %s61 = sadd.s32 %s21, 1
    %s62 = smul.u32 %s61, 4
    %s63 = sadd.s32 %s28, 1
    %s64 = smul.u32 %s63, 4
    %s65 = ssub.s32 %s20, %s32
    %s66 = ssub.s32 %s62, %s64
    %s67 = sor.u32 %s65, %s66
    %p68 = scmp.eq.s32.totalorder %s67, 0
    %s70 = sadd.s32 %s69, 1
    %s71 = scalar_select %p68, %s69, %s70
    %p74 = pneg %p68
    %p75 = scmp.eq.s32.totalorder %s13, 3
    %p76 = por %p74, %p75
    %p77 = scmp.ne.s32.totalorder %s69, %s72
    %p78 = scmp.eq.s32.totalorder %s13, 0
    %p79 = por %p77, %p78
    %p80 = scmp.ne.s32.totalorder %s69, %s72
    %p81 = scmp.eq.s32.totalorder %s18, 3
    %p82 = por %p80, %p81
    %p83 = scmp.ne.s32.totalorder %s72, %s73
    %p84 = scmp.eq.s32.totalorder %s18, 0
    %p85 = por %p83, %p84
    %p86 = scmp.ne.s32.totalorder %s72, %s73
    %p87 = scmp.eq.s32.totalorder %s19, 3
    %p88 = por %p86, %p87
    %p90 = scmp.ne.s32.totalorder %s73, %s89
    %p91 = scmp.eq.s32.totalorder %s19, 0
    %p92 = por %p90, %p91
    %s94 = sadd.s32 %s93, 1
    %p97 = scmp.eq.s32.totalorder %s13, 3
    %p98 = scmp.ne.s32.totalorder %s93, %s95
    %p99 = scmp.eq.s32.totalorder %s13, 0
    %p100 = por %p98, %p99
    %p101 = scmp.ne.s32.totalorder %s93, %s95
    %p102 = scmp.eq.s32.totalorder %s18, 3
    %p103 = por %p101, %p102
    %p104 = scmp.ne.s32.totalorder %s95, %s96
    %p105 = scmp.eq.s32.totalorder %s18, 0
    %p106 = por %p104, %p105
    %p107 = scmp.ne.s32.totalorder %s95, %s96
    %p108 = scmp.eq.s32.totalorder %s19, 3
    %p109 = por %p107, %p108
    %p111 = scmp.ne.s32.totalorder %s96, %s110
    %p112 = scmp.eq.s32.totalorder %s19, 0
    %p113 = por %p111, %p112
    %s115 = sadd.s32 %s114, 1
    %p118 = scmp.eq.s32.totalorder %s13, 3
    %p119 = scmp.ne.s32.totalorder %s114, %s116
    %p120 = scmp.eq.s32.totalorder %s13, 0
    %p121 = por %p119, %p120
    %p122 = scmp.ne.s32.totalorder %s114, %s116
    %p123 = scmp.eq.s32.totalorder %s18, 3
    %p124 = por %p122, %p123
    %p125 = scmp.ne.s32.totalorder %s116, %s117
    %p126 = scmp.eq.s32.totalorder %s18, 0
    %p127 = por %p125, %p126
    %p128 = scmp.ne.s32.totalorder %s116, %s117
    %p129 = scmp.eq.s32.totalorder %s19, 3
    %p130 = por %p128, %p129
    %p132 = scmp.ne.s32.totalorder %s117, %s131
    %p133 = scmp.eq.s32.totalorder %s19, 0
    %p134 = por %p132, %p133
    %s136 = sadd.s32 %s135, 1
    %p139 = scmp.eq.s32.totalorder %s13, 3
    %p140 = scmp.ne.s32.totalorder %s135, %s137
    %p141 = scmp.eq.s32.totalorder %s13, 0
    %p142 = por %p140, %p141
    %p143 = scmp.ne.s32.totalorder %s135, %s137
    %p144 = scmp.eq.s32.totalorder %s18, 3
    %p145 = por %p143, %p144
    %p146 = scmp.ne.s32.totalorder %s137, %s138
    %p147 = scmp.eq.s32.totalorder %s18, 0
    %p148 = por %p146, %p147
    %p149 = scmp.ne.s32.totalorder %s137, %s138
    %p150 = scmp.eq.s32.totalorder %s19, 3
    %p151 = por %p149, %p150
    %p153 = scmp.ne.s32.totalorder %s138, %s152
    %p154 = scmp.eq.s32.totalorder %s19, 0
    %p155 = por %p153, %p154
    %s157 = sadd.s32 %s156, 1
    %p160 = scmp.eq.s32.totalorder %s13, 3
    %p161 = scmp.ne.s32.totalorder %s156, %s158
    %p162 = scmp.eq.s32.totalorder %s13, 0
    %p163 = por %p161, %p162
    %p164 = scmp.ne.s32.totalorder %s156, %s158
    %p165 = scmp.eq.s32.totalorder %s18, 3
    %p166 = por %p164, %p165
    %p167 = scmp.ne.s32.totalorder %s158, %s159
    %p168 = scmp.eq.s32.totalorder %s18, 0
    %p169 = por %p167, %p168
    %p170 = scmp.ne.s32.totalorder %s158, %s159
    %p171 = scmp.eq.s32.totalorder %s19, 3
    %p172 = por %p170, %p171
    %p174 = scmp.ne.s32.totalorder %s159, %s173
    %p175 = scmp.eq.s32.totalorder %s19, 0
    %p176 = por %p174, %p175
    %s178 = sadd.s32 %s177, 1
    %p181 = scmp.eq.s32.totalorder %s13, 3
    %p182 = scmp.ne.s32.totalorder %s177, %s179
    %p183 = scmp.eq.s32.totalorder %s13, 0
    %p184 = por %p182, %p183
    %p185 = scmp.ne.s32.totalorder %s177, %s179
    %p186 = scmp.eq.s32.totalorder %s18, 3
    %p187 = por %p185, %p186
    %p188 = scmp.ne.s32.totalorder %s179, %s180
    %p189 = scmp.eq.s32.totalorder %s18, 0
    %p190 = por %p188, %p189
    %p191 = scmp.ne.s32.totalorder %s179, %s180
    %p192 = scmp.eq.s32.totalorder %s19, 3
    %p193 = por %p191, %p192
    %p195 = scmp.ne.s32.totalorder %s180, %s194
    %p196 = scmp.eq.s32.totalorder %s19, 0
    %p197 = por %p195, %p196
    %s198 = ssub.s32 %s20, %s32
    %s199 = ssub.s32 %s21, %s28
    %s200 = sor.u32 %s198, %s199
    %p201 = scmp.eq.s32.totalorder %s200, 0
    %s203 = sadd.s32 %s202, 1
    %s204 = scalar_select %p201, %s202, %s203
    %p207 = pneg %p201
    %p208 = scmp.eq.s32.totalorder %s13, 3
    %p209 = por %p207, %p208
    %p210 = scmp.ne.s32.totalorder %s202, %s205
    %p211 = scmp.eq.s32.totalorder %s13, 0
    %p212 = por %p210, %p211
    %p213 = scmp.ne.s32.totalorder %s202, %s205
    %p214 = scmp.eq.s32.totalorder %s18, 3
    %p215 = por %p213, %p214
    %p216 = scmp.ne.s32.totalorder %s205, %s206
    %p217 = scmp.eq.s32.totalorder %s18, 0
    %p218 = por %p216, %p217
    %p219 = scmp.ne.s32.totalorder %s205, %s206
    %p220 = scmp.eq.s32.totalorder %s19, 3
    %p221 = por %p219, %p220
    %p223 = scmp.ne.s32.totalorder %s206, %s222
    %p224 = scmp.eq.s32.totalorder %s19, 0
    %p225 = por %p223, %p224
    %p226 = scmp.le.s32.totalorder 1, %s13
    %p227 = scmp.lt.s32.totalorder %s13, 5
    %p228 = pnand %p226, %p227
    %p229 = pneg %p228
    // Predicated region
    $region9: #{forward.1} parent=5 // pred_check
      _
    $region10: #{forward.1} parent=5 // pred_check_branch
      %231 = sbr.rel (%p228) target = $region12
    $region11: #{forward.1} parent=5 // pred_region
      %s232 = ssub.s32 %s13, 1
      // Predicated region
      $region13: #{forward.1} parent=11 // pred_check
        %p233 = pneg %p106
      $region14: #{forward.1} parent=11 // pred_check_branch
        %235 = sbr.rel (%p233) target = $region16
      $region15: #{forward.1} parent=11 // pred_region
        _
      $region16: #{forward.1} parent=11 // pred_fallthru
        _
      // Predicated region
      $region17: #{forward.1} parent=11 // pred_check
        %p236 = pneg %p127
      $region18: #{forward.1} parent=11 // pred_check_branch
        %238 = sbr.rel (%p236) target = $region20
      $region19: #{forward.1} parent=11 // pred_region
        _
      $region20: #{forward.1} parent=11 // pred_fallthru
        _
      // Predicated region
      $region21: #{forward.1} parent=11 // pred_check
        %p239 = pneg %p148
      $region22: #{forward.1} parent=11 // pred_check_branch
        %241 = sbr.rel (%p239) target = $region24
      $region23: #{forward.1} parent=11 // pred_region
        _
      $region24: #{forward.1} parent=11 // pred_fallthru
        _
      // Predicated region
      $region25: #{forward.1} parent=11 // pred_check
        %p242 = pneg %p169
      $region26: #{forward.1} parent=11 // pred_check_branch
        %244 = sbr.rel (%p242) target = $region28
      $region27: #{forward.1} parent=11 // pred_region
        _
      $region28: #{forward.1} parent=11 // pred_fallthru
        _
      // Predicated region
      $region29: #{forward.1} parent=11 // pred_check
        %p245 = pneg %p190
      $region30: #{forward.1} parent=11 // pred_check_branch
        %247 = sbr.rel (%p245) target = $region32
      $region31: #{forward.1} parent=11 // pred_region
        _
      $region32: #{forward.1} parent=11 // pred_fallthru
        _
    $region12: #{forward.1} parent=5 // pred_fallthru
      _
    %p248 = scmp.lt.s32.totalorder %s13, 4
    // Predicated region
    $region33: #{forward.1} parent=5 // pred_check
      %p249 = pneg %p248
    $region34: #{forward.1} parent=5 // pred_check_branch
      %251 = sbr.rel (%p249) target = $region36
    $region35: #{forward.1} parent=5 // pred_region
      // Predicated region
      $region37: #{forward.1} parent=35 // pred_check
        %p252 = pneg %p47
      $region38: #{forward.1} parent=35 // pred_check_branch
        %254 = sbr.rel (%p252) target = $region40
      $region39: #{forward.1} parent=35 // pred_region
        %s255 = smul.u32 8, %s21
        %s256 = ssub.s32 18, %s255
        %p257 = scmp.lt.s32.totalorder %s256, 8
        %s258 = scalar_select %p257, %s256, 8
        %s259 = smul.u32 16, %s258
        %s260 = smul.u32 %s259, 3
        %p261 = scmp.lt.s32.totalorder %s20, 1
        %s262 = scalar_select %p261, %s20, 1
        %p263 = scmp.lt.s32.totalorder %s255, 17
        %s264 = scalar_select %p263, %s255, 17
        %s265 = smul.addr %s264, 3
        %s266 = smul.addr %s262, 54
        %s267 = sadd.s32 %s265, %s266
        %s268 = scalar_lea.vmem %s0, %s267
        %s269 = smul.u32 8, %s21
        %s270 = ssub.s32 18, %s269
        %p271 = scmp.lt.s32.totalorder %s270, 8
        %s272 = scalar_select %p271, %s270, 8
        %s273 = smul.u32 16, %s272
        %s274 = smul.u32 %s273, 3
      $region40: #{forward.1} parent=35 // pred_fallthru
        _
      // Predicated region
      $region41: #{forward.1} parent=35 // pred_check
        %p275 = pneg %p79
      $region42: #{forward.1} parent=35 // pred_check_branch
        %277 = sbr.rel (%p275) target = $region44
      $region43: #{forward.1} parent=35 // pred_region
        %s278 = sadd.s32 %s21, 1
        %s279 = smul.u32 %s278, 4
        %s280 = smul.u32 2, %s279
        %p281 = scmp.lt.s32.totalorder %s20, 1
        %s282 = scalar_select %p281, %s20, 1
        %p283 = scmp.lt.s32.totalorder %s280, 17
        %s284 = scalar_select %p283, %s280, 17
        %s285 = smul.addr %s284, 3
        %s286 = smul.addr %s282, 54
        %s287 = sadd.s32 %s285, %s286
        %s288 = scalar_lea.vmem %s1, %s287
        %s289 = sadd.s32 %s21, 1
        %s290 = smul.u32 %s289, 4
        %s291 = smul.u32 2, %s290
      $region44: #{forward.1} parent=35 // pred_fallthru
        _
    $region36: #{forward.1} parent=5 // pred_fallthru
      _
    %p292 = scmp.le.s32.totalorder 1, %s13
    %p293 = scmp.lt.s32.totalorder %s13, 5
    %p294 = pnand %p292, %p293
    %p295 = pneg %p294
    // Predicated region
    $region45: #{forward.1} parent=5 // pred_check
      _
    $region46: #{forward.1} parent=5 // pred_check_branch
      %297 = sbr.rel (%p294) target = $region48
    $region47: #{forward.1} parent=5 // pred_region
      %s298 = ssub.s32 %s13, 1
      %s299 = smul.u32 8, %s23
      %s300 = ssub.s32 18, %s299
      %p301 = scmp.lt.s32.totalorder %s300, 8
      %s302 = scalar_select %p301, %s300, 8
      %s303 = smul.u32 16, %s302
      %s304 = smul.u32 %s303, 3
      %p305 = scmp.lt.s32.totalorder %s22, 1
      %s306 = scalar_select %p305, %s22, 1
      %p307 = scmp.lt.s32.totalorder %s299, 17
      %s308 = scalar_select %p307, %s299, 17
      %s309 = smul.addr %s308, 3
      %s310 = smul.addr %s306, 54
      %s311 = sadd.s32 %s309, %s310
      %s312 = scalar_lea.vmem %s0, %s311
      %p313 = pneg %p53
      %p314 = pneg %p50
      %s315 = sadd.s32 %s23, 1
      %s316 = smul.u32 %s315, 4
      %s317 = smul.u32 2, %s316
      %p318 = scmp.lt.s32.totalorder %s22, 1
      %s319 = scalar_select %p318, %s22, 1
      %p320 = scmp.lt.s32.totalorder %s317, 17
      %s321 = scalar_select %p320, %s317, 17
      %s322 = smul.addr %s321, 3
      %s323 = smul.addr %s319, 54
      %s324 = sadd.s32 %s322, %s323
      %s325 = scalar_lea.vmem %s1, %s324
      %p326 = pneg %p85
      %p327 = pneg %p82
      %p328 = pneg %p106
      %p329 = pneg %p103
      %p330 = pneg %p127
      %p331 = pneg %p124
      %p332 = pneg %p148
      %p333 = pneg %p145
      %p334 = pneg %p169
      %p335 = pneg %p166
      %p336 = pneg %p190
      %p337 = pneg %p187
      %p338 = pneg %p218
      %p339 = pneg %p215
      %s340 = smul.u32 8, %s23
      %p341 = scmp.lt.s32.totalorder %s22, 1
      %s342 = scalar_select %p341, %s22, 1
      %p343 = scmp.lt.s32.totalorder %s340, 15
      %s344 = scalar_select %p343, %s340, 15
      %s345 = smul.addr %s344, 3
      %s346 = smul.addr %s342, 48
      %s347 = sadd.s32 %s345, %s346
      %s348 = smul.addr %s347, 4
      %s349 = scalar_lea.vmem %s7, %s348
      %s350 = smul.u32 8, %s23
      %s351 = ssub.s32 18, %s350
      %p352 = scmp.lt.s32.totalorder %s351, 8
      %s353 = scalar_select %p352, %s351, 8
      %s354 = smul.u32 16, %s353
      %s355 = smul.u32 %s354, 3
      %p356 = scmp.lt.s32.totalorder %s22, 1
      %s357 = scalar_select %p356, %s22, 1
      %p358 = scmp.lt.s32.totalorder %s350, 17
      %s359 = scalar_select %p358, %s350, 17
      %s360 = smul.addr %s359, 3
      %s361 = smul.addr %s357, 54
      %s362 = sadd.s32 %s360, %s361
      %s363 = scalar_lea.vmem %s0, %s362
      %s364 = smul.u32 8, %s23
      %s365 = ssub.s32 18, %s364
      %p366 = scmp.lt.s32.totalorder %s365, 8
      %s367 = scalar_select %p366, %s365, 8
      %s368 = smul.u32 16, %s367
      %s369 = smul.u32 %s368, 3
      %s370 = sadd.s32 %s23, 1
      %s371 = smul.u32 %s370, 4
      %s372 = smul.u32 2, %s371
      %p373 = scmp.lt.s32.totalorder %s22, 1
      %s374 = scalar_select %p373, %s22, 1
      %p375 = scmp.lt.s32.totalorder %s372, 17
      %s376 = scalar_select %p375, %s372, 17
      %s377 = smul.addr %s376, 3
      %s378 = smul.addr %s374, 54
      %s379 = sadd.s32 %s377, %s378
      %s380 = scalar_lea.vmem %s1, %s379
      %s381 = sadd.s32 %s23, 1
      %s382 = smul.u32 %s381, 4
      %s383 = smul.u32 2, %s382
      %s384 = smul.u32 8, %s23
      %p385 = scmp.lt.s32.totalorder %s22, 1
      %s386 = scalar_select %p385, %s22, 1
      %p387 = scmp.lt.s32.totalorder %s384, 15
      %s388 = scalar_select %p387, %s384, 15
      %s389 = smul.addr %s388, 3
      %s390 = smul.addr %s386, 48
      %s391 = sadd.s32 %s389, %s390
      %s392 = smul.addr %s391, 4
      %s393 = scalar_lea.vmem %s7, %s392
      %s394 = smul.u32 8, %s23
      %v396 = vld [vmem:[%s363] sm:$0x7]
      %v399 = vunpack.c.l.s4 1935823168
      %v400 = vunpack.c.0.s8 %v399
      %v401 = vlaneseq
      %v402 = vshrl.u32 %v401, 7
      %v403 = vsub.s32 %v400, %v402
      %v404 = vrot.slane %v396, %v403
      %v405 = vcombine.high %v404, %v404
      %v407 = vunpack.c.l.s4 1935823168
      %v408 = vunpack.c.0.s8 %v407
      %v409 = vlaneseq
      %v410 = vshrl.u32 %v409, 7
      %v411 = vsub.s32 %v408, %v410
      %v412 = vrot.slane %v404, %v411
      %v414 = vunpack.c.l.s4 1935823168
      %v415 = vunpack.c.0.s8 %v414
      %v416 = vlaneseq
      %v417 = vshrl.u32 %v416, 7
      %v418 = vsub.s32 %v415, %v417
      %v419 = vrot.slane %v405, %v418
      %422 = vst [vmem:[#allocation2] sm:$0x11] %v412
      %vm423 = vcmask 253952
      %424 = vst.msk [vmem:[#allocation2 + $0x8] sm:$0x1] %vm423, %v419
      %v425 = vcombine.low %v404, %v404
      %v427 = vunpack.c.l.s4 1935823168
      %v428 = vunpack.c.0.s8 %v427
      %v429 = vlaneseq
      %v430 = vshrl.u32 %v429, 7
      %v431 = vsub.s32 %v428, %v430
      %v432 = vrot.slane %v425, %v431
      %433 = vrot.lane.b32.xlu0 %v432, 127
      %v434 = vpop.permute.xlu0 %433
      %435 = vrot.lane.b32.xlu0 %v412, 127
      %v436 = vpop.permute.xlu0 %435
      %v437 = vrot.slane %v434, 4
      %v438 = vrot.slane %v436, 4
      %vm439 = vcmask 1043456
      %v440 = vsel %vm439, %v437, %v438
      %vm441 = vcmask 1039360
      %v442 = vsel %vm441, %v434, %v440
      %445 = vst [vmem:[#allocation2] sm:$0x22] %v442
      %vm446 = vcmask 254977
      %447 = vst.msk [vmem:[#allocation2 + $0x8] sm:$0x2] %vm446, %v436
      %v448 = vcombine.low %v396, %v396
      %v450 = vunpack.c.l.s4 1935823168
      %v451 = vunpack.c.0.s8 %v450
      %v452 = vlaneseq
      %v453 = vshrl.u32 %v452, 7
      %v454 = vsub.s32 %v451, %v453
      %v455 = vrot.slane %v448, %v454
      %v456 = vcombine.high %v455, %v455
      %v458 = vunpack.c.l.s4 1935823168
      %v459 = vunpack.c.0.s8 %v458
      %v460 = vlaneseq
      %v461 = vshrl.u32 %v460, 7
      %v462 = vsub.s32 %v459, %v461
      %v463 = vrot.slane %v455, %v462
      %v465 = vunpack.c.l.s4 1935823168
      %v466 = vunpack.c.0.s8 %v465
      %v467 = vlaneseq
      %v468 = vshrl.u32 %v467, 7
      %v469 = vsub.s32 %v466, %v468
      %v470 = vrot.slane %v456, %v469
      %471 = vrot.lane.b32.xlu0 %v463, 126
      %v472 = vpop.permute.xlu0 %471
      %473 = vrot.lane.b32.xlu0 %v470, 126
      %v474 = vpop.permute.xlu0 %473
      %v475 = vrot.slane %v472, 4
      %v476 = vrot.slane %v474, 4
      %v477 = vsel %vm439, %v475, %v476
      %vm478 = vcmask 1031168
      %v479 = vsel %vm478, %v472, %v477
      %482 = vst [vmem:[#allocation2] sm:$0x44] %v479
      %vm483 = vcmask 256002
      %484 = vst.msk [vmem:[#allocation2 + $0x8] sm:$0x4] %vm483, %v474
      %v485 = vcombine.low %v455, %v455
      %v487 = vunpack.c.l.s4 1935823168
      %v488 = vunpack.c.0.s8 %v487
      %v489 = vlaneseq
      %v490 = vshrl.u32 %v489, 7
      %v491 = vsub.s32 %v488, %v490
      %v492 = vrot.slane %v485, %v491
      %493 = vrot.lane.b32.xlu0 %v492, 110
      %v494 = vpop.permute.xlu0 %493
      %495 = vrot.lane.b32.xlu0 %v463, 110
      %v496 = vpop.permute.xlu0 %495
      %v497 = vrot.slane %v494, 4
      %v498 = vrot.slane %v496, 4
      %v499 = vsel %vm439, %v497, %v498
      %vm500 = vcmask 900096
      %v501 = vsel %vm500, %v494, %v499
      %504 = vst [vmem:[#allocation2] sm:$0x88] %v501
      %vm505 = vcmask 257027
      %506 = vst.msk [vmem:[#allocation2 + $0x8] sm:$0x8] %vm505, %v496
      %507 = vrot.lane.b32.xlu0 %v412, 109
      %v508 = vpop.permute.xlu0 %507
      %509 = vrot.lane.b32.xlu0 %v419, 109
      %v510 = vpop.permute.xlu0 %509
      %v511 = vrot.slane %v508, 4
      %v512 = vrot.slane %v510, 4
      %v513 = vsel %vm439, %v511, %v512
      %vm514 = vcmask 891904
      %v515 = vsel %vm514, %v508, %v513
      %518 = vst [vmem:[#allocation2 + $0xc] sm:$0x11] %v515
      %519 = vst.msk [vmem:[#allocation2 + $0x14] sm:$0x1] %vm423, %v510
      %520 = vrot.lane.b32.xlu0 %v432, 108
      %v521 = vpop.permute.xlu0 %520
      %522 = vrot.lane.b32.xlu0 %v412, 108
      %v523 = vpop.permute.xlu0 %522
      %v524 = vrot.slane %v521, 4
      %v525 = vrot.slane %v523, 4
      %v526 = vsel %vm439, %v524, %v525
      %vm527 = vcmask 883712
      %v528 = vsel %vm527, %v521, %v526
      %531 = vst [vmem:[#allocation2 + $0xc] sm:$0x22] %v528
      %532 = vst.msk [vmem:[#allocation2 + $0x14] sm:$0x2] %vm446, %v523
      %533 = vrot.lane.b32.xlu0 %v463, 92
      %v534 = vpop.permute.xlu0 %533
      %535 = vrot.lane.b32.xlu0 %v470, 92
      %v536 = vpop.permute.xlu0 %535
      %v537 = vrot.slane %v534, 4
      %v538 = vrot.slane %v536, 4
      %v539 = vsel %vm439, %v537, %v538
      %vm540 = vcmask 752640
      %v541 = vsel %vm540, %v534, %v539
      %544 = vst [vmem:[#allocation2 + $0xc] sm:$0x44] %v541
      %545 = vst.msk [vmem:[#allocation2 + $0x14] sm:$0x4] %vm483, %v536
      %546 = vrot.lane.b32.xlu0 %v492, 91
      %v547 = vpop.permute.xlu0 %546
      %548 = vrot.lane.b32.xlu0 %v463, 91
      %v549 = vpop.permute.xlu0 %548
      %v550 = vrot.slane %v547, 4
      %v551 = vrot.slane %v549, 4
      %v552 = vsel %vm439, %v550, %v551
      %vm553 = vcmask 744448
      %v554 = vsel %vm553, %v547, %v552
      %557 = vst [vmem:[#allocation2 + $0xc] sm:$0x88] %v554
      %558 = vst.msk [vmem:[#allocation2 + $0x14] sm:$0x8] %vm505, %v549
      %559 = vrot.lane.b32.xlu0 %v412, 90
      %v560 = vpop.permute.xlu0 %559
      %561 = vrot.lane.b32.xlu0 %v419, 90
      %v562 = vpop.permute.xlu0 %561
      %v563 = vrot.slane %v560, 4
      %v564 = vrot.slane %v562, 4
      %v565 = vsel %vm439, %v563, %v564
      %vm566 = vcmask 736256
      %v567 = vsel %vm566, %v560, %v565
      %570 = vst [vmem:[#allocation2 + $0x18] sm:$0x11] %v567
      %571 = vst.msk [vmem:[#allocation2 + $0x20] sm:$0x1] %vm423, %v562
      %572 = vst [vmem:[#allocation2 + $0x18] sm:$0xee] 0
      %vm573 = vcmask 257025
      %574 = vst.msk [vmem:[#allocation2 + $0x20] sm:$0xe] %vm573, 0
      %575 = vst [vmem:[#allocation2 + $0x24] sm:$0xff] 0
      %vm576 = vcmask 257024
      %577 = vst.msk [vmem:[#allocation2 + $0x2c] sm:$0xf] %vm576, 0
      %s578 = scalar_lea.vmem %s363, 3
      %v579 = vld [vmem:[%s578] sm:$0x7]
      %v582 = vunpack.c.l.s4 1935823168
      %v583 = vunpack.c.0.s8 %v582
      %v584 = vlaneseq
      %v585 = vshrl.u32 %v584, 7
      %v586 = vsub.s32 %v583, %v585
      %v587 = vrot.slane %v579, %v586
      %v588 = vcombine.high %v587, %v587
      %v590 = vunpack.c.l.s4 1935823168
      %v591 = vunpack.c.0.s8 %v590
      %v592 = vlaneseq
      %v593 = vshrl.u32 %v592, 7
      %v594 = vsub.s32 %v591, %v593
      %v595 = vrot.slane %v587, %v594
      %v597 = vunpack.c.l.s4 1935823168
      %v598 = vunpack.c.0.s8 %v597
      %v599 = vlaneseq
      %v600 = vshrl.u32 %v599, 7
      %v601 = vsub.s32 %v598, %v600
      %v602 = vrot.slane %v588, %v601
      %605 = vst [vmem:[#allocation2 + $0x30] sm:$0x11] %v595
      %606 = vst.msk [vmem:[#allocation2 + $0x38] sm:$0x1] %vm423, %v602
      %v607 = vcombine.low %v587, %v587
      %v609 = vunpack.c.l.s4 1935823168
      %v610 = vunpack.c.0.s8 %v609
      %v611 = vlaneseq
      %v612 = vshrl.u32 %v611, 7
      %v613 = vsub.s32 %v610, %v612
      %v614 = vrot.slane %v607, %v613
      %615 = vrot.lane.b32.xlu0 %v614, 127
      %v616 = vpop.permute.xlu0 %615
      %617 = vrot.lane.b32.xlu0 %v595, 127
      %v618 = vpop.permute.xlu0 %617
      %v619 = vrot.slane %v616, 4
      %v620 = vrot.slane %v618, 4
      %v621 = vsel %vm439, %v619, %v620
      %v622 = vsel %vm441, %v616, %v621
      %625 = vst [vmem:[#allocation2 + $0x30] sm:$0x22] %v622
      %626 = vst.msk [vmem:[#allocation2 + $0x38] sm:$0x2] %vm446, %v618
      %v627 = vcombine.low %v579, %v579
      %v629 = vunpack.c.l.s4 1935823168
      %v630 = vunpack.c.0.s8 %v629
      %v631 = vlaneseq
      %v632 = vshrl.u32 %v631, 7
      %v633 = vsub.s32 %v630, %v632
      %v634 = vrot.slane %v627, %v633
      %v635 = vcombine.high %v634, %v634
      %v637 = vunpack.c.l.s4 1935823168
      %v638 = vunpack.c.0.s8 %v637
      %v639 = vlaneseq
      %v640 = vshrl.u32 %v639, 7
      %v641 = vsub.s32 %v638, %v640
      %v642 = vrot.slane %v634, %v641
      %v644 = vunpack.c.l.s4 1935823168
      %v645 = vunpack.c.0.s8 %v644
      %v646 = vlaneseq
      %v647 = vshrl.u32 %v646, 7
      %v648 = vsub.s32 %v645, %v647
      %v649 = vrot.slane %v635, %v648
      %650 = vrot.lane.b32.xlu0 %v642, 126
      %v651 = vpop.permute.xlu0 %650
      %652 = vrot.lane.b32.xlu0 %v649, 126
      %v653 = vpop.permute.xlu0 %652
      %v654 = vrot.slane %v651, 4
      %v655 = vrot.slane %v653, 4
      %v656 = vsel %vm439, %v654, %v655
      %v657 = vsel %vm478, %v651, %v656
      %660 = vst [vmem:[#allocation2 + $0x30] sm:$0x44] %v657
      %661 = vst.msk [vmem:[#allocation2 + $0x38] sm:$0x4] %vm483, %v653
      %v662 = vcombine.low %v634, %v634
      %v664 = vunpack.c.l.s4 1935823168
      %v665 = vunpack.c.0.s8 %v664
      %v666 = vlaneseq
      %v667 = vshrl.u32 %v666, 7
      %v668 = vsub.s32 %v665, %v667
      %v669 = vrot.slane %v662, %v668
      %670 = vrot.lane.b32.xlu0 %v669, 110
      %v671 = vpop.permute.xlu0 %670
      %672 = vrot.lane.b32.xlu0 %v642, 110
      %v673 = vpop.permute.xlu0 %672
      %v674 = vrot.slane %v671, 4
      %v675 = vrot.slane %v673, 4
      %v676 = vsel %vm439, %v674, %v675
      %v677 = vsel %vm500, %v671, %v676
      %680 = vst [vmem:[#allocation2 + $0x30] sm:$0x88] %v677
      %681 = vst.msk [vmem:[#allocation2 + $0x38] sm:$0x8] %vm505, %v673
      %682 = vrot.lane.b32.xlu0 %v595, 109
      %v683 = vpop.permute.xlu0 %682
      %684 = vrot.lane.b32.xlu0 %v602, 109
      %v685 = vpop.permute.xlu0 %684
      %v686 = vrot.slane %v683, 4
      %v687 = vrot.slane %v685, 4
      %v688 = vsel %vm439, %v686, %v687
      %v689 = vsel %vm514, %v683, %v688
      %692 = vst [vmem:[#allocation2 + $0x3c] sm:$0x11] %v689
      %693 = vst.msk [vmem:[#allocation2 + $0x44] sm:$0x1] %vm423, %v685
      %694 = vrot.lane.b32.xlu0 %v614, 108
      %v695 = vpop.permute.xlu0 %694
      %696 = vrot.lane.b32.xlu0 %v595, 108
      %v697 = vpop.permute.xlu0 %696
      %v698 = vrot.slane %v695, 4
      %v699 = vrot.slane %v697, 4
      %v700 = vsel %vm439, %v698, %v699
      %v701 = vsel %vm527, %v695, %v700
      %704 = vst [vmem:[#allocation2 + $0x3c] sm:$0x22] %v701
      %705 = vst.msk [vmem:[#allocation2 + $0x44] sm:$0x2] %vm446, %v697
      %706 = vrot.lane.b32.xlu0 %v642, 92
      %v707 = vpop.permute.xlu0 %706
      %708 = vrot.lane.b32.xlu0 %v649, 92
      %v709 = vpop.permute.xlu0 %708
      %v710 = vrot.slane %v707, 4
      %v711 = vrot.slane %v709, 4
      %v712 = vsel %vm439, %v710, %v711
      %v713 = vsel %vm540, %v707, %v712
      %716 = vst [vmem:[#allocation2 + $0x3c] sm:$0x44] %v713
      %717 = vst.msk [vmem:[#allocation2 + $0x44] sm:$0x4] %vm483, %v709
      %718 = vrot.lane.b32.xlu0 %v669, 91
      %v719 = vpop.permute.xlu0 %718
      %720 = vrot.lane.b32.xlu0 %v642, 91
      %v721 = vpop.permute.xlu0 %720
      %v722 = vrot.slane %v719, 4
      %v723 = vrot.slane %v721, 4
      %v724 = vsel %vm439, %v722, %v723
      %v725 = vsel %vm553, %v719, %v724
      %728 = vst [vmem:[#allocation2 + $0x3c] sm:$0x88] %v725
      %729 = vst.msk [vmem:[#allocation2 + $0x44] sm:$0x8] %vm505, %v721
      %730 = vrot.lane.b32.xlu0 %v595, 90
      %v731 = vpop.permute.xlu0 %730
      %732 = vrot.lane.b32.xlu0 %v602, 90
      %v733 = vpop.permute.xlu0 %732
      %v734 = vrot.slane %v731, 4
      %v735 = vrot.slane %v733, 4
      %v736 = vsel %vm439, %v734, %v735
      %v737 = vsel %vm566, %v731, %v736
      %740 = vst [vmem:[#allocation2 + $0x48] sm:$0x11] %v737
      %741 = vst.msk [vmem:[#allocation2 + $0x50] sm:$0x1] %vm423, %v733
      %742 = vst [vmem:[#allocation2 + $0x48] sm:$0xee] 0
      %743 = vst.msk [vmem:[#allocation2 + $0x50] sm:$0xe] %vm573, 0
      %744 = vst [vmem:[#allocation2 + $0x54] sm:$0xff] 0
      %745 = vst.msk [vmem:[#allocation2 + $0x5c] sm:$0xf] %vm576, 0
      %s746 = scalar_lea.vmem %s363, 6
      %v747 = vld [vmem:[%s746] sm:$0x7]
      %v750 = vunpack.c.l.s4 1935823168
      %v751 = vunpack.c.0.s8 %v750
      %v752 = vlaneseq
      %v753 = vshrl.u32 %v752, 7
      %v754 = vsub.s32 %v751, %v753
      %v755 = vrot.slane %v747, %v754
      %v756 = vcombine.high %v755, %v755
      %v758 = vunpack.c.l.s4 1935823168
      %v759 = vunpack.c.0.s8 %v758
      %v760 = vlaneseq
      %v761 = vshrl.u32 %v760, 7
      %v762 = vsub.s32 %v759, %v761
      %v763 = vrot.slane %v755, %v762
      %v765 = vunpack.c.l.s4 1935823168
      %v766 = vunpack.c.0.s8 %v765
      %v767 = vlaneseq
      %v768 = vshrl.u32 %v767, 7
      %v769 = vsub.s32 %v766, %v768
      %v770 = vrot.slane %v756, %v769
      %773 = vst [vmem:[#allocation2 + $0x60] sm:$0x11] %v763
      %774 = vst.msk [vmem:[#allocation2 + $0x68] sm:$0x1] %vm423, %v770
      %v775 = vcombine.low %v755, %v755
      %v777 = vunpack.c.l.s4 1935823168
      %v778 = vunpack.c.0.s8 %v777
      %v779 = vlaneseq
      %v780 = vshrl.u32 %v779, 7
      %v781 = vsub.s32 %v778, %v780
      %v782 = vrot.slane %v775, %v781
      %783 = vrot.lane.b32.xlu0 %v782, 127
      %v784 = vpop.permute.xlu0 %783
      %785 = vrot.lane.b32.xlu0 %v763, 127
      %v786 = vpop.permute.xlu0 %785
      %v787 = vrot.slane %v784, 4
      %v788 = vrot.slane %v786, 4
      %v789 = vsel %vm439, %v787, %v788
      %v790 = vsel %vm441, %v784, %v789
      %793 = vst [vmem:[#allocation2 + $0x60] sm:$0x22] %v790
      %794 = vst.msk [vmem:[#allocation2 + $0x68] sm:$0x2] %vm446, %v786
      %v795 = vcombine.low %v747, %v747
      %v797 = vunpack.c.l.s4 1935823168
      %v798 = vunpack.c.0.s8 %v797
      %v799 = vlaneseq
      %v800 = vshrl.u32 %v799, 7
      %v801 = vsub.s32 %v798, %v800
      %v802 = vrot.slane %v795, %v801
      %v803 = vcombine.high %v802, %v802
      %v805 = vunpack.c.l.s4 1935823168
      %v806 = vunpack.c.0.s8 %v805
      %v807 = vlaneseq
      %v808 = vshrl.u32 %v807, 7
      %v809 = vsub.s32 %v806, %v808
      %v810 = vrot.slane %v802, %v809
      %v812 = vunpack.c.l.s4 1935823168
      %v813 = vunpack.c.0.s8 %v812
      %v814 = vlaneseq
      %v815 = vshrl.u32 %v814, 7
      %v816 = vsub.s32 %v813, %v815
      %v817 = vrot.slane %v803, %v816
      %818 = vrot.lane.b32.xlu0 %v810, 126
      %v819 = vpop.permute.xlu0 %818
      %820 = vrot.lane.b32.xlu0 %v817, 126
      %v821 = vpop.permute.xlu0 %820
      %v822 = vrot.slane %v819, 4
      %v823 = vrot.slane %v821, 4
      %v824 = vsel %vm439, %v822, %v823
      %v825 = vsel %vm478, %v819, %v824
      %828 = vst [vmem:[#allocation2 + $0x60] sm:$0x44] %v825
      %829 = vst.msk [vmem:[#allocation2 + $0x68] sm:$0x4] %vm483, %v821
      %v830 = vcombine.low %v802, %v802
      %v832 = vunpack.c.l.s4 1935823168
      %v833 = vunpack.c.0.s8 %v832
      %v834 = vlaneseq
      %v835 = vshrl.u32 %v834, 7
      %v836 = vsub.s32 %v833, %v835
      %v837 = vrot.slane %v830, %v836
      %838 = vrot.lane.b32.xlu0 %v837, 110
      %v839 = vpop.permute.xlu0 %838
      %840 = vrot.lane.b32.xlu0 %v810, 110
      %v841 = vpop.permute.xlu0 %840
      %v842 = vrot.slane %v839, 4
      %v843 = vrot.slane %v841, 4
      %v844 = vsel %vm439, %v842, %v843
      %v845 = vsel %vm500, %v839, %v844
      %848 = vst [vmem:[#allocation2 + $0x60] sm:$0x88] %v845
      %849 = vst.msk [vmem:[#allocation2 + $0x68] sm:$0x8] %vm505, %v841
      %850 = vrot.lane.b32.xlu0 %v763, 109
      %v851 = vpop.permute.xlu0 %850
      %852 = vrot.lane.b32.xlu0 %v770, 109
      %v853 = vpop.permute.xlu0 %852
      %v854 = vrot.slane %v851, 4
      %v855 = vrot.slane %v853, 4
      %v856 = vsel %vm439, %v854, %v855
      %v857 = vsel %vm514, %v851, %v856
      %860 = vst [vmem:[#allocation2 + $0x6c] sm:$0x11] %v857
      %861 = vst.msk [vmem:[#allocation2 + $0x74] sm:$0x1] %vm423, %v853
      %862 = vrot.lane.b32.xlu0 %v782, 108
      %v863 = vpop.permute.xlu0 %862
      %864 = vrot.lane.b32.xlu0 %v763, 108
      %v865 = vpop.permute.xlu0 %864
      %v866 = vrot.slane %v863, 4
      %v867 = vrot.slane %v865, 4
      %v868 = vsel %vm439, %v866, %v867
      %v869 = vsel %vm527, %v863, %v868
      %872 = vst [vmem:[#allocation2 + $0x6c] sm:$0x22] %v869
      %873 = vst.msk [vmem:[#allocation2 + $0x74] sm:$0x2] %vm446, %v865
      %874 = vrot.lane.b32.xlu0 %v810, 92
      %v875 = vpop.permute.xlu0 %874
      %876 = vrot.lane.b32.xlu0 %v817, 92
      %v877 = vpop.permute.xlu0 %876
      %v878 = vrot.slane %v875, 4
      %v879 = vrot.slane %v877, 4
      %v880 = vsel %vm439, %v878, %v879
      %v881 = vsel %vm540, %v875, %v880
      %884 = vst [vmem:[#allocation2 + $0x6c] sm:$0x44] %v881
      %885 = vst.msk [vmem:[#allocation2 + $0x74] sm:$0x4] %vm483, %v877
      %886 = vrot.lane.b32.xlu0 %v837, 91
      %v887 = vpop.permute.xlu0 %886
      %888 = vrot.lane.b32.xlu0 %v810, 91
      %v889 = vpop.permute.xlu0 %888
      %v890 = vrot.slane %v887, 4
      %v891 = vrot.slane %v889, 4
      %v892 = vsel %vm439, %v890, %v891
      %v893 = vsel %vm553, %v887, %v892
      %896 = vst [vmem:[#allocation2 + $0x6c] sm:$0x88] %v893
      %897 = vst.msk [vmem:[#allocation2 + $0x74] sm:$0x8] %vm505, %v889
      %898 = vrot.lane.b32.xlu0 %v763, 90
      %v899 = vpop.permute.xlu0 %898
      %900 = vrot.lane.b32.xlu0 %v770, 90
      %v901 = vpop.permute.xlu0 %900
      %v902 = vrot.slane %v899, 4
      %v903 = vrot.slane %v901, 4
      %v904 = vsel %vm439, %v902, %v903
      %v905 = vsel %vm566, %v899, %v904
      %908 = vst [vmem:[#allocation2 + $0x78] sm:$0x11] %v905
      %909 = vst.msk [vmem:[#allocation2 + $0x80] sm:$0x1] %vm423, %v901
      %910 = vst [vmem:[#allocation2 + $0x78] sm:$0xee] 0
      %911 = vst.msk [vmem:[#allocation2 + $0x80] sm:$0xe] %vm573, 0
      %912 = vst [vmem:[#allocation2 + $0x84] sm:$0xff] 0
      %913 = vst.msk [vmem:[#allocation2 + $0x8c] sm:$0xf] %vm576, 0
      %s914 = scalar_lea.vmem %s363, 9
      %v915 = vld [vmem:[%s914] sm:$0x7]
      %v918 = vunpack.c.l.s4 1935823168
      %v919 = vunpack.c.0.s8 %v918
      %v920 = vlaneseq
      %v921 = vshrl.u32 %v920, 7
      %v922 = vsub.s32 %v919, %v921
      %v923 = vrot.slane %v915, %v922
      %v924 = vcombine.high %v923, %v923
      %v926 = vunpack.c.l.s4 1935823168
      %v927 = vunpack.c.0.s8 %v926
      %v928 = vlaneseq
      %v929 = vshrl.u32 %v928, 7
      %v930 = vsub.s32 %v927, %v929
      %v931 = vrot.slane %v923, %v930
      %v933 = vunpack.c.l.s4 1935823168
      %v934 = vunpack.c.0.s8 %v933
      %v935 = vlaneseq
      %v936 = vshrl.u32 %v935, 7
      %v937 = vsub.s32 %v934, %v936
      %v938 = vrot.slane %v924, %v937
      %941 = vst [vmem:[#allocation2 + $0x90] sm:$0x11] %v931
      %942 = vst.msk [vmem:[#allocation2 + $0x98] sm:$0x1] %vm423, %v938
      %v943 = vcombine.low %v923, %v923
      %v945 = vunpack.c.l.s4 1935823168
      %v946 = vunpack.c.0.s8 %v945
      %v947 = vlaneseq
      %v948 = vshrl.u32 %v947, 7
      %v949 = vsub.s32 %v946, %v948
      %v950 = vrot.slane %v943, %v949
      %951 = vrot.lane.b32.xlu0 %v950, 127
      %v952 = vpop.permute.xlu0 %951
      %953 = vrot.lane.b32.xlu0 %v931, 127
      %v954 = vpop.permute.xlu0 %953
      %v955 = vrot.slane %v952, 4
      %v956 = vrot.slane %v954, 4
      %v957 = vsel %vm439, %v955, %v956
      %v958 = vsel %vm441, %v952, %v957
      %961 = vst [vmem:[#allocation2 + $0x90] sm:$0x22] %v958
      %962 = vst.msk [vmem:[#allocation2 + $0x98] sm:$0x2] %vm446, %v954
      %v963 = vcombine.low %v915, %v915
      %v965 = vunpack.c.l.s4 1935823168
      %v966 = vunpack.c.0.s8 %v965
      %v967 = vlaneseq
      %v968 = vshrl.u32 %v967, 7
      %v969 = vsub.s32 %v966, %v968
      %v970 = vrot.slane %v963, %v969
      %v971 = vcombine.high %v970, %v970
      %v973 = vunpack.c.l.s4 1935823168
      %v974 = vunpack.c.0.s8 %v973
      %v975 = vlaneseq
      %v976 = vshrl.u32 %v975, 7
      %v977 = vsub.s32 %v974, %v976
      %v978 = vrot.slane %v970, %v977
      %v980 = vunpack.c.l.s4 1935823168
      %v981 = vunpack.c.0.s8 %v980
      %v982 = vlaneseq
      %v983 = vshrl.u32 %v982, 7
      %v984 = vsub.s32 %v981, %v983
      %v985 = vrot.slane %v971, %v984
      %986 = vrot.lane.b32.xlu0 %v978, 126
      %v987 = vpop.permute.xlu0 %986
      %988 = vrot.lane.b32.xlu0 %v985, 126
      %v989 = vpop.permute.xlu0 %988
      %v990 = vrot.slane %v987, 4
      %v991 = vrot.slane %v989, 4
      %v992 = vsel %vm439, %v990, %v991
      %v993 = vsel %vm478, %v987, %v992
      %996 = vst [vmem:[#allocation2 + $0x90] sm:$0x44] %v993
      %997 = vst.msk [vmem:[#allocation2 + $0x98] sm:$0x4] %vm483, %v989
      %v998 = vcombine.low %v970, %v970
      %v1000 = vunpack.c.l.s4 1935823168
      %v1001 = vunpack.c.0.s8 %v1000
      %v1002 = vlaneseq
      %v1003 = vshrl.u32 %v1002, 7
      %v1004 = vsub.s32 %v1001, %v1003
      %v1005 = vrot.slane %v998, %v1004
      %1006 = vrot.lane.b32.xlu0 %v1005, 110
      %v1007 = vpop.permute.xlu0 %1006
      %1008 = vrot.lane.b32.xlu0 %v978, 110
      %v1009 = vpop.permute.xlu0 %1008
      %v1010 = vrot.slane %v1007, 4
      %v1011 = vrot.slane %v1009, 4
      %v1012 = vsel %vm439, %v1010, %v1011
      %v1013 = vsel %vm500, %v1007, %v1012
      %1016 = vst [vmem:[#allocation2 + $0x90] sm:$0x88] %v1013
      %1017 = vst.msk [vmem:[#allocation2 + $0x98] sm:$0x8] %vm505, %v1009
      %1018 = vrot.lane.b32.xlu0 %v931, 109
      %v1019 = vpop.permute.xlu0 %1018
      %1020 = vrot.lane.b32.xlu0 %v938, 109
      %v1021 = vpop.permute.xlu0 %1020
      %v1022 = vrot.slane %v1019, 4
      %v1023 = vrot.slane %v1021, 4
      %v1024 = vsel %vm439, %v1022, %v1023
      %v1025 = vsel %vm514, %v1019, %v1024
      %1028 = vst [vmem:[#allocation2 + $0x9c] sm:$0x11] %v1025
      %1029 = vst.msk [vmem:[#allocation2 + $0xa4] sm:$0x1] %vm423, %v1021
      %1030 = vrot.lane.b32.xlu0 %v950, 108
      %v1031 = vpop.permute.xlu0 %1030
      %1032 = vrot.lane.b32.xlu0 %v931, 108
      %v1033 = vpop.permute.xlu0 %1032
      %v1034 = vrot.slane %v1031, 4
      %v1035 = vrot.slane %v1033, 4
      %v1036 = vsel %vm439, %v1034, %v1035
      %v1037 = vsel %vm527, %v1031, %v1036
      %1040 = vst [vmem:[#allocation2 + $0x9c] sm:$0x22] %v1037
      %1041 = vst.msk [vmem:[#allocation2 + $0xa4] sm:$0x2] %vm446, %v1033
      %1042 = vrot.lane.b32.xlu0 %v978, 92
      %v1043 = vpop.permute.xlu0 %1042
      %1044 = vrot.lane.b32.xlu0 %v985, 92
      %v1045 = vpop.permute.xlu0 %1044
      %v1046 = vrot.slane %v1043, 4
      %v1047 = vrot.slane %v1045, 4
      %v1048 = vsel %vm439, %v1046, %v1047
      %v1049 = vsel %vm540, %v1043, %v1048
      %1052 = vst [vmem:[#allocation2 + $0x9c] sm:$0x44] %v1049
      %1053 = vst.msk [vmem:[#allocation2 + $0xa4] sm:$0x4] %vm483, %v1045
      %1054 = vrot.lane.b32.xlu0 %v1005, 91
      %v1055 = vpop.permute.xlu0 %1054
      %1056 = vrot.lane.b32.xlu0 %v978, 91
      %v1057 = vpop.permute.xlu0 %1056
      %v1058 = vrot.slane %v1055, 4
      %v1059 = vrot.slane %v1057, 4
      %v1060 = vsel %vm439, %v1058, %v1059
      %v1061 = vsel %vm553, %v1055, %v1060
      %1064 = vst [vmem:[#allocation2 + $0x9c] sm:$0x88] %v1061
      %1065 = vst.msk [vmem:[#allocation2 + $0xa4] sm:$0x8] %vm505, %v1057
      %1066 = vrot.lane.b32.xlu0 %v931, 90
      %v1067 = vpop.permute.xlu0 %1066
      %1068 = vrot.lane.b32.xlu0 %v938, 90
      %v1069 = vpop.permute.xlu0 %1068
      %v1070 = vrot.slane %v1067, 4
      %v1071 = vrot.slane %v1069, 4
      %v1072 = vsel %vm439, %v1070, %v1071
      %v1073 = vsel %vm566, %v1067, %v1072
      %1076 = vst [vmem:[#allocation2 + $0xa8] sm:$0x11] %v1073
      %1077 = vst.msk [vmem:[#allocation2 + $0xb0] sm:$0x1] %vm423, %v1069
      %1078 = vst [vmem:[#allocation2 + $0xa8] sm:$0xee] 0
      %1079 = vst.msk [vmem:[#allocation2 + $0xb0] sm:$0xe] %vm573, 0
      %1080 = vst [vmem:[#allocation2 + $0xb4] sm:$0xff] 0
      %1081 = vst.msk [vmem:[#allocation2 + $0xbc] sm:$0xf] %vm576, 0
      %s1082 = scalar_lea.vmem %s363, 12
      %v1083 = vld [vmem:[%s1082] sm:$0x7]
      %v1086 = vunpack.c.l.s4 1935823168
      %v1087 = vunpack.c.0.s8 %v1086
      %v1088 = vlaneseq
      %v1089 = vshrl.u32 %v1088, 7
      %v1090 = vsub.s32 %v1087, %v1089
      %v1091 = vrot.slane %v1083, %v1090
      %v1092 = vcombine.high %v1091, %v1091
      %v1094 = vunpack.c.l.s4 1935823168
      %v1095 = vunpack.c.0.s8 %v1094
      %v1096 = vlaneseq
      %v1097 = vshrl.u32 %v1096, 7
      %v1098 = vsub.s32 %v1095, %v1097
      %v1099 = vrot.slane %v1091, %v1098
      %v1101 = vunpack.c.l.s4 1935823168
      %v1102 = vunpack.c.0.s8 %v1101
      %v1103 = vlaneseq
      %v1104 = vshrl.u32 %v1103, 7
      %v1105 = vsub.s32 %v1102, %v1104
      %v1106 = vrot.slane %v1092, %v1105
      %1109 = vst [vmem:[#allocation2 + $0xc0] sm:$0x11] %v1099
      %1110 = vst.msk [vmem:[#allocation2 + $0xc8] sm:$0x1] %vm423, %v1106
      %v1111 = vcombine.low %v1091, %v1091
      %v1113 = vunpack.c.l.s4 1935823168
      %v1114 = vunpack.c.0.s8 %v1113
      %v1115 = vlaneseq
      %v1116 = vshrl.u32 %v1115, 7
      %v1117 = vsub.s32 %v1114, %v1116
      %v1118 = vrot.slane %v1111, %v1117
      %1119 = vrot.lane.b32.xlu0 %v1118, 127
      %v1120 = vpop.permute.xlu0 %1119
      %1121 = vrot.lane.b32.xlu0 %v1099, 127
      %v1122 = vpop.permute.xlu0 %1121
      %v1123 = vrot.slane %v1120, 4
      %v1124 = vrot.slane %v1122, 4
      %v1125 = vsel %vm439, %v1123, %v1124
      %v1126 = vsel %vm441, %v1120, %v1125
      %1129 = vst [vmem:[#allocation2 + $0xc0] sm:$0x22] %v1126
      %1130 = vst.msk [vmem:[#allocation2 + $0xc8] sm:$0x2] %vm446, %v1122
      %v1131 = vcombine.low %v1083, %v1083
      %v1133 = vunpack.c.l.s4 1935823168
      %v1134 = vunpack.c.0.s8 %v1133
      %v1135 = vlaneseq
      %v1136 = vshrl.u32 %v1135, 7
      %v1137 = vsub.s32 %v1134, %v1136
      %v1138 = vrot.slane %v1131, %v1137
      %v1139 = vcombine.high %v1138, %v1138
      %v1141 = vunpack.c.l.s4 1935823168
      %v1142 = vunpack.c.0.s8 %v1141
      %v1143 = vlaneseq
      %v1144 = vshrl.u32 %v1143, 7
      %v1145 = vsub.s32 %v1142, %v1144
      %v1146 = vrot.slane %v1138, %v1145
      %v1148 = vunpack.c.l.s4 1935823168
      %v1149 = vunpack.c.0.s8 %v1148
      %v1150 = vlaneseq
      %v1151 = vshrl.u32 %v1150, 7
      %v1152 = vsub.s32 %v1149, %v1151
      %v1153 = vrot.slane %v1139, %v1152
      %1154 = vrot.lane.b32.xlu0 %v1146, 126
      %v1155 = vpop.permute.xlu0 %1154
      %1156 = vrot.lane.b32.xlu0 %v1153, 126
      %v1157 = vpop.permute.xlu0 %1156
      %v1158 = vrot.slane %v1155, 4
      %v1159 = vrot.slane %v1157, 4
      %v1160 = vsel %vm439, %v1158, %v1159
      %v1161 = vsel %vm478, %v1155, %v1160
      %1164 = vst [vmem:[#allocation2 + $0xc0] sm:$0x44] %v1161
      %1165 = vst.msk [vmem:[#allocation2 + $0xc8] sm:$0x4] %vm483, %v1157
      %v1166 = vcombine.low %v1138, %v1138
      %v1168 = vunpack.c.l.s4 1935823168
      %v1169 = vunpack.c.0.s8 %v1168
      %v1170 = vlaneseq
      %v1171 = vshrl.u32 %v1170, 7
      %v1172 = vsub.s32 %v1169, %v1171
      %v1173 = vrot.slane %v1166, %v1172
      %1174 = vrot.lane.b32.xlu0 %v1173, 110
      %v1175 = vpop.permute.xlu0 %1174
      %1176 = vrot.lane.b32.xlu0 %v1146, 110
      %v1177 = vpop.permute.xlu0 %1176
      %v1178 = vrot.slane %v1175, 4
      %v1179 = vrot.slane %v1177, 4
      %v1180 = vsel %vm439, %v1178, %v1179
      %v1181 = vsel %vm500, %v1175, %v1180
      %1184 = vst [vmem:[#allocation2 + $0xc0] sm:$0x88] %v1181
      %1185 = vst.msk [vmem:[#allocation2 + $0xc8] sm:$0x8] %vm505, %v1177
      %1186 = vrot.lane.b32.xlu0 %v1099, 109
      %v1187 = vpop.permute.xlu0 %1186
      %1188 = vrot.lane.b32.xlu0 %v1106, 109
      %v1189 = vpop.permute.xlu0 %1188
      %v1190 = vrot.slane %v1187, 4
      %v1191 = vrot.slane %v1189, 4
      %v1192 = vsel %vm439, %v1190, %v1191
      %v1193 = vsel %vm514, %v1187, %v1192
      %1196 = vst [vmem:[#allocation2 + $0xcc] sm:$0x11] %v1193
      %1197 = vst.msk [vmem:[#allocation2 + $0xd4] sm:$0x1] %vm423, %v1189
      %1198 = vrot.lane.b32.xlu0 %v1118, 108
      %v1199 = vpop.permute.xlu0 %1198
      %1200 = vrot.lane.b32.xlu0 %v1099, 108
      %v1201 = vpop.permute.xlu0 %1200
      %v1202 = vrot.slane %v1199, 4
      %v1203 = vrot.slane %v1201, 4
      %v1204 = vsel %vm439, %v1202, %v1203
      %v1205 = vsel %vm527, %v1199, %v1204
      %1208 = vst [vmem:[#allocation2 + $0xcc] sm:$0x22] %v1205
      %1209 = vst.msk [vmem:[#allocation2 + $0xd4] sm:$0x2] %vm446, %v1201
      %1210 = vrot.lane.b32.xlu0 %v1146, 92
      %v1211 = vpop.permute.xlu0 %1210
      %1212 = vrot.lane.b32.xlu0 %v1153, 92
      %v1213 = vpop.permute.xlu0 %1212
      %v1214 = vrot.slane %v1211, 4
      %v1215 = vrot.slane %v1213, 4
      %v1216 = vsel %vm439, %v1214, %v1215
      %v1217 = vsel %vm540, %v1211, %v1216
      %1220 = vst [vmem:[#allocation2 + $0xcc] sm:$0x44] %v1217
      %1221 = vst.msk [vmem:[#allocation2 + $0xd4] sm:$0x4] %vm483, %v1213
      %1222 = vrot.lane.b32.xlu0 %v1173, 91
      %v1223 = vpop.permute.xlu0 %1222
      %1224 = vrot.lane.b32.xlu0 %v1146, 91
      %v1225 = vpop.permute.xlu0 %1224
      %v1226 = vrot.slane %v1223, 4
      %v1227 = vrot.slane %v1225, 4
      %v1228 = vsel %vm439, %v1226, %v1227
      %v1229 = vsel %vm553, %v1223, %v1228
      %1232 = vst [vmem:[#allocation2 + $0xcc] sm:$0x88] %v1229
      %1233 = vst.msk [vmem:[#allocation2 + $0xd4] sm:$0x8] %vm505, %v1225
      %1234 = vrot.lane.b32.xlu0 %v1099, 90
      %v1235 = vpop.permute.xlu0 %1234
      %1236 = vrot.lane.b32.xlu0 %v1106, 90
      %v1237 = vpop.permute.xlu0 %1236
      %v1238 = vrot.slane %v1235, 4
      %v1239 = vrot.slane %v1237, 4
      %v1240 = vsel %vm439, %v1238, %v1239
      %v1241 = vsel %vm566, %v1235, %v1240
      %1244 = vst [vmem:[#allocation2 + $0xd8] sm:$0x11] %v1241
      %1245 = vst.msk [vmem:[#allocation2 + $0xe0] sm:$0x1] %vm423, %v1237
      %1246 = vst [vmem:[#allocation2 + $0xd8] sm:$0xee] 0
      %1247 = vst.msk [vmem:[#allocation2 + $0xe0] sm:$0xe] %vm573, 0
      %1248 = vst [vmem:[#allocation2 + $0xe4] sm:$0xff] 0
      %1249 = vst.msk [vmem:[#allocation2 + $0xec] sm:$0xf] %vm576, 0
      %s1250 = scalar_lea.vmem %s363, 15
      %v1251 = vld [vmem:[%s1250] sm:$0x7]
      %v1254 = vunpack.c.l.s4 1935823168
      %v1255 = vunpack.c.0.s8 %v1254
      %v1256 = vlaneseq
      %v1257 = vshrl.u32 %v1256, 7
      %v1258 = vsub.s32 %v1255, %v1257
      %v1259 = vrot.slane %v1251, %v1258
      %v1260 = vcombine.high %v1259, %v1259
      %v1262 = vunpack.c.l.s4 1935823168
      %v1263 = vunpack.c.0.s8 %v1262
      %v1264 = vlaneseq
      %v1265 = vshrl.u32 %v1264, 7
      %v1266 = vsub.s32 %v1263, %v1265
      %v1267 = vrot.slane %v1259, %v1266
      %v1269 = vunpack.c.l.s4 1935823168
      %v1270 = vunpack.c.0.s8 %v1269
      %v1271 = vlaneseq
      %v1272 = vshrl.u32 %v1271, 7
      %v1273 = vsub.s32 %v1270, %v1272
      %v1274 = vrot.slane %v1260, %v1273
      %1277 = vst [vmem:[#allocation2 + $0xf0] sm:$0x11] %v1267
      %1278 = vst.msk [vmem:[#allocation2 + $0xf8] sm:$0x1] %vm423, %v1274
      %v1279 = vcombine.low %v1259, %v1259
      %v1281 = vunpack.c.l.s4 1935823168
      %v1282 = vunpack.c.0.s8 %v1281
      %v1283 = vlaneseq
      %v1284 = vshrl.u32 %v1283, 7
      %v1285 = vsub.s32 %v1282, %v1284
      %v1286 = vrot.slane %v1279, %v1285
      %1287 = vrot.lane.b32.xlu0 %v1286, 127
      %v1288 = vpop.permute.xlu0 %1287
      %1289 = vrot.lane.b32.xlu0 %v1267, 127
      %v1290 = vpop.permute.xlu0 %1289
      %v1291 = vrot.slane %v1288, 4
      %v1292 = vrot.slane %v1290, 4
      %v1293 = vsel %vm439, %v1291, %v1292
      %v1294 = vsel %vm441, %v1288, %v1293
      %1297 = vst [vmem:[#allocation2 + $0xf0] sm:$0x22] %v1294
      %1298 = vst.msk [vmem:[#allocation2 + $0xf8] sm:$0x2] %vm446, %v1290
      %v1299 = vcombine.low %v1251, %v1251
      %v1301 = vunpack.c.l.s4 1935823168
      %v1302 = vunpack.c.0.s8 %v1301
      %v1303 = vlaneseq
      %v1304 = vshrl.u32 %v1303, 7
      %v1305 = vsub.s32 %v1302, %v1304
      %v1306 = vrot.slane %v1299, %v1305
      %v1307 = vcombine.high %v1306, %v1306
      %v1309 = vunpack.c.l.s4 1935823168
      %v1310 = vunpack.c.0.s8 %v1309
      %v1311 = vlaneseq
      %v1312 = vshrl.u32 %v1311, 7
      %v1313 = vsub.s32 %v1310, %v1312
      %v1314 = vrot.slane %v1306, %v1313
      %v1316 = vunpack.c.l.s4 1935823168
      %v1317 = vunpack.c.0.s8 %v1316
      %v1318 = vlaneseq
      %v1319 = vshrl.u32 %v1318, 7
      %v1320 = vsub.s32 %v1317, %v1319
      %v1321 = vrot.slane %v1307, %v1320
      %1322 = vrot.lane.b32.xlu0 %v1314, 126
      %v1323 = vpop.permute.xlu0 %1322
      %1324 = vrot.lane.b32.xlu0 %v1321, 126
      %v1325 = vpop.permute.xlu0 %1324
      %v1326 = vrot.slane %v1323, 4
      %v1327 = vrot.slane %v1325, 4
      %v1328 = vsel %vm439, %v1326, %v1327
      %v1329 = vsel %vm478, %v1323, %v1328
      %1332 = vst [vmem:[#allocation2 + $0xf0] sm:$0x44] %v1329
      %1333 = vst.msk [vmem:[#allocation2 + $0xf8] sm:$0x4] %vm483, %v1325
      %v1334 = vcombine.low %v1306, %v1306
      %v1336 = vunpack.c.l.s4 1935823168
      %v1337 = vunpack.c.0.s8 %v1336
      %v1338 = vlaneseq
      %v1339 = vshrl.u32 %v1338, 7
      %v1340 = vsub.s32 %v1337, %v1339
      %v1341 = vrot.slane %v1334, %v1340
      %1342 = vrot.lane.b32.xlu0 %v1341, 110
      %v1343 = vpop.permute.xlu0 %1342
      %1344 = vrot.lane.b32.xlu0 %v1314, 110
      %v1345 = vpop.permute.xlu0 %1344
      %v1346 = vrot.slane %v1343, 4
      %v1347 = vrot.slane %v1345, 4
      %v1348 = vsel %vm439, %v1346, %v1347
      %v1349 = vsel %vm500, %v1343, %v1348
      %1352 = vst [vmem:[#allocation2 + $0xf0] sm:$0x88] %v1349
      %1353 = vst.msk [vmem:[#allocation2 + $0xf8] sm:$0x8] %vm505, %v1345
      %1354 = vrot.lane.b32.xlu0 %v1267, 109
      %v1355 = vpop.permute.xlu0 %1354
      %1356 = vrot.lane.b32.xlu0 %v1274, 109
      %v1357 = vpop.permute.xlu0 %1356
      %v1358 = vrot.slane %v1355, 4
      %v1359 = vrot.slane %v1357, 4
      %v1360 = vsel %vm439, %v1358, %v1359
      %v1361 = vsel %vm514, %v1355, %v1360
      %1364 = vst [vmem:[#allocation2 + $0xfc] sm:$0x11] %v1361
      %1365 = vst.msk [vmem:[#allocation2 + $0x104] sm:$0x1] %vm423, %v1357
      %1366 = vrot.lane.b32.xlu0 %v1286, 108
      %v1367 = vpop.permute.xlu0 %1366
      %1368 = vrot.lane.b32.xlu0 %v1267, 108
      %v1369 = vpop.permute.xlu0 %1368
      %v1370 = vrot.slane %v1367, 4
      %v1371 = vrot.slane %v1369, 4
      %v1372 = vsel %vm439, %v1370, %v1371
      %v1373 = vsel %vm527, %v1367, %v1372
      %1376 = vst [vmem:[#allocation2 + $0xfc] sm:$0x22] %v1373
      %1377 = vst.msk [vmem:[#allocation2 + $0x104] sm:$0x2] %vm446, %v1369
      %1378 = vrot.lane.b32.xlu0 %v1314, 92
      %v1379 = vpop.permute.xlu0 %1378
      %1380 = vrot.lane.b32.xlu0 %v1321, 92
      %v1381 = vpop.permute.xlu0 %1380
      %v1382 = vrot.slane %v1379, 4
      %v1383 = vrot.slane %v1381, 4
      %v1384 = vsel %vm439, %v1382, %v1383
      %v1385 = vsel %vm540, %v1379, %v1384
      %1388 = vst [vmem:[#allocation2 + $0xfc] sm:$0x44] %v1385
      %1389 = vst.msk [vmem:[#allocation2 + $0x104] sm:$0x4] %vm483, %v1381
      %1390 = vrot.lane.b32.xlu0 %v1341, 91
      %v1391 = vpop.permute.xlu0 %1390
      %1392 = vrot.lane.b32.xlu0 %v1314, 91
      %v1393 = vpop.permute.xlu0 %1392
      %v1394 = vrot.slane %v1391, 4
      %v1395 = vrot.slane %v1393, 4
      %v1396 = vsel %vm439, %v1394, %v1395
      %v1397 = vsel %vm553, %v1391, %v1396
      %1400 = vst [vmem:[#allocation2 + $0xfc] sm:$0x88] %v1397
      %1401 = vst.msk [vmem:[#allocation2 + $0x104] sm:$0x8] %vm505, %v1393
      %1402 = vrot.lane.b32.xlu0 %v1267, 90
      %v1403 = vpop.permute.xlu0 %1402
      %1404 = vrot.lane.b32.xlu0 %v1274, 90
      %v1405 = vpop.permute.xlu0 %1404
      %v1406 = vrot.slane %v1403, 4
      %v1407 = vrot.slane %v1405, 4
      %v1408 = vsel %vm439, %v1406, %v1407
      %v1409 = vsel %vm566, %v1403, %v1408
      %1412 = vst [vmem:[#allocation2 + $0x108] sm:$0x11] %v1409
      %1413 = vst.msk [vmem:[#allocation2 + $0x110] sm:$0x1] %vm423, %v1405
      %1414 = vst [vmem:[#allocation2 + $0x108] sm:$0xee] 0
      %1415 = vst.msk [vmem:[#allocation2 + $0x110] sm:$0xe] %vm573, 0
      %1416 = vst [vmem:[#allocation2 + $0x114] sm:$0xff] 0
      %1417 = vst.msk [vmem:[#allocation2 + $0x11c] sm:$0xf] %vm576, 0
      %s1418 = scalar_lea.vmem %s363, 18
      %v1419 = vld [vmem:[%s1418] sm:$0x7]
      %v1422 = vunpack.c.l.s4 1935823168
      %v1423 = vunpack.c.0.s8 %v1422
      %v1424 = vlaneseq
      %v1425 = vshrl.u32 %v1424, 7
      %v1426 = vsub.s32 %v1423, %v1425
      %v1427 = vrot.slane %v1419, %v1426
      %v1428 = vcombine.high %v1427, %v1427
      %v1430 = vunpack.c.l.s4 1935823168
      %v1431 = vunpack.c.0.s8 %v1430
      %v1432 = vlaneseq
      %v1433 = vshrl.u32 %v1432, 7
      %v1434 = vsub.s32 %v1431, %v1433
      %v1435 = vrot.slane %v1427, %v1434
      %v1437 = vunpack.c.l.s4 1935823168
      %v1438 = vunpack.c.0.s8 %v1437
      %v1439 = vlaneseq
      %v1440 = vshrl.u32 %v1439, 7
      %v1441 = vsub.s32 %v1438, %v1440
      %v1442 = vrot.slane %v1428, %v1441
      %1445 = vst [vmem:[#allocation2 + $0x120] sm:$0x11] %v1435
      %1446 = vst.msk [vmem:[#allocation2 + $0x128] sm:$0x1] %vm423, %v1442
      %v1447 = vcombine.low %v1427, %v1427
      %v1449 = vunpack.c.l.s4 1935823168
      %v1450 = vunpack.c.0.s8 %v1449
      %v1451 = vlaneseq
      %v1452 = vshrl.u32 %v1451, 7
      %v1453 = vsub.s32 %v1450, %v1452
      %v1454 = vrot.slane %v1447, %v1453
      %1455 = vrot.lane.b32.xlu0 %v1454, 127
      %v1456 = vpop.permute.xlu0 %1455
      %1457 = vrot.lane.b32.xlu0 %v1435, 127
      %v1458 = vpop.permute.xlu0 %1457
      %v1459 = vrot.slane %v1456, 4
      %v1460 = vrot.slane %v1458, 4
      %v1461 = vsel %vm439, %v1459, %v1460
      %v1462 = vsel %vm441, %v1456, %v1461
      %1465 = vst [vmem:[#allocation2 + $0x120] sm:$0x22] %v1462
      %1466 = vst.msk [vmem:[#allocation2 + $0x128] sm:$0x2] %vm446, %v1458
      %v1467 = vcombine.low %v1419, %v1419
      %v1469 = vunpack.c.l.s4 1935823168
      %v1470 = vunpack.c.0.s8 %v1469
      %v1471 = vlaneseq
      %v1472 = vshrl.u32 %v1471, 7
      %v1473 = vsub.s32 %v1470, %v1472
      %v1474 = vrot.slane %v1467, %v1473
      %v1475 = vcombine.high %v1474, %v1474
      %v1477 = vunpack.c.l.s4 1935823168
      %v1478 = vunpack.c.0.s8 %v1477
      %v1479 = vlaneseq
      %v1480 = vshrl.u32 %v1479, 7
      %v1481 = vsub.s32 %v1478, %v1480
      %v1482 = vrot.slane %v1474, %v1481
      %v1484 = vunpack.c.l.s4 1935823168
      %v1485 = vunpack.c.0.s8 %v1484
      %v1486 = vlaneseq
      %v1487 = vshrl.u32 %v1486, 7
      %v1488 = vsub.s32 %v1485, %v1487
      %v1489 = vrot.slane %v1475, %v1488
      %1490 = vrot.lane.b32.xlu0 %v1482, 126
      %v1491 = vpop.permute.xlu0 %1490
      %1492 = vrot.lane.b32.xlu0 %v1489, 126
      %v1493 = vpop.permute.xlu0 %1492
      %v1494 = vrot.slane %v1491, 4
      %v1495 = vrot.slane %v1493, 4
      %v1496 = vsel %vm439, %v1494, %v1495
      %v1497 = vsel %vm478, %v1491, %v1496
      %1500 = vst [vmem:[#allocation2 + $0x120] sm:$0x44] %v1497
      %1501 = vst.msk [vmem:[#allocation2 + $0x128] sm:$0x4] %vm483, %v1493
      %v1502 = vcombine.low %v1474, %v1474
      %v1504 = vunpack.c.l.s4 1935823168
      %v1505 = vunpack.c.0.s8 %v1504
      %v1506 = vlaneseq
      %v1507 = vshrl.u32 %v1506, 7
      %v1508 = vsub.s32 %v1505, %v1507
      %v1509 = vrot.slane %v1502, %v1508
      %1510 = vrot.lane.b32.xlu0 %v1509, 110
      %v1511 = vpop.permute.xlu0 %1510
      %1512 = vrot.lane.b32.xlu0 %v1482, 110
      %v1513 = vpop.permute.xlu0 %1512
      %v1514 = vrot.slane %v1511, 4
      %v1515 = vrot.slane %v1513, 4
      %v1516 = vsel %vm439, %v1514, %v1515
      %v1517 = vsel %vm500, %v1511, %v1516
      %1520 = vst [vmem:[#allocation2 + $0x120] sm:$0x88] %v1517
      %1521 = vst.msk [vmem:[#allocation2 + $0x128] sm:$0x8] %vm505, %v1513
      %1522 = vrot.lane.b32.xlu0 %v1435, 109
      %v1523 = vpop.permute.xlu0 %1522
      %1524 = vrot.lane.b32.xlu0 %v1442, 109
      %v1525 = vpop.permute.xlu0 %1524
      %v1526 = vrot.slane %v1523, 4
      %v1527 = vrot.slane %v1525, 4
      %v1528 = vsel %vm439, %v1526, %v1527
      %v1529 = vsel %vm514, %v1523, %v1528
      %1532 = vst [vmem:[#allocation2 + $0x12c] sm:$0x11] %v1529
      %1533 = vst.msk [vmem:[#allocation2 + $0x134] sm:$0x1] %vm423, %v1525
      %1534 = vrot.lane.b32.xlu0 %v1454, 108
      %v1535 = vpop.permute.xlu0 %1534
      %1536 = vrot.lane.b32.xlu0 %v1435, 108
      %v1537 = vpop.permute.xlu0 %1536
      %v1538 = vrot.slane %v1535, 4
      %v1539 = vrot.slane %v1537, 4
      %v1540 = vsel %vm439, %v1538, %v1539
      %v1541 = vsel %vm527, %v1535, %v1540
      %1544 = vst [vmem:[#allocation2 + $0x12c] sm:$0x22] %v1541
      %1545 = vst.msk [vmem:[#allocation2 + $0x134] sm:$0x2] %vm446, %v1537
      %1546 = vrot.lane.b32.xlu0 %v1482, 92
      %v1547 = vpop.permute.xlu0 %1546
      %1548 = vrot.lane.b32.xlu0 %v1489, 92
      %v1549 = vpop.permute.xlu0 %1548
      %v1550 = vrot.slane %v1547, 4
      %v1551 = vrot.slane %v1549, 4
      %v1552 = vsel %vm439, %v1550, %v1551
      %v1553 = vsel %vm540, %v1547, %v1552
      %1556 = vst [vmem:[#allocation2 + $0x12c] sm:$0x44] %v1553
      %1557 = vst.msk [vmem:[#allocation2 + $0x134] sm:$0x4] %vm483, %v1549
      %1558 = vrot.lane.b32.xlu0 %v1509, 91
      %v1559 = vpop.permute.xlu0 %1558
      %1560 = vrot.lane.b32.xlu0 %v1482, 91
      %v1561 = vpop.permute.xlu0 %1560
      %v1562 = vrot.slane %v1559, 4
      %v1563 = vrot.slane %v1561, 4
      %v1564 = vsel %vm439, %v1562, %v1563
      %v1565 = vsel %vm553, %v1559, %v1564
      %1568 = vst [vmem:[#allocation2 + $0x12c] sm:$0x88] %v1565
      %1569 = vst.msk [vmem:[#allocation2 + $0x134] sm:$0x8] %vm505, %v1561
      %1570 = vrot.lane.b32.xlu0 %v1435, 90
      %v1571 = vpop.permute.xlu0 %1570
      %1572 = vrot.lane.b32.xlu0 %v1442, 90
      %v1573 = vpop.permute.xlu0 %1572
      %v1574 = vrot.slane %v1571, 4
      %v1575 = vrot.slane %v1573, 4
      %v1576 = vsel %vm439, %v1574, %v1575
      %v1577 = vsel %vm566, %v1571, %v1576
      %1580 = vst [vmem:[#allocation2 + $0x138] sm:$0x11] %v1577
      %1581 = vst.msk [vmem:[#allocation2 + $0x140] sm:$0x1] %vm423, %v1573
      %1582 = vst [vmem:[#allocation2 + $0x138] sm:$0xee] 0
      %1583 = vst.msk [vmem:[#allocation2 + $0x140] sm:$0xe] %vm573, 0
      %1584 = vst [vmem:[#allocation2 + $0x144] sm:$0xff] 0
      %1585 = vst.msk [vmem:[#allocation2 + $0x14c] sm:$0xf] %vm576, 0
      %s1586 = scalar_lea.vmem %s363, 21
      %v1587 = vld [vmem:[%s1586] sm:$0x7]
      %v1590 = vunpack.c.l.s4 1935823168
      %v1591 = vunpack.c.0.s8 %v1590
      %v1592 = vlaneseq
      %v1593 = vshrl.u32 %v1592, 7
      %v1594 = vsub.s32 %v1591, %v1593
      %v1595 = vrot.slane %v1587, %v1594
      %v1596 = vcombine.high %v1595, %v1595
      %v1598 = vunpack.c.l.s4 1935823168
      %v1599 = vunpack.c.0.s8 %v1598
      %v1600 = vlaneseq
      %v1601 = vshrl.u32 %v1600, 7
      %v1602 = vsub.s32 %v1599, %v1601
      %v1603 = vrot.slane %v1595, %v1602
      %v1605 = vunpack.c.l.s4 1935823168
      %v1606 = vunpack.c.0.s8 %v1605
      %v1607 = vlaneseq
      %v1608 = vshrl.u32 %v1607, 7
      %v1609 = vsub.s32 %v1606, %v1608
      %v1610 = vrot.slane %v1596, %v1609
      %1613 = vst [vmem:[#allocation2 + $0x150] sm:$0x11] %v1603
      %1614 = vst.msk [vmem:[#allocation2 + $0x158] sm:$0x1] %vm423, %v1610
      %v1615 = vcombine.low %v1595, %v1595
      %v1617 = vunpack.c.l.s4 1935823168
      %v1618 = vunpack.c.0.s8 %v1617
      %v1619 = vlaneseq
      %v1620 = vshrl.u32 %v1619, 7
      %v1621 = vsub.s32 %v1618, %v1620
      %v1622 = vrot.slane %v1615, %v1621
      %1623 = vrot.lane.b32.xlu0 %v1622, 127
      %v1624 = vpop.permute.xlu0 %1623
      %1625 = vrot.lane.b32.xlu0 %v1603, 127
      %v1626 = vpop.permute.xlu0 %1625
      %v1627 = vrot.slane %v1624, 4
      %v1628 = vrot.slane %v1626, 4
      %v1629 = vsel %vm439, %v1627, %v1628
      %v1630 = vsel %vm441, %v1624, %v1629
      %1633 = vst [vmem:[#allocation2 + $0x150] sm:$0x22] %v1630
      %1634 = vst.msk [vmem:[#allocation2 + $0x158] sm:$0x2] %vm446, %v1626
      %v1635 = vcombine.low %v1587, %v1587
      %v1637 = vunpack.c.l.s4 1935823168
      %v1638 = vunpack.c.0.s8 %v1637
      %v1639 = vlaneseq
      %v1640 = vshrl.u32 %v1639, 7
      %v1641 = vsub.s32 %v1638, %v1640
      %v1642 = vrot.slane %v1635, %v1641
      %v1643 = vcombine.high %v1642, %v1642
      %v1645 = vunpack.c.l.s4 1935823168
      %v1646 = vunpack.c.0.s8 %v1645
      %v1647 = vlaneseq
      %v1648 = vshrl.u32 %v1647, 7
      %v1649 = vsub.s32 %v1646, %v1648
      %v1650 = vrot.slane %v1642, %v1649
      %v1652 = vunpack.c.l.s4 1935823168
      %v1653 = vunpack.c.0.s8 %v1652
      %v1654 = vlaneseq
      %v1655 = vshrl.u32 %v1654, 7
      %v1656 = vsub.s32 %v1653, %v1655
      %v1657 = vrot.slane %v1643, %v1656
      %1658 = vrot.lane.b32.xlu0 %v1650, 126
      %v1659 = vpop.permute.xlu0 %1658
      %1660 = vrot.lane.b32.xlu0 %v1657, 126
      %v1661 = vpop.permute.xlu0 %1660
      %v1662 = vrot.slane %v1659, 4
      %v1663 = vrot.slane %v1661, 4
      %v1664 = vsel %vm439, %v1662, %v1663
      %v1665 = vsel %vm478, %v1659, %v1664
      %1668 = vst [vmem:[#allocation2 + $0x150] sm:$0x44] %v1665
      %1669 = vst.msk [vmem:[#allocation2 + $0x158] sm:$0x4] %vm483, %v1661
      %v1670 = vcombine.low %v1642, %v1642
      %v1672 = vunpack.c.l.s4 1935823168
      %v1673 = vunpack.c.0.s8 %v1672
      %v1674 = vlaneseq
      %v1675 = vshrl.u32 %v1674, 7
      %v1676 = vsub.s32 %v1673, %v1675
      %v1677 = vrot.slane %v1670, %v1676
      %1678 = vrot.lane.b32.xlu0 %v1677, 110
      %v1679 = vpop.permute.xlu0 %1678
      %1680 = vrot.lane.b32.xlu0 %v1650, 110
      %v1681 = vpop.permute.xlu0 %1680
      %v1682 = vrot.slane %v1679, 4
      %v1683 = vrot.slane %v1681, 4
      %v1684 = vsel %vm439, %v1682, %v1683
      %v1685 = vsel %vm500, %v1679, %v1684
      %1688 = vst [vmem:[#allocation2 + $0x150] sm:$0x88] %v1685
      %1689 = vst.msk [vmem:[#allocation2 + $0x158] sm:$0x8] %vm505, %v1681
      %1690 = vrot.lane.b32.xlu0 %v1603, 109
      %v1691 = vpop.permute.xlu0 %1690
      %1692 = vrot.lane.b32.xlu0 %v1610, 109
      %v1693 = vpop.permute.xlu0 %1692
      %v1694 = vrot.slane %v1691, 4
      %v1695 = vrot.slane %v1693, 4
      %v1696 = vsel %vm439, %v1694, %v1695
      %v1697 = vsel %vm514, %v1691, %v1696
      %1700 = vst [vmem:[#allocation2 + $0x15c] sm:$0x11] %v1697
      %1701 = vst.msk [vmem:[#allocation2 + $0x164] sm:$0x1] %vm423, %v1693
      %1702 = vrot.lane.b32.xlu0 %v1622, 108
      %v1703 = vpop.permute.xlu0 %1702
      %1704 = vrot.lane.b32.xlu0 %v1603, 108
      %v1705 = vpop.permute.xlu0 %1704
      %v1706 = vrot.slane %v1703, 4
      %v1707 = vrot.slane %v1705, 4
      %v1708 = vsel %vm439, %v1706, %v1707
      %v1709 = vsel %vm527, %v1703, %v1708
      %1712 = vst [vmem:[#allocation2 + $0x15c] sm:$0x22] %v1709
      %1713 = vst.msk [vmem:[#allocation2 + $0x164] sm:$0x2] %vm446, %v1705
      %1714 = vrot.lane.b32.xlu0 %v1650, 92
      %v1715 = vpop.permute.xlu0 %1714
      %1716 = vrot.lane.b32.xlu0 %v1657, 92
      %v1717 = vpop.permute.xlu0 %1716
      %v1718 = vrot.slane %v1715, 4
      %v1719 = vrot.slane %v1717, 4
      %v1720 = vsel %vm439, %v1718, %v1719
      %v1721 = vsel %vm540, %v1715, %v1720
      %1724 = vst [vmem:[#allocation2 + $0x15c] sm:$0x44] %v1721
      %1725 = vst.msk [vmem:[#allocation2 + $0x164] sm:$0x4] %vm483, %v1717
      %1726 = vrot.lane.b32.xlu0 %v1677, 91
      %v1727 = vpop.permute.xlu0 %1726
      %1728 = vrot.lane.b32.xlu0 %v1650, 91
      %v1729 = vpop.permute.xlu0 %1728
      %v1730 = vrot.slane %v1727, 4
      %v1731 = vrot.slane %v1729, 4
      %v1732 = vsel %vm439, %v1730, %v1731
      %v1733 = vsel %vm553, %v1727, %v1732
      %1736 = vst [vmem:[#allocation2 + $0x15c] sm:$0x88] %v1733
      %1737 = vst.msk [vmem:[#allocation2 + $0x164] sm:$0x8] %vm505, %v1729
      %1738 = vrot.lane.b32.xlu0 %v1603, 90
      %v1739 = vpop.permute.xlu0 %1738
      %1740 = vrot.lane.b32.xlu0 %v1610, 90
      %v1741 = vpop.permute.xlu0 %1740
      %v1742 = vrot.slane %v1739, 4
      %v1743 = vrot.slane %v1741, 4
      %v1744 = vsel %vm439, %v1742, %v1743
      %v1745 = vsel %vm566, %v1739, %v1744
      %1748 = vst [vmem:[#allocation2 + $0x168] sm:$0x11] %v1745
      %1749 = vst.msk [vmem:[#allocation2 + $0x170] sm:$0x1] %vm423, %v1741
      %1750 = vst [vmem:[#allocation2 + $0x168] sm:$0xee] 0
      %1751 = vst.msk [vmem:[#allocation2 + $0x170] sm:$0xe] %vm573, 0
      %1752 = vst [vmem:[#allocation2 + $0x174] sm:$0xff] 0
      %1753 = vst.msk [vmem:[#allocation2 + $0x17c] sm:$0xf] %vm576, 0
      %v1754 = vld [vmem:[%s380] sm:$0x7]
      %v1757 = vunpack.c.l.s4 1935823168
      %v1758 = vunpack.c.0.s8 %v1757
      %v1759 = vlaneseq
      %v1760 = vshrl.u32 %v1759, 7
      %v1761 = vsub.s32 %v1758, %v1760
      %v1762 = vrot.slane %v1754, %v1761
      %v1763 = vcombine.high %v1762, %v1762
      %v1765 = vunpack.c.l.s4 1935823168
      %v1766 = vunpack.c.0.s8 %v1765
      %v1767 = vlaneseq
      %v1768 = vshrl.u32 %v1767, 7
      %v1769 = vsub.s32 %v1766, %v1768
      %v1770 = vrot.slane %v1762, %v1769
      %v1772 = vunpack.c.l.s4 1935823168
      %v1773 = vunpack.c.0.s8 %v1772
      %v1774 = vlaneseq
      %v1775 = vshrl.u32 %v1774, 7
      %v1776 = vsub.s32 %v1773, %v1775
      %v1777 = vrot.slane %v1763, %v1776
      %1780 = vst [vmem:[#allocation2 + $0x180] sm:$0x11] %v1770
      %1781 = vst.msk [vmem:[#allocation2 + $0x188] sm:$0x1] %vm423, %v1777
      %v1782 = vcombine.low %v1762, %v1762
      %v1784 = vunpack.c.l.s4 1935823168
      %v1785 = vunpack.c.0.s8 %v1784
      %v1786 = vlaneseq
      %v1787 = vshrl.u32 %v1786, 7
      %v1788 = vsub.s32 %v1785, %v1787
      %v1789 = vrot.slane %v1782, %v1788
      %1790 = vrot.lane.b32.xlu0 %v1789, 127
      %v1791 = vpop.permute.xlu0 %1790
      %1792 = vrot.lane.b32.xlu0 %v1770, 127
      %v1793 = vpop.permute.xlu0 %1792
      %v1794 = vrot.slane %v1791, 4
      %v1795 = vrot.slane %v1793, 4
      %v1796 = vsel %vm439, %v1794, %v1795
      %v1797 = vsel %vm441, %v1791, %v1796
      %1800 = vst [vmem:[#allocation2 + $0x180] sm:$0x22] %v1797
      %1801 = vst.msk [vmem:[#allocation2 + $0x188] sm:$0x2] %vm446, %v1793
      %v1802 = vcombine.low %v1754, %v1754
      %v1804 = vunpack.c.l.s4 1935823168
      %v1805 = vunpack.c.0.s8 %v1804
      %v1806 = vlaneseq
      %v1807 = vshrl.u32 %v1806, 7
      %v1808 = vsub.s32 %v1805, %v1807
      %v1809 = vrot.slane %v1802, %v1808
      %v1810 = vcombine.high %v1809, %v1809
      %v1812 = vunpack.c.l.s4 1935823168
      %v1813 = vunpack.c.0.s8 %v1812
      %v1814 = vlaneseq
      %v1815 = vshrl.u32 %v1814, 7
      %v1816 = vsub.s32 %v1813, %v1815
      %v1817 = vrot.slane %v1809, %v1816
      %v1819 = vunpack.c.l.s4 1935823168
      %v1820 = vunpack.c.0.s8 %v1819
      %v1821 = vlaneseq
      %v1822 = vshrl.u32 %v1821, 7
      %v1823 = vsub.s32 %v1820, %v1822
      %v1824 = vrot.slane %v1810, %v1823
      %1825 = vrot.lane.b32.xlu0 %v1817, 126
      %v1826 = vpop.permute.xlu0 %1825
      %1827 = vrot.lane.b32.xlu0 %v1824, 126
      %v1828 = vpop.permute.xlu0 %1827
      %v1829 = vrot.slane %v1826, 4
      %v1830 = vrot.slane %v1828, 4
      %v1831 = vsel %vm439, %v1829, %v1830
      %v1832 = vsel %vm478, %v1826, %v1831
      %1835 = vst [vmem:[#allocation2 + $0x180] sm:$0x44] %v1832
      %1836 = vst.msk [vmem:[#allocation2 + $0x188] sm:$0x4] %vm483, %v1828
      %v1837 = vcombine.low %v1809, %v1809
      %v1839 = vunpack.c.l.s4 1935823168
      %v1840 = vunpack.c.0.s8 %v1839
      %v1841 = vlaneseq
      %v1842 = vshrl.u32 %v1841, 7
      %v1843 = vsub.s32 %v1840, %v1842
      %v1844 = vrot.slane %v1837, %v1843
      %1845 = vrot.lane.b32.xlu0 %v1844, 110
      %v1846 = vpop.permute.xlu0 %1845
      %1847 = vrot.lane.b32.xlu0 %v1817, 110
      %v1848 = vpop.permute.xlu0 %1847
      %v1849 = vrot.slane %v1846, 4
      %v1850 = vrot.slane %v1848, 4
      %v1851 = vsel %vm439, %v1849, %v1850
      %v1852 = vsel %vm500, %v1846, %v1851
      %1855 = vst [vmem:[#allocation2 + $0x180] sm:$0x88] %v1852
      %1856 = vst.msk [vmem:[#allocation2 + $0x188] sm:$0x8] %vm505, %v1848
      %1857 = vrot.lane.b32.xlu0 %v1770, 109
      %v1858 = vpop.permute.xlu0 %1857
      %1859 = vrot.lane.b32.xlu0 %v1777, 109
      %v1860 = vpop.permute.xlu0 %1859
      %v1861 = vrot.slane %v1858, 4
      %v1862 = vrot.slane %v1860, 4
      %v1863 = vsel %vm439, %v1861, %v1862
      %v1864 = vsel %vm514, %v1858, %v1863
      %1867 = vst [vmem:[#allocation2 + $0x18c] sm:$0x11] %v1864
      %1868 = vst.msk [vmem:[#allocation2 + $0x194] sm:$0x1] %vm423, %v1860
      %1869 = vrot.lane.b32.xlu0 %v1789, 108
      %v1870 = vpop.permute.xlu0 %1869
      %1871 = vrot.lane.b32.xlu0 %v1770, 108
      %v1872 = vpop.permute.xlu0 %1871
      %v1873 = vrot.slane %v1870, 4
      %v1874 = vrot.slane %v1872, 4
      %v1875 = vsel %vm439, %v1873, %v1874
      %v1876 = vsel %vm527, %v1870, %v1875
      %1879 = vst [vmem:[#allocation2 + $0x18c] sm:$0x22] %v1876
      %1880 = vst.msk [vmem:[#allocation2 + $0x194] sm:$0x2] %vm446, %v1872
      %1881 = vrot.lane.b32.xlu0 %v1817, 92
      %v1882 = vpop.permute.xlu0 %1881
      %1883 = vrot.lane.b32.xlu0 %v1824, 92
      %v1884 = vpop.permute.xlu0 %1883
      %v1885 = vrot.slane %v1882, 4
      %v1886 = vrot.slane %v1884, 4
      %v1887 = vsel %vm439, %v1885, %v1886
      %v1888 = vsel %vm540, %v1882, %v1887
      %1891 = vst [vmem:[#allocation2 + $0x18c] sm:$0x44] %v1888
      %1892 = vst.msk [vmem:[#allocation2 + $0x194] sm:$0x4] %vm483, %v1884
      %1893 = vrot.lane.b32.xlu0 %v1844, 91
      %v1894 = vpop.permute.xlu0 %1893
      %1895 = vrot.lane.b32.xlu0 %v1817, 91
      %v1896 = vpop.permute.xlu0 %1895
      %v1897 = vrot.slane %v1894, 4
      %v1898 = vrot.slane %v1896, 4
      %v1899 = vsel %vm439, %v1897, %v1898
      %v1900 = vsel %vm553, %v1894, %v1899
      %1903 = vst [vmem:[#allocation2 + $0x18c] sm:$0x88] %v1900
      %1904 = vst.msk [vmem:[#allocation2 + $0x194] sm:$0x8] %vm505, %v1896
      %1905 = vrot.lane.b32.xlu0 %v1770, 90
      %v1906 = vpop.permute.xlu0 %1905
      %1907 = vrot.lane.b32.xlu0 %v1777, 90
      %v1908 = vpop.permute.xlu0 %1907
      %v1909 = vrot.slane %v1906, 4
      %v1910 = vrot.slane %v1908, 4
      %v1911 = vsel %vm439, %v1909, %v1910
      %v1912 = vsel %vm566, %v1906, %v1911
      %1915 = vst [vmem:[#allocation2 + $0x198] sm:$0x11] %v1912
      %1916 = vst.msk [vmem:[#allocation2 + $0x1a0] sm:$0x1] %vm423, %v1908
      %1917 = vst [vmem:[#allocation2 + $0x198] sm:$0xee] 0
      %1918 = vst.msk [vmem:[#allocation2 + $0x1a0] sm:$0xe] %vm573, 0
      %1919 = vst [vmem:[#allocation2 + $0x1a4] sm:$0xff] 0
      %1920 = vst.msk [vmem:[#allocation2 + $0x1ac] sm:$0xf] %vm576, 0
      %s1921 = scalar_lea.vmem %s380, 3
      %v1922 = vld [vmem:[%s1921] sm:$0x7]
      %v1925 = vunpack.c.l.s4 1935823168
      %v1926 = vunpack.c.0.s8 %v1925
      %v1927 = vlaneseq
      %v1928 = vshrl.u32 %v1927, 7
      %v1929 = vsub.s32 %v1926, %v1928
      %v1930 = vrot.slane %v1922, %v1929
      %v1931 = vcombine.high %v1930, %v1930
      %v1933 = vunpack.c.l.s4 1935823168
      %v1934 = vunpack.c.0.s8 %v1933
      %v1935 = vlaneseq
      %v1936 = vshrl.u32 %v1935, 7
      %v1937 = vsub.s32 %v1934, %v1936
      %v1938 = vrot.slane %v1930, %v1937
      %v1940 = vunpack.c.l.s4 1935823168
      %v1941 = vunpack.c.0.s8 %v1940
      %v1942 = vlaneseq
      %v1943 = vshrl.u32 %v1942, 7
      %v1944 = vsub.s32 %v1941, %v1943
      %v1945 = vrot.slane %v1931, %v1944
      %1948 = vst [vmem:[#allocation2 + $0x1b0] sm:$0x11] %v1938
      %1949 = vst.msk [vmem:[#allocation2 + $0x1b8] sm:$0x1] %vm423, %v1945
      %v1950 = vcombine.low %v1930, %v1930
      %v1952 = vunpack.c.l.s4 1935823168
      %v1953 = vunpack.c.0.s8 %v1952
      %v1954 = vlaneseq
      %v1955 = vshrl.u32 %v1954, 7
      %v1956 = vsub.s32 %v1953, %v1955
      %v1957 = vrot.slane %v1950, %v1956
      %1958 = vrot.lane.b32.xlu0 %v1957, 127
      %v1959 = vpop.permute.xlu0 %1958
      %1960 = vrot.lane.b32.xlu0 %v1938, 127
      %v1961 = vpop.permute.xlu0 %1960
      %v1962 = vrot.slane %v1959, 4
      %v1963 = vrot.slane %v1961, 4
      %v1964 = vsel %vm439, %v1962, %v1963
      %v1965 = vsel %vm441, %v1959, %v1964
      %1968 = vst [vmem:[#allocation2 + $0x1b0] sm:$0x22] %v1965
      %1969 = vst.msk [vmem:[#allocation2 + $0x1b8] sm:$0x2] %vm446, %v1961
      %v1970 = vcombine.low %v1922, %v1922
      %v1972 = vunpack.c.l.s4 1935823168
      %v1973 = vunpack.c.0.s8 %v1972
      %v1974 = vlaneseq
      %v1975 = vshrl.u32 %v1974, 7
      %v1976 = vsub.s32 %v1973, %v1975
      %v1977 = vrot.slane %v1970, %v1976
      %v1978 = vcombine.high %v1977, %v1977
      %v1980 = vunpack.c.l.s4 1935823168
      %v1981 = vunpack.c.0.s8 %v1980
      %v1982 = vlaneseq
      %v1983 = vshrl.u32 %v1982, 7
      %v1984 = vsub.s32 %v1981, %v1983
      %v1985 = vrot.slane %v1977, %v1984
      %v1987 = vunpack.c.l.s4 1935823168
      %v1988 = vunpack.c.0.s8 %v1987
      %v1989 = vlaneseq
      %v1990 = vshrl.u32 %v1989, 7
      %v1991 = vsub.s32 %v1988, %v1990
      %v1992 = vrot.slane %v1978, %v1991
      %1993 = vrot.lane.b32.xlu0 %v1985, 126
      %v1994 = vpop.permute.xlu0 %1993
      %1995 = vrot.lane.b32.xlu0 %v1992, 126
      %v1996 = vpop.permute.xlu0 %1995
      %v1997 = vrot.slane %v1994, 4
      %v1998 = vrot.slane %v1996, 4
      %v1999 = vsel %vm439, %v1997, %v1998
      %v2000 = vsel %vm478, %v1994, %v1999
      %2003 = vst [vmem:[#allocation2 + $0x1b0] sm:$0x44] %v2000
      %2004 = vst.msk [vmem:[#allocation2 + $0x1b8] sm:$0x4] %vm483, %v1996
      %v2005 = vcombine.low %v1977, %v1977
      %v2007 = vunpack.c.l.s4 1935823168
      %v2008 = vunpack.c.0.s8 %v2007
      %v2009 = vlaneseq
      %v2010 = vshrl.u32 %v2009, 7
      %v2011 = vsub.s32 %v2008, %v2010
      %v2012 = vrot.slane %v2005, %v2011
      %2013 = vrot.lane.b32.xlu0 %v2012, 110
      %v2014 = vpop.permute.xlu0 %2013
      %2015 = vrot.lane.b32.xlu0 %v1985, 110
      %v2016 = vpop.permute.xlu0 %2015
      %v2017 = vrot.slane %v2014, 4
      %v2018 = vrot.slane %v2016, 4
      %v2019 = vsel %vm439, %v2017, %v2018
      %v2020 = vsel %vm500, %v2014, %v2019
      %2023 = vst [vmem:[#allocation2 + $0x1b0] sm:$0x88] %v2020
      %2024 = vst.msk [vmem:[#allocation2 + $0x1b8] sm:$0x8] %vm505, %v2016
      %2025 = vrot.lane.b32.xlu0 %v1938, 109
      %v2026 = vpop.permute.xlu0 %2025
      %2027 = vrot.lane.b32.xlu0 %v1945, 109
      %v2028 = vpop.permute.xlu0 %2027
      %v2029 = vrot.slane %v2026, 4
      %v2030 = vrot.slane %v2028, 4
      %v2031 = vsel %vm439, %v2029, %v2030
      %v2032 = vsel %vm514, %v2026, %v2031
      %2035 = vst [vmem:[#allocation2 + $0x1bc] sm:$0x11] %v2032
      %2036 = vst.msk [vmem:[#allocation2 + $0x1c4] sm:$0x1] %vm423, %v2028
      %2037 = vrot.lane.b32.xlu0 %v1957, 108
      %v2038 = vpop.permute.xlu0 %2037
      %2039 = vrot.lane.b32.xlu0 %v1938, 108
      %v2040 = vpop.permute.xlu0 %2039
      %v2041 = vrot.slane %v2038, 4
      %v2042 = vrot.slane %v2040, 4
      %v2043 = vsel %vm439, %v2041, %v2042
      %v2044 = vsel %vm527, %v2038, %v2043
      %2047 = vst [vmem:[#allocation2 + $0x1bc] sm:$0x22] %v2044
      %2048 = vst.msk [vmem:[#allocation2 + $0x1c4] sm:$0x2] %vm446, %v2040
      %2049 = vrot.lane.b32.xlu0 %v1985, 92
      %v2050 = vpop.permute.xlu0 %2049
      %2051 = vrot.lane.b32.xlu0 %v1992, 92
      %v2052 = vpop.permute.xlu0 %2051
      %v2053 = vrot.slane %v2050, 4
      %v2054 = vrot.slane %v2052, 4
      %v2055 = vsel %vm439, %v2053, %v2054
      %v2056 = vsel %vm540, %v2050, %v2055
      %2059 = vst [vmem:[#allocation2 + $0x1bc] sm:$0x44] %v2056
      %2060 = vst.msk [vmem:[#allocation2 + $0x1c4] sm:$0x4] %vm483, %v2052
      %2061 = vrot.lane.b32.xlu0 %v2012, 91
      %v2062 = vpop.permute.xlu0 %2061
      %2063 = vrot.lane.b32.xlu0 %v1985, 91
      %v2064 = vpop.permute.xlu0 %2063
      %v2065 = vrot.slane %v2062, 4
      %v2066 = vrot.slane %v2064, 4
      %v2067 = vsel %vm439, %v2065, %v2066
      %v2068 = vsel %vm553, %v2062, %v2067
      %2071 = vst [vmem:[#allocation2 + $0x1bc] sm:$0x88] %v2068
      %2072 = vst.msk [vmem:[#allocation2 + $0x1c4] sm:$0x8] %vm505, %v2064
      %2073 = vrot.lane.b32.xlu0 %v1938, 90
      %v2074 = vpop.permute.xlu0 %2073
      %2075 = vrot.lane.b32.xlu0 %v1945, 90
      %v2076 = vpop.permute.xlu0 %2075
      %v2077 = vrot.slane %v2074, 4
      %v2078 = vrot.slane %v2076, 4
      %v2079 = vsel %vm439, %v2077, %v2078
      %v2080 = vsel %vm566, %v2074, %v2079
      %2083 = vst [vmem:[#allocation2 + $0x1c8] sm:$0x11] %v2080
      %2084 = vst.msk [vmem:[#allocation2 + $0x1d0] sm:$0x1] %vm423, %v2076
      %2085 = vst [vmem:[#allocation2 + $0x1c8] sm:$0xee] 0
      %2086 = vst.msk [vmem:[#allocation2 + $0x1d0] sm:$0xe] %vm573, 0
      %2087 = vst [vmem:[#allocation2 + $0x1d4] sm:$0xff] 0
      %2088 = vst.msk [vmem:[#allocation2 + $0x1dc] sm:$0xf] %vm576, 0
      %v2089 = vld [vmem:[%s2] sm:$0xf]
      %v2090 = vld [vmem:[%s2 + $0x4] sm:$0xf]
      %v2091 = vld [vmem:[%s2 + $0x8] sm:$0xf]
      %v2092 = vld [vmem:[%s2 + $0xc] sm:$0xf]
      %v2093 = vld [vmem:[%s3] sm:$0xff]
      %v2094 = vld [vmem:[%s3 + $0x8] sm:$0xff]
      %v2095 = vld [vmem:[%s3 + $0x10] sm:$0xff]
      %v2096 = vld [vmem:[%s3 + $0x18] sm:$0xff]
      %v2097 = vld [vmem:[%s4] sm:$0x7]
      %v2098 = vld [vmem:[%s5] sm:$0x7]
      %v2099 = vld [vmem:[%s6] ss:$2 sm:$0x7]
      %vm2100 = vcmp.gt.f32.partialorder %v2099, 0.5
      %s2101 = scalar_lea.vmem %s6, 1
      %v2102 = vld [vmem:[%s2101] ss:$2 sm:$0x7]
      %vm2103 = vcmp.gt.f32.partialorder %v2102, 0.5
      %v2104 = vld [vmem:[#allocation2] sm:$0xff]
      %v2105 = vld [vmem:[#allocation2 + $0x8] sm:$0xf]
      %v2106 = vld [vmem:[#allocation2 + $0xc] sm:$0xff]
      %v2107 = vld [vmem:[#allocation2 + $0x14] sm:$0xf]
      %v2108 = vld [vmem:[#allocation2 + $0x18] sm:$0xff]
      %v2109 = vld [vmem:[#allocation2 + $0x20] sm:$0xf]
      %v2110 = vld [vmem:[#allocation2 + $0x24] sm:$0xff]
      %v2111 = vld [vmem:[#allocation2 + $0x2c] sm:$0xf]
      %v2112 = vld [vmem:[#allocation2 + $0x30] sm:$0xff]
      %v2113 = vld [vmem:[#allocation2 + $0x38] sm:$0xf]
      %v2114 = vld [vmem:[#allocation2 + $0x3c] sm:$0xff]
      %v2115 = vld [vmem:[#allocation2 + $0x44] sm:$0xf]
      %v2116 = vld [vmem:[#allocation2 + $0x48] sm:$0xff]
      %v2117 = vld [vmem:[#allocation2 + $0x50] sm:$0xf]
      %v2118 = vld [vmem:[#allocation2 + $0x54] sm:$0xff]
      %v2119 = vld [vmem:[#allocation2 + $0x5c] sm:$0xf]
      %v2120 = vld [vmem:[#allocation2 + $0x60] sm:$0xff]
      %v2121 = vld [vmem:[#allocation2 + $0x68] sm:$0xf]
      %v2122 = vld [vmem:[#allocation2 + $0x6c] sm:$0xff]
      %v2123 = vld [vmem:[#allocation2 + $0x74] sm:$0xf]
      %v2124 = vld [vmem:[#allocation2 + $0x78] sm:$0xff]
      %v2125 = vld [vmem:[#allocation2 + $0x80] sm:$0xf]
      %v2126 = vld [vmem:[#allocation2 + $0x84] sm:$0xff]
      %v2127 = vld [vmem:[#allocation2 + $0x8c] sm:$0xf]
      %2129 = vset.pattern.permute.xlu0 0
      %2130 = vperm.xlu0 %2129, %v2093
      %v2131 = vpop.permute.xlu0 %2130
      %2134 = vset.pattern.permute.xlu0 0
      %2135 = vperm.xlu0 %2134, %v2094
      %v2136 = vpop.permute.xlu0 %2135
      %2139 = vset.pattern.permute.xlu0 0
      %2140 = vperm.xlu0 %2139, %v2095
      %v2141 = vpop.permute.xlu0 %2140
      %2144 = vset.pattern.permute.xlu0 0
      %2145 = vperm.xlu0 %2144, %v2096
      %v2146 = vpop.permute.xlu0 %2145
      %v2152 = vunpack.c.l.b16 %v2089
      %v2153 = vunpack.c.l.b16 %v2090
      %v2154 = vunpack.c.l.b16 %v2091
      %v2155 = vunpack.c.l.b16 %v2092
      %v2156 = vpack.c.b16 %v2153, %v2152
      %v2157 = vpack.c.b16 %v2155, %v2154
      %v2182 = vunpack.c.l.b16 %v2104
      %v2183 = vunpack.c.h.b16 %v2104
      %v2184 = vunpack.c.l.b16 %v2105
      %v2185 = vunpack.c.l.b16 %v2106
      %v2186 = vunpack.c.h.b16 %v2106
      %v2187 = vunpack.c.l.b16 %v2107
      %v2188 = vunpack.c.l.b16 %v2108
      %v2189 = vunpack.c.h.b16 %v2108
      %v2190 = vunpack.c.l.b16 %v2109
      %v2191 = vunpack.c.l.b16 %v2110
      %v2192 = vunpack.c.h.b16 %v2110
      %v2193 = vunpack.c.l.b16 %v2111
      %v2194 = vunpack.c.l.b16 %v2112
      %v2195 = vunpack.c.h.b16 %v2112
      %v2196 = vunpack.c.l.b16 %v2113
      %v2197 = vunpack.c.l.b16 %v2114
      %v2198 = vunpack.c.h.b16 %v2114
      %v2199 = vunpack.c.l.b16 %v2115
      %v2200 = vunpack.c.l.b16 %v2116
      %v2201 = vunpack.c.h.b16 %v2116
      %v2202 = vunpack.c.l.b16 %v2117
      %v2203 = vunpack.c.l.b16 %v2118
      %v2204 = vunpack.c.h.b16 %v2118
      %v2205 = vunpack.c.l.b16 %v2119
      %v2206 = vunpack.c.l.b16 %v2120
      %v2207 = vunpack.c.h.b16 %v2120
      %v2208 = vunpack.c.l.b16 %v2121
      %v2209 = vunpack.c.l.b16 %v2122
      %v2210 = vunpack.c.h.b16 %v2122
      %v2211 = vunpack.c.l.b16 %v2123
      %v2212 = vunpack.c.l.b16 %v2124
      %v2213 = vunpack.c.h.b16 %v2124
      %v2214 = vunpack.c.l.b16 %v2125
      %v2215 = vunpack.c.l.b16 %v2126
      %v2216 = vunpack.c.h.b16 %v2126
      %v2217 = vunpack.c.l.b16 %v2127
      %v2218 = vpack.c.b16 %v2185, %v2182
      %v2219 = vpack.c.b16 %v2186, %v2183
      %v2220 = vpack.c.b16 %v2187, %v2184
      %v2221 = vpack.c.b16 %v2191, %v2188
      %v2222 = vpack.c.b16 %v2192, %v2189
      %v2223 = vpack.c.b16 %v2193, %v2190
      %v2224 = vpack.c.b16 %v2197, %v2194
      %v2225 = vpack.c.b16 %v2198, %v2195
      %v2226 = vpack.c.b16 %v2199, %v2196
      %v2227 = vpack.c.b16 %v2203, %v2200
      %v2228 = vpack.c.b16 %v2204, %v2201
      %v2229 = vpack.c.b16 %v2205, %v2202
      %v2230 = vpack.c.b16 %v2209, %v2206
      %v2231 = vpack.c.b16 %v2210, %v2207
      %v2232 = vpack.c.b16 %v2211, %v2208
      %v2233 = vpack.c.b16 %v2215, %v2212
      %v2234 = vpack.c.b16 %v2216, %v2213
      %v2235 = vpack.c.b16 %v2217, %v2214
      %vm2254 = vcmask 785408
      %v2256 = vsel %vm2254, %v2156, 0
      %v2259 = vsel %vm2254, %v2157, 0
      %2261 = vmatprep.subr.bf16.mxu0 0
      %2262 = vmatpush1.bf16.msra.mxu0 0
      %2263 = vmatprep.subr.bf16.mxu0 0
      %2264 = vmatpush1.bf16.msra.mxu0 0
      %2265 = vmatprep.subr.bf16.mxu0 %v2234
      %2266 = vmatpush1.bf16.msra.mxu0 %v2233
      %2267 = vmatprep.subr.bf16.mxu0 %v2231
      %2268 = vmatpush1.bf16.msra.mxu0 %v2230
      %2269 = vmatprep.subr.bf16.mxu0 %v2228
      %2270 = vmatpush1.bf16.msra.mxu0 %v2227
      %2271 = vmatprep.subr.bf16.mxu0 %v2225
      %2272 = vmatpush1.bf16.msra.mxu0 %v2224
      %2273 = vmatprep.subr.bf16.mxu0 %v2222
      %2274 = vmatpush1.bf16.msra.mxu0 %v2221
      %2275 = vmatprep.subr.bf16.mxu0 %v2219
      %2276 = vmatpush1.bf16.msra.mxu0 %v2218
      %2277 = vmatprep.subr.bf16.mxu0 0
      %2278 = vmatpush2.bf16.msra.mxu0 0
      %2279 = vmatprep.subr.bf16.mxu0 0
      %2280 = vmatpush2.bf16.msra.mxu0 0
      %2281 = vmatprep.subr.bf16.mxu0 0
      %2282 = vmatpush2.bf16.msra.mxu0 0
      %2283 = vmatprep.subr.bf16.mxu0 0
      %2284 = vmatpush2.bf16.msra.mxu0 0
      %2285 = vmatprep.subr.bf16.mxu0 0
      %2286 = vmatpush2.bf16.msra.mxu0 0
      %2287 = vmatprep.subr.bf16.mxu0 0
      %2288 = vmatpush2.bf16.msra.mxu0 0
      %2289 = vmatprep.subr.bf16.mxu0 0
      %2290 = vmatpush2.bf16.msra.mxu0 0
      %2291 = vmatprep.subr.bf16.mxu0 0
      %2292 = vmatpush2.bf16.msra.mxu0 0
      %2293 = vmatprep.mubr.bf16.mxu0 0
      %2294 = vmatmul.mubr.bf16.gmra.mxu0 %v2256
      %v2295 = vpop.f32.mrf.mxu0
      %v2296 = vadd.f32 %v2131, %v2295
      %v2297 = vpop.f32.mrf.mxu0
      %v2298 = vadd.f32 %v2131, %v2297
      %v2299 = vpop.f32.mrf.mxu0
      %v2300 = vadd.f32 %v2136, %v2299
      %v2301 = vpop.f32.mrf.mxu0
      %v2302 = vadd.f32 %v2136, %v2301
      %2303 = vmatprep.mubr.bf16.mxu0 0
      %2304 = vmatmul.mubr.bf16.gmra.mxu0 %v2259
      %v2305 = vpop.f32.mrf.mxu0
      %v2306 = vadd.f32 %v2141, %v2305
      %v2307 = vpop.f32.mrf.mxu0
      %v2308 = vadd.f32 %v2141, %v2307
      %v2309 = vpop.f32.mrf.mxu0
      %v2310 = vadd.f32 %v2146, %v2309
      %v2311 = vpop.f32.mrf.mxu0
      %v2312 = vadd.f32 %v2146, %v2311
      %2313 = vdwg.mxu0
      %2314 = vmatprep.subr.bf16.mxu0 0
      %2315 = vmatpush1.bf16.msra.mxu0 0
      %2316 = vmatprep.subr.bf16.mxu0 0
      %2317 = vmatpush1.bf16.msra.mxu0 0
      %2318 = vmatprep.subr.bf16.mxu0 0
      %2319 = vmatpush1.bf16.msra.mxu0 %v2235
      %2320 = vmatprep.subr.bf16.mxu0 0
      %2321 = vmatpush1.bf16.msra.mxu0 %v2232
      %2322 = vmatprep.subr.bf16.mxu0 0
      %2323 = vmatpush1.bf16.msra.mxu0 %v2229
      %2324 = vmatprep.subr.bf16.mxu0 0
      %2325 = vmatpush1.bf16.msra.mxu0 %v2226
      %2326 = vmatprep.subr.bf16.mxu0 0
      %2327 = vmatpush1.bf16.msra.mxu0 %v2223
      %2328 = vmatprep.subr.bf16.mxu0 0
      %2329 = vmatpush1.bf16.msra.mxu0 %v2220
      %2330 = vmatprep.subr.bf16.mxu0 0
      %2331 = vmatpush2.bf16.msra.mxu0 0
      %2332 = vmatprep.subr.bf16.mxu0 0
      %2333 = vmatpush2.bf16.msra.mxu0 0
      %2334 = vmatprep.subr.bf16.mxu0 0
      %2335 = vmatpush2.bf16.msra.mxu0 0
      %2336 = vmatprep.subr.bf16.mxu0 0
      %2337 = vmatpush2.bf16.msra.mxu0 0
      %2338 = vmatprep.subr.bf16.mxu0 0
      %2339 = vmatpush2.bf16.msra.mxu0 0
      %2340 = vmatprep.subr.bf16.mxu0 0
      %2341 = vmatpush2.bf16.msra.mxu0 0
      %2342 = vmatprep.subr.bf16.mxu0 0
      %2343 = vmatpush2.bf16.msra.mxu0 0
      %2344 = vmatprep.subr.bf16.mxu0 0
      %2345 = vmatpush2.bf16.msra.mxu0 0
      %2346 = vmatprep.mubr.bf16.mxu0 0
      %2347 = vmatmul.mubr.bf16.gmra.mxu0 %v2256
      %v2348 = vpop.f32.mrf.mxu0
      %v2349 = vadd.f32 %v2131, %v2348
      %v2350 = vpop.f32.mrf.mxu0
      %v2351 = vpop.f32.mrf.mxu0
      %v2352 = vadd.f32 %v2136, %v2351
      %v2353 = vpop.f32.mrf.mxu0
      %2354 = vmatprep.mubr.bf16.mxu0 0
      %2355 = vmatmul.mubr.bf16.gmra.mxu0 %v2259
      %v2356 = vpop.f32.mrf.mxu0
      %v2357 = vadd.f32 %v2141, %v2356
      %v2358 = vpop.f32.mrf.mxu0
      %v2359 = vpop.f32.mrf.mxu0
      %v2360 = vadd.f32 %v2146, %v2359
      %v2361 = vpop.f32.mrf.mxu0
      %2362 = vdwg.mxu0
      %v2363 = vmax.f32 %v2296, 0.0
      %v2364 = vmax.f32 %v2298, 0.0
      %v2365 = vmax.f32 %v2349, 0.0
      %v2366 = vmax.f32 %v2300, 0.0
      %v2367 = vmax.f32 %v2302, 0.0
      %v2368 = vmax.f32 %v2352, 0.0
      %v2369 = vmax.f32 %v2306, 0.0
      %v2370 = vmax.f32 %v2308, 0.0
      %v2371 = vmax.f32 %v2357, 0.0
      %v2372 = vmax.f32 %v2310, 0.0
      %v2373 = vmax.f32 %v2312, 0.0
      %v2374 = vmax.f32 %v2360, 0.0
      %v2375 = vpack.c.bf16 %v2366, %v2363
      %v2376 = vpack.c.bf16 %v2367, %v2364
      %v2377 = vpack.c.bf16 %v2368, %v2365
      %v2378 = vpack.c.bf16 %v2372, %v2369
      %v2379 = vpack.c.bf16 %v2373, %v2370
      %v2380 = vpack.c.bf16 %v2374, %v2371
      %vm2381 = vcmask 261120
      %v2383 = vsel %vm2381, %v2097, 0
      %2385 = vmatprep.subr.bf16.mxu0 0
      %2386 = vmatpush1.bf16.msra.mxu0 0
      %2387 = vmatprep.subr.bf16.mxu0 0
      %2388 = vmatpush1.bf16.msra.mxu0 0
      %2389 = vmatprep.subr.bf16.mxu0 0
      %2390 = vmatpush1.bf16.msra.mxu0 0
      %2391 = vmatprep.subr.bf16.mxu0 0
      %2392 = vmatpush1.bf16.msra.mxu0 0
      %2393 = vmatprep.subr.bf16.mxu0 0
      %2394 = vmatpush1.bf16.msra.mxu0 0
      %2395 = vmatprep.subr.bf16.mxu0 0
      %2396 = vmatpush1.bf16.msra.mxu0 0
      %2397 = vmatprep.subr.bf16.mxu0 %v2379
      %2398 = vmatpush1.bf16.msra.mxu0 %v2378
      %2399 = vmatprep.subr.bf16.mxu0 %v2376
      %2400 = vmatpush1.bf16.msra.mxu0 %v2375
      %2401 = vmatprep.subr.bf16.mxu0 0
      %2402 = vmatpush2.bf16.msra.mxu0 0
      %2403 = vmatprep.subr.bf16.mxu0 0
      %2404 = vmatpush2.bf16.msra.mxu0 0
      %2405 = vmatprep.subr.bf16.mxu0 0
      %2406 = vmatpush2.bf16.msra.mxu0 0
      %2407 = vmatprep.subr.bf16.mxu0 0
      %2408 = vmatpush2.bf16.msra.mxu0 0
      %2409 = vmatprep.subr.bf16.mxu0 0
      %2410 = vmatpush2.bf16.msra.mxu0 0
      %2411 = vmatprep.subr.bf16.mxu0 0
      %2412 = vmatpush2.bf16.msra.mxu0 0
      %2413 = vmatprep.subr.bf16.mxu0 0
      %2414 = vmatpush2.bf16.msra.mxu0 0
      %2415 = vmatprep.subr.bf16.mxu0 0
      %2416 = vmatpush2.bf16.msra.mxu0 0
      %2417 = vmatprep.mubr.bf16.mxu0 0
      %2418 = vmatmul.mubr.bf16.gmra.mxu0 %v2383
      %v2419 = vpop.f32.mrf.mxu0
      %v2420 = vadd.f32 0.0, %v2419
      %v2421 = vpop.f32.mrf.mxu0
      %v2422 = vadd.f32 0.0, %v2421
      %v2423 = vpop.f32.mrf.mxu0
      %v2424 = vpop.f32.mrf.mxu0
      %2425 = vdwg.mxu0
      %2426 = vmatprep.subr.bf16.mxu0 0
      %2427 = vmatpush1.bf16.msra.mxu0 0
      %2428 = vmatprep.subr.bf16.mxu0 0
      %2429 = vmatpush1.bf16.msra.mxu0 0
      %2430 = vmatprep.subr.bf16.mxu0 0
      %2431 = vmatpush1.bf16.msra.mxu0 0
      %2432 = vmatprep.subr.bf16.mxu0 0
      %2433 = vmatpush1.bf16.msra.mxu0 0
      %2434 = vmatprep.subr.bf16.mxu0 0
      %2435 = vmatpush1.bf16.msra.mxu0 0
      %2436 = vmatprep.subr.bf16.mxu0 0
      %2437 = vmatpush1.bf16.msra.mxu0 0
      %2438 = vmatprep.subr.bf16.mxu0 0
      %2439 = vmatpush1.bf16.msra.mxu0 %v2380
      %2440 = vmatprep.subr.bf16.mxu0 0
      %2441 = vmatpush1.bf16.msra.mxu0 %v2377
      %2442 = vmatprep.subr.bf16.mxu0 0
      %2443 = vmatpush2.bf16.msra.mxu0 0
      %2444 = vmatprep.subr.bf16.mxu0 0
      %2445 = vmatpush2.bf16.msra.mxu0 0
      %2446 = vmatprep.subr.bf16.mxu0 0
      %2447 = vmatpush2.bf16.msra.mxu0 0
      %2448 = vmatprep.subr.bf16.mxu0 0
      %2449 = vmatpush2.bf16.msra.mxu0 0
      %2450 = vmatprep.subr.bf16.mxu0 0
      %2451 = vmatpush2.bf16.msra.mxu0 0
      %2452 = vmatprep.subr.bf16.mxu0 0
      %2453 = vmatpush2.bf16.msra.mxu0 0
      %2454 = vmatprep.subr.bf16.mxu0 0
      %2455 = vmatpush2.bf16.msra.mxu0 0
      %2456 = vmatprep.subr.bf16.mxu0 0
      %2457 = vmatpush2.bf16.msra.mxu0 0
      %2458 = vmatprep.mubr.bf16.mxu0 0
      %2459 = vmatmul.mubr.bf16.gmra.mxu0 %v2383
      %v2460 = vpop.f32.mrf.mxu0
      %v2461 = vadd.f32 0.0, %v2460
      %v2462 = vpop.f32.mrf.mxu0
      %v2463 = vpop.f32.mrf.mxu0
      %v2464 = vpop.f32.mrf.mxu0
      %2465 = vdwg.mxu0
      %v2466 = vld [vmem:[#allocation2 + $0x30] sm:$0xff]
      %v2467 = vld [vmem:[#allocation2 + $0x38] sm:$0xf]
      %v2468 = vld [vmem:[#allocation2 + $0x3c] sm:$0xff]
      %v2469 = vld [vmem:[#allocation2 + $0x44] sm:$0xf]
      %v2470 = vld [vmem:[#allocation2 + $0x48] sm:$0xff]
      %v2471 = vld [vmem:[#allocation2 + $0x50] sm:$0xf]
      %v2472 = vld [vmem:[#allocation2 + $0x54] sm:$0xff]
      %v2473 = vld [vmem:[#allocation2 + $0x5c] sm:$0xf]
      %v2474 = vld [vmem:[#allocation2 + $0x60] sm:$0xff]
      %v2475 = vld [vmem:[#allocation2 + $0x68] sm:$0xf]
      %v2476 = vld [vmem:[#allocation2 + $0x6c] sm:$0xff]
      %v2477 = vld [vmem:[#allocation2 + $0x74] sm:$0xf]
      %v2478 = vld [vmem:[#allocation2 + $0x78] sm:$0xff]
      %v2479 = vld [vmem:[#allocation2 + $0x80] sm:$0xf]
      %v2480 = vld [vmem:[#allocation2 + $0x84] sm:$0xff]
      %v2481 = vld [vmem:[#allocation2 + $0x8c] sm:$0xf]
      %v2482 = vld [vmem:[#allocation2 + $0x90] sm:$0xff]
      %v2483 = vld [vmem:[#allocation2 + $0x98] sm:$0xf]
      %v2484 = vld [vmem:[#allocation2 + $0x9c] sm:$0xff]
      %v2485 = vld [vmem:[#allocation2 + $0xa4] sm:$0xf]
      %v2486 = vld [vmem:[#allocation2 + $0xa8] sm:$0xff]
      %v2487 = vld [vmem:[#allocation2 + $0xb0] sm:$0xf]
      %v2488 = vld [vmem:[#allocation2 + $0xb4] sm:$0xff]
      %v2489 = vld [vmem:[#allocation2 + $0xbc] sm:$0xf]
      %v2514 = vunpack.c.l.b16 %v2466
      %v2515 = vunpack.c.h.b16 %v2466
      %v2516 = vunpack.c.l.b16 %v2467
      %v2517 = vunpack.c.l.b16 %v2468
      %v2518 = vunpack.c.h.b16 %v2468
      %v2519 = vunpack.c.l.b16 %v2469
      %v2520 = vunpack.c.l.b16 %v2470
      %v2521 = vunpack.c.h.b16 %v2470
      %v2522 = vunpack.c.l.b16 %v2471
      %v2523 = vunpack.c.l.b16 %v2472
      %v2524 = vunpack.c.h.b16 %v2472
      %v2525 = vunpack.c.l.b16 %v2473
      %v2526 = vunpack.c.l.b16 %v2474
      %v2527 = vunpack.c.h.b16 %v2474
      %v2528 = vunpack.c.l.b16 %v2475
      %v2529 = vunpack.c.l.b16 %v2476
      %v2530 = vunpack.c.h.b16 %v2476
      %v2531 = vunpack.c.l.b16 %v2477
      %v2532 = vunpack.c.l.b16 %v2478
      %v2533 = vunpack.c.h.b16 %v2478
      %v2534 = vunpack.c.l.b16 %v2479
      %v2535 = vunpack.c.l.b16 %v2480
      %v2536 = vunpack.c.h.b16 %v2480
      %v2537 = vunpack.c.l.b16 %v2481
      %v2538 = vunpack.c.l.b16 %v2482
      %v2539 = vunpack.c.h.b16 %v2482
      %v2540 = vunpack.c.l.b16 %v2483
      %v2541 = vunpack.c.l.b16 %v2484
      %v2542 = vunpack.c.h.b16 %v2484
      %v2543 = vunpack.c.l.b16 %v2485
      %v2544 = vunpack.c.l.b16 %v2486
      %v2545 = vunpack.c.h.b16 %v2486
      %v2546 = vunpack.c.l.b16 %v2487
      %v2547 = vunpack.c.l.b16 %v2488
      %v2548 = vunpack.c.h.b16 %v2488
      %v2549 = vunpack.c.l.b16 %v2489
      %v2550 = vpack.c.b16 %v2517, %v2514
      %v2551 = vpack.c.b16 %v2518, %v2515
      %v2552 = vpack.c.b16 %v2519, %v2516
      %v2553 = vpack.c.b16 %v2523, %v2520
      %v2554 = vpack.c.b16 %v2524, %v2521
      %v2555 = vpack.c.b16 %v2525, %v2522
      %v2556 = vpack.c.b16 %v2529, %v2526
      %v2557 = vpack.c.b16 %v2530, %v2527
      %v2558 = vpack.c.b16 %v2531, %v2528
      %v2559 = vpack.c.b16 %v2535, %v2532
      %v2560 = vpack.c.b16 %v2536, %v2533
      %v2561 = vpack.c.b16 %v2537, %v2534
      %v2562 = vpack.c.b16 %v2541, %v2538
      %v2563 = vpack.c.b16 %v2542, %v2539
      %v2564 = vpack.c.b16 %v2543, %v2540
      %v2565 = vpack.c.b16 %v2547, %v2544
      %v2566 = vpack.c.b16 %v2548, %v2545
      %v2567 = vpack.c.b16 %v2549, %v2546
      %2586 = vmatprep.subr.bf16.mxu0 0
      %2587 = vmatpush1.bf16.msra.mxu0 0
      %2588 = vmatprep.subr.bf16.mxu0 0
      %2589 = vmatpush1.bf16.msra.mxu0 0
      %2590 = vmatprep.subr.bf16.mxu0 %v2566
      %2591 = vmatpush1.bf16.msra.mxu0 %v2565
      %2592 = vmatprep.subr.bf16.mxu0 %v2563
      %2593 = vmatpush1.bf16.msra.mxu0 %v2562
      %2594 = vmatprep.subr.bf16.mxu0 %v2560
      %2595 = vmatpush1.bf16.msra.mxu0 %v2559
      %2596 = vmatprep.subr.bf16.mxu0 %v2557
      %2597 = vmatpush1.bf16.msra.mxu0 %v2556
      %2598 = vmatprep.subr.bf16.mxu0 %v2554
      %2599 = vmatpush1.bf16.msra.mxu0 %v2553
      %2600 = vmatprep.subr.bf16.mxu0 %v2551
      %2601 = vmatpush1.bf16.msra.mxu0 %v2550
      %2602 = vmatprep.subr.bf16.mxu0 0
      %2603 = vmatpush2.bf16.msra.mxu0 0
      %2604 = vmatprep.subr.bf16.mxu0 0
      %2605 = vmatpush2.bf16.msra.mxu0 0
      %2606 = vmatprep.subr.bf16.mxu0 0
      %2607 = vmatpush2.bf16.msra.mxu0 0
      %2608 = vmatprep.subr.bf16.mxu0 0
      %2609 = vmatpush2.bf16.msra.mxu0 0
      %2610 = vmatprep.subr.bf16.mxu0 0
      %2611 = vmatpush2.bf16.msra.mxu0 0
      %2612 = vmatprep.subr.bf16.mxu0 0
      %2613 = vmatpush2.bf16.msra.mxu0 0
      %2614 = vmatprep.subr.bf16.mxu0 0
      %2615 = vmatpush2.bf16.msra.mxu0 0
      %2616 = vmatprep.subr.bf16.mxu0 0
      %2617 = vmatpush2.bf16.msra.mxu0 0
      %2618 = vmatprep.mubr.bf16.mxu0 0
      %2619 = vmatmul.mubr.bf16.gmra.mxu0 %v2256
      %v2620 = vpop.f32.mrf.mxu0
      %v2621 = vadd.f32 %v2131, %v2620
      %v2622 = vpop.f32.mrf.mxu0
      %v2623 = vadd.f32 %v2131, %v2622
      %v2624 = vpop.f32.mrf.mxu0
      %v2625 = vadd.f32 %v2136, %v2624
      %v2626 = vpop.f32.mrf.mxu0
      %v2627 = vadd.f32 %v2136, %v2626
      %2628 = vmatprep.mubr.bf16.mxu0 0
      %2629 = vmatmul.mubr.bf16.gmra.mxu0 %v2259
      %v2630 = vpop.f32.mrf.mxu0
      %v2631 = vadd.f32 %v2141, %v2630
      %v2632 = vpop.f32.mrf.mxu0
      %v2633 = vadd.f32 %v2141, %v2632
      %v2634 = vpop.f32.mrf.mxu0
      %v2635 = vadd.f32 %v2146, %v2634
      %v2636 = vpop.f32.mrf.mxu0
      %v2637 = vadd.f32 %v2146, %v2636
      %2638 = vdwg.mxu0
      %2639 = vmatprep.subr.bf16.mxu0 0
      %2640 = vmatpush1.bf16.msra.mxu0 0
      %2641 = vmatprep.subr.bf16.mxu0 0
      %2642 = vmatpush1.bf16.msra.mxu0 0
      %2643 = vmatprep.subr.bf16.mxu0 0
      %2644 = vmatpush1.bf16.msra.mxu0 %v2567
      %2645 = vmatprep.subr.bf16.mxu0 0
      %2646 = vmatpush1.bf16.msra.mxu0 %v2564
      %2647 = vmatprep.subr.bf16.mxu0 0
      %2648 = vmatpush1.bf16.msra.mxu0 %v2561
      %2649 = vmatprep.subr.bf16.mxu0 0
      %2650 = vmatpush1.bf16.msra.mxu0 %v2558
      %2651 = vmatprep.subr.bf16.mxu0 0
      %2652 = vmatpush1.bf16.msra.mxu0 %v2555
      %2653 = vmatprep.subr.bf16.mxu0 0
      %2654 = vmatpush1.bf16.msra.mxu0 %v2552
      %2655 = vmatprep.subr.bf16.mxu0 0
      %2656 = vmatpush2.bf16.msra.mxu0 0
      %2657 = vmatprep.subr.bf16.mxu0 0
      %2658 = vmatpush2.bf16.msra.mxu0 0
      %2659 = vmatprep.subr.bf16.mxu0 0
      %2660 = vmatpush2.bf16.msra.mxu0 0
      %2661 = vmatprep.subr.bf16.mxu0 0
      %2662 = vmatpush2.bf16.msra.mxu0 0
      %2663 = vmatprep.subr.bf16.mxu0 0
      %2664 = vmatpush2.bf16.msra.mxu0 0
      %2665 = vmatprep.subr.bf16.mxu0 0
      %2666 = vmatpush2.bf16.msra.mxu0 0
      %2667 = vmatprep.subr.bf16.mxu0 0
      %2668 = vmatpush2.bf16.msra.mxu0 0
      %2669 = vmatprep.subr.bf16.mxu0 0
      %2670 = vmatpush2.bf16.msra.mxu0 0
      %2671 = vmatprep.mubr.bf16.mxu0 0
      %2672 = vmatmul.mubr.bf16.gmra.mxu0 %v2256
      %v2673 = vpop.f32.mrf.mxu0
      %v2674 = vadd.f32 %v2131, %v2673
      %v2675 = vpop.f32.mrf.mxu0
      %v2676 = vpop.f32.mrf.mxu0
      %v2677 = vadd.f32 %v2136, %v2676
      %v2678 = vpop.f32.mrf.mxu0
      %2679 = vmatprep.mubr.bf16.mxu0 0
      %2680 = vmatmul.mubr.bf16.gmra.mxu0 %v2259
      %v2681 = vpop.f32.mrf.mxu0
      %v2682 = vadd.f32 %v2141, %v2681
      %v2683 = vpop.f32.mrf.mxu0
      %v2684 = vpop.f32.mrf.mxu0
      %v2685 = vadd.f32 %v2146, %v2684
      %v2686 = vpop.f32.mrf.mxu0
      %2687 = vdwg.mxu0
      %v2688 = vmax.f32 %v2621, 0.0
      %v2689 = vmax.f32 %v2623, 0.0
      %v2690 = vmax.f32 %v2674, 0.0
      %v2691 = vmax.f32 %v2625, 0.0
      %v2692 = vmax.f32 %v2627, 0.0
      %v2693 = vmax.f32 %v2677, 0.0
      %v2694 = vmax.f32 %v2631, 0.0
      %v2695 = vmax.f32 %v2633, 0.0
      %v2696 = vmax.f32 %v2682, 0.0
      %v2697 = vmax.f32 %v2635, 0.0
      %v2698 = vmax.f32 %v2637, 0.0
      %v2699 = vmax.f32 %v2685, 0.0
      %v2700 = vpack.c.bf16 %v2691, %v2688
      %v2701 = vpack.c.bf16 %v2692, %v2689
      %v2702 = vpack.c.bf16 %v2693, %v2690
      %v2703 = vpack.c.bf16 %v2697, %v2694
      %v2704 = vpack.c.bf16 %v2698, %v2695
      %v2705 = vpack.c.bf16 %v2699, %v2696
      %2706 = vmatprep.subr.bf16.mxu0 0
      %2707 = vmatpush1.bf16.msra.mxu0 0
      %2708 = vmatprep.subr.bf16.mxu0 0
      %2709 = vmatpush1.bf16.msra.mxu0 0
      %2710 = vmatprep.subr.bf16.mxu0 0
      %2711 = vmatpush1.bf16.msra.mxu0 0
      %2712 = vmatprep.subr.bf16.mxu0 0
      %2713 = vmatpush1.bf16.msra.mxu0 0
      %2714 = vmatprep.subr.bf16.mxu0 0
      %2715 = vmatpush1.bf16.msra.mxu0 0
      %2716 = vmatprep.subr.bf16.mxu0 0
      %2717 = vmatpush1.bf16.msra.mxu0 0
      %2718 = vmatprep.subr.bf16.mxu0 %v2704
      %2719 = vmatpush1.bf16.msra.mxu0 %v2703
      %2720 = vmatprep.subr.bf16.mxu0 %v2701
      %2721 = vmatpush1.bf16.msra.mxu0 %v2700
      %2722 = vmatprep.subr.bf16.mxu0 0
      %2723 = vmatpush2.bf16.msra.mxu0 0
      %2724 = vmatprep.subr.bf16.mxu0 0
      %2725 = vmatpush2.bf16.msra.mxu0 0
      %2726 = vmatprep.subr.bf16.mxu0 0
      %2727 = vmatpush2.bf16.msra.mxu0 0
      %2728 = vmatprep.subr.bf16.mxu0 0
      %2729 = vmatpush2.bf16.msra.mxu0 0
      %2730 = vmatprep.subr.bf16.mxu0 0
      %2731 = vmatpush2.bf16.msra.mxu0 0
      %2732 = vmatprep.subr.bf16.mxu0 0
      %2733 = vmatpush2.bf16.msra.mxu0 0
      %2734 = vmatprep.subr.bf16.mxu0 0
      %2735 = vmatpush2.bf16.msra.mxu0 0
      %2736 = vmatprep.subr.bf16.mxu0 0
      %2737 = vmatpush2.bf16.msra.mxu0 0
      %2738 = vmatprep.mubr.bf16.mxu0 0
      %2739 = vmatmul.mubr.bf16.gmra.mxu0 %v2383
      %v2740 = vpop.f32.mrf.mxu0
      %v2741 = vadd.f32 0.0, %v2740
      %v2742 = vpop.f32.mrf.mxu0
      %v2743 = vadd.f32 0.0, %v2742
      %v2744 = vpop.f32.mrf.mxu0
      %v2745 = vpop.f32.mrf.mxu0
      %2746 = vdwg.mxu0
      %2747 = vmatprep.subr.bf16.mxu0 0
      %2748 = vmatpush1.bf16.msra.mxu0 0
      %2749 = vmatprep.subr.bf16.mxu0 0
      %2750 = vmatpush1.bf16.msra.mxu0 0
      %2751 = vmatprep.subr.bf16.mxu0 0
      %2752 = vmatpush1.bf16.msra.mxu0 0
      %2753 = vmatprep.subr.bf16.mxu0 0
      %2754 = vmatpush1.bf16.msra.mxu0 0
      %2755 = vmatprep.subr.bf16.mxu0 0
      %2756 = vmatpush1.bf16.msra.mxu0 0
      %2757 = vmatprep.subr.bf16.mxu0 0
      %2758 = vmatpush1.bf16.msra.mxu0 0
      %2759 = vmatprep.subr.bf16.mxu0 0
      %2760 = vmatpush1.bf16.msra.mxu0 %v2705
      %2761 = vmatprep.subr.bf16.mxu0 0
      %2762 = vmatpush1.bf16.msra.mxu0 %v2702
      %2763 = vmatprep.subr.bf16.mxu0 0
      %2764 = vmatpush2.bf16.msra.mxu0 0
      %2765 = vmatprep.subr.bf16.mxu0 0
      %2766 = vmatpush2.bf16.msra.mxu0 0
      %2767 = vmatprep.subr.bf16.mxu0 0
      %2768 = vmatpush2.bf16.msra.mxu0 0
      %2769 = vmatprep.subr.bf16.mxu0 0
      %2770 = vmatpush2.bf16.msra.mxu0 0
      %2771 = vmatprep.subr.bf16.mxu0 0
      %2772 = vmatpush2.bf16.msra.mxu0 0
      %2773 = vmatprep.subr.bf16.mxu0 0
      %2774 = vmatpush2.bf16.msra.mxu0 0
      %2775 = vmatprep.subr.bf16.mxu0 0
      %2776 = vmatpush2.bf16.msra.mxu0 0
      %2777 = vmatprep.subr.bf16.mxu0 0
      %2778 = vmatpush2.bf16.msra.mxu0 0
      %2779 = vmatprep.mubr.bf16.mxu0 0
      %2780 = vmatmul.mubr.bf16.gmra.mxu0 %v2383
      %v2781 = vpop.f32.mrf.mxu0
      %v2782 = vadd.f32 0.0, %v2781
      %v2783 = vpop.f32.mrf.mxu0
      %v2784 = vpop.f32.mrf.mxu0
      %v2785 = vpop.f32.mrf.mxu0
      %2786 = vdwg.mxu0
      %v2787 = vadd.f32 %v2420, %v2741
      %v2788 = vadd.f32 %v2422, %v2743
      %v2789 = vadd.f32 %v2461, %v2782
      %v2790 = vmul.f32 %v2787, 0.5
      %v2791 = vmul.f32 %v2788, 0.5
      %v2792 = vmul.f32 %v2789, 0.5
      %v2796 = vrot.slane %v2790, 3
      %v2797 = vrot.slane %v2791, 3
      %v2798 = vrot.slane %v2792, 3
      %vm2802 = vcmask 1047808
      %2803 = vrot.lane.b32.xlu0 %v2796, 32
      %v2804 = vpop.permute.xlu0 %2803
      %v2805 = vsel %vm2802, %v2804, %v2798
      %2806 = vrot.lane.b32.xlu0 %v2797, 32
      %v2807 = vpop.permute.xlu0 %2806
      %2808 = vrot.lane.b32.xlu0 %v2805, 32
      %v2809 = vpop.permute.xlu0 %2808
      %v2810 = vsel %vm2802, %v2807, %v2804
      %v2811 = vsel %vm2802, %v2809, %v2807
      %v2812 = vsel %vm2100, 1, 0
      %v2813 = vlaneseq
      %v2814 = vshrl.u32 %v2813, 7
      %v2815 = vsub.s32 0, %v2814
      %v2816 = vrot.slane %v2812, %v2815
      %v2817 = vlaneseq
      %v2818 = vshrl.u32 %v2817, 7
      %v2819 = vsub.s32 1, %v2818
      %v2820 = vrot.slane %v2812, %v2819
      %v2821 = vlaneseq
      %v2822 = vshrl.u32 %v2821, 7
      %v2823 = vsub.s32 2, %v2822
      %v2824 = vrot.slane %v2812, %v2823
      %vm2825 = vcmp.eq.s32.totalorder %v2816, 1
      %vm2826 = vcmp.eq.s32.totalorder %v2820, 1
      %vm2827 = vcmp.eq.s32.totalorder %v2824, 1
      %2831 = vrot.lane.b32.xlu0 %v2805, 97
      %v2832 = vpop.permute.xlu0 %2831
      %2833 = vrot.lane.b32.xlu0 %v2810, 97
      %v2834 = vpop.permute.xlu0 %2833
      %2835 = vrot.lane.b32.xlu0 %v2811, 97
      %v2836 = vpop.permute.xlu0 %2835
      %vm2837 = vcmask 793600
      %v2838 = vsel %vm2837, %v2832, %v2834
      %v2839 = vsel %vm2837, %v2834, %v2836
      %2843 = vrot.lane.b32.xlu0 %v2796, 127
      %v2844 = vpop.permute.xlu0 %2843
      %2845 = vrot.lane.b32.xlu0 %v2797, 127
      %v2846 = vpop.permute.xlu0 %2845
      %2847 = vrot.lane.b32.xlu0 %v2805, 127
      %v2848 = vpop.permute.xlu0 %2847
      %vm2849 = vcmask 1039360
      %v2850 = vsel %vm2849, %v2844, %v2846
      %v2851 = vsel %vm2849, %v2846, %v2848
      %v2855 = vsel %vm2825, %v2838, %v2850
      %v2856 = vsel %vm2826, %v2839, %v2851
      %v2857 = vsel %vm2827, %v2836, %v2848
      %v2861 = vrot.slane %v2855, 5
      %v2862 = vrot.slane %v2856, 5
      %v2863 = vrot.slane %v2857, 5
      %v2867 = vadd.f32 %v2790, %v2861
      %v2868 = vadd.f32 %v2791, %v2862
      %v2869 = vadd.f32 %v2792, %v2863
      %v2870 = vmul.f32 %v2867, 0.5
      %v2871 = vmul.f32 %v2868, 0.5
      %v2872 = vmul.f32 %v2869, 0.5
      %v2876 = vrot.slane %v2870, 3
      %v2877 = vrot.slane %v2871, 3
      %v2878 = vrot.slane %v2872, 3
      %2882 = vrot.lane.b32.xlu0 %v2876, 32
      %v2883 = vpop.permute.xlu0 %2882
      %v2884 = vsel %vm2802, %v2883, %v2878
      %2885 = vrot.lane.b32.xlu0 %v2877, 32
      %v2886 = vpop.permute.xlu0 %2885
      %2887 = vrot.lane.b32.xlu0 %v2884, 32
      %v2888 = vpop.permute.xlu0 %2887
      %v2889 = vsel %vm2802, %v2886, %v2883
      %v2890 = vsel %vm2802, %v2888, %v2886
      %v2891 = vsel %vm2103, 1, 0
      %v2892 = vlaneseq
      %v2893 = vshrl.u32 %v2892, 7
      %v2894 = vsub.s32 0, %v2893
      %v2895 = vrot.slane %v2891, %v2894
      %v2896 = vlaneseq
      %v2897 = vshrl.u32 %v2896, 7
      %v2898 = vsub.s32 1, %v2897
      %v2899 = vrot.slane %v2891, %v2898
      %v2900 = vlaneseq
      %v2901 = vshrl.u32 %v2900, 7
      %v2902 = vsub.s32 2, %v2901
      %v2903 = vrot.slane %v2891, %v2902
      %vm2904 = vcmp.eq.s32.totalorder %v2895, 1
      %vm2905 = vcmp.eq.s32.totalorder %v2899, 1
      %vm2906 = vcmp.eq.s32.totalorder %v2903, 1
      %2910 = vrot.lane.b32.xlu0 %v2884, 114
      %v2911 = vpop.permute.xlu0 %2910
      %2912 = vrot.lane.b32.xlu0 %v2889, 114
      %v2913 = vpop.permute.xlu0 %2912
      %2914 = vrot.lane.b32.xlu0 %v2890, 114
      %v2915 = vpop.permute.xlu0 %2914
      %vm2916 = vcmask 932864
      %v2917 = vsel %vm2916, %v2911, %v2913
      %v2918 = vsel %vm2916, %v2913, %v2915
      %2922 = vrot.lane.b32.xlu0 %v2876, 110
      %v2923 = vpop.permute.xlu0 %2922
      %2924 = vrot.lane.b32.xlu0 %v2877, 110
      %v2925 = vpop.permute.xlu0 %2924
      %2926 = vrot.lane.b32.xlu0 %v2884, 110
      %v2927 = vpop.permute.xlu0 %2926
      %vm2928 = vcmask 900096
      %v2929 = vsel %vm2928, %v2923, %v2925
      %v2930 = vsel %vm2928, %v2925, %v2927
      %v2934 = vsel %vm2904, %v2917, %v2929
      %v2935 = vsel %vm2905, %v2918, %v2930
      %v2936 = vsel %vm2906, %v2915, %v2927
      %v2940 = vrot.slane %v2934, 5
      %v2941 = vrot.slane %v2935, 5
      %v2942 = vrot.slane %v2936, 5
      %v2946 = vadd.f32 %v2870, %v2940
      %v2947 = vadd.f32 %v2871, %v2941
      %v2948 = vadd.f32 %v2872, %v2942
      %v2949 = vmul.f32 %v2946, 0.5
      %v2950 = vmul.f32 %v2947, 0.5
      %v2951 = vmul.f32 %v2948, 0.5
      %2953 = vset.pattern.permute.xlu0 0
      %2954 = vperm.xlu0 %2953, %v2098
      %v2955 = vpop.permute.xlu0 %2954
      %v2956 = vrot.slane %v2955, 5
      %v2958 = vadd.f32 %v2949, %v2956
      %v2959 = vadd.f32 %v2950, %v2956
      %v2960 = vadd.f32 %v2951, %v2956
      %v2964 = vrot.slane %v2958, 3
      %v2965 = vrot.slane %v2959, 3
      %v2966 = vrot.slane %v2960, 3
      %v2970 = vadd.f32 %v2420, %v2964
      %v2971 = vadd.f32 %v2422, %v2965
      %v2972 = vadd.f32 %v2461, %v2966
      %v2975 = vcombine.low %v2970, %v2971
      %2977 = vst [vmem:[%s393] sm:$0x77] %v2975
      %vm2978 = vcmask 256000
      %2979 = vst.msk [vmem:[%s393 + $0x8] sm:$0x7] %vm2978, %v2972
      %v2980 = vadd.f32 %v2741, %v2964
      %v2981 = vadd.f32 %v2743, %v2965
      %v2982 = vadd.f32 %v2782, %v2966
      %v2985 = vcombine.low %v2980, %v2981
      %s2987 = scalar_lea.vmem %s393, 12
      %2988 = vst [vmem:[%s2987] sm:$0x77] %v2985
      %2989 = vst.msk [vmem:[%s2987 + $0x8] sm:$0x7] %vm2978, %v2982
      %v2990 = vld [vmem:[#allocation2 + $0x60] sm:$0xff]
      %v2991 = vld [vmem:[#allocation2 + $0x68] sm:$0xf]
      %v2992 = vld [vmem:[#allocation2 + $0x6c] sm:$0xff]
      %v2993 = vld [vmem:[#allocation2 + $0x74] sm:$0xf]
      %v2994 = vld [vmem:[#allocation2 + $0x78] sm:$0xff]
      %v2995 = vld [vmem:[#allocation2 + $0x80] sm:$0xf]
      %v2996 = vld [vmem:[#allocation2 + $0x84] sm:$0xff]
      %v2997 = vld [vmem:[#allocation2 + $0x8c] sm:$0xf]
      %v2998 = vld [vmem:[#allocation2 + $0x90] sm:$0xff]
      %v2999 = vld [vmem:[#allocation2 + $0x98] sm:$0xf]
      %v3000 = vld [vmem:[#allocation2 + $0x9c] sm:$0xff]
      %v3001 = vld [vmem:[#allocation2 + $0xa4] sm:$0xf]
      %v3002 = vld [vmem:[#allocation2 + $0xa8] sm:$0xff]
      %v3003 = vld [vmem:[#allocation2 + $0xb0] sm:$0xf]
      %v3004 = vld [vmem:[#allocation2 + $0xb4] sm:$0xff]
      %v3005 = vld [vmem:[#allocation2 + $0xbc] sm:$0xf]
      %v3006 = vld [vmem:[#allocation2 + $0xc0] sm:$0xff]
      %v3007 = vld [vmem:[#allocation2 + $0xc8] sm:$0xf]
      %v3008 = vld [vmem:[#allocation2 + $0xcc] sm:$0xff]
      %v3009 = vld [vmem:[#allocation2 + $0xd4] sm:$0xf]
      %v3010 = vld [vmem:[#allocation2 + $0xd8] sm:$0xff]
      %v3011 = vld [vmem:[#allocation2 + $0xe0] sm:$0xf]
      %v3012 = vld [vmem:[#allocation2 + $0xe4] sm:$0xff]
      %v3013 = vld [vmem:[#allocation2 + $0xec] sm:$0xf]
      %v3038 = vunpack.c.l.b16 %v2990
      %v3039 = vunpack.c.h.b16 %v2990
      %v3040 = vunpack.c.l.b16 %v2991
      %v3041 = vunpack.c.l.b16 %v2992
      %v3042 = vunpack.c.h.b16 %v2992
      %v3043 = vunpack.c.l.b16 %v2993
      %v3044 = vunpack.c.l.b16 %v2994
      %v3045 = vunpack.c.h.b16 %v2994
      %v3046 = vunpack.c.l.b16 %v2995
      %v3047 = vunpack.c.l.b16 %v2996
      %v3048 = vunpack.c.h.b16 %v2996
      %v3049 = vunpack.c.l.b16 %v2997
      %v3050 = vunpack.c.l.b16 %v2998
      %v3051 = vunpack.c.h.b16 %v2998
      %v3052 = vunpack.c.l.b16 %v2999
      %v3053 = vunpack.c.l.b16 %v3000
      %v3054 = vunpack.c.h.b16 %v3000
      %v3055 = vunpack.c.l.b16 %v3001
      %v3056 = vunpack.c.l.b16 %v3002
      %v3057 = vunpack.c.h.b16 %v3002
      %v3058 = vunpack.c.l.b16 %v3003
      %v3059 = vunpack.c.l.b16 %v3004
      %v3060 = vunpack.c.h.b16 %v3004
      %v3061 = vunpack.c.l.b16 %v3005
      %v3062 = vunpack.c.l.b16 %v3006
      %v3063 = vunpack.c.h.b16 %v3006
      %v3064 = vunpack.c.l.b16 %v3007
      %v3065 = vunpack.c.l.b16 %v3008
      %v3066 = vunpack.c.h.b16 %v3008
      %v3067 = vunpack.c.l.b16 %v3009
      %v3068 = vunpack.c.l.b16 %v3010
      %v3069 = vunpack.c.h.b16 %v3010
      %v3070 = vunpack.c.l.b16 %v3011
      %v3071 = vunpack.c.l.b16 %v3012
      %v3072 = vunpack.c.h.b16 %v3012
      %v3073 = vunpack.c.l.b16 %v3013
      %v3074 = vpack.c.b16 %v3041, %v3038
      %v3075 = vpack.c.b16 %v3042, %v3039
      %v3076 = vpack.c.b16 %v3043, %v3040
      %v3077 = vpack.c.b16 %v3047, %v3044
      %v3078 = vpack.c.b16 %v3048, %v3045
      %v3079 = vpack.c.b16 %v3049, %v3046
      %v3080 = vpack.c.b16 %v3053, %v3050
      %v3081 = vpack.c.b16 %v3054, %v3051
      %v3082 = vpack.c.b16 %v3055, %v3052
      %v3083 = vpack.c.b16 %v3059, %v3056
      %v3084 = vpack.c.b16 %v3060, %v3057
      %v3085 = vpack.c.b16 %v3061, %v3058
      %v3086 = vpack.c.b16 %v3065, %v3062
      %v3087 = vpack.c.b16 %v3066, %v3063
      %v3088 = vpack.c.b16 %v3067, %v3064
      %v3089 = vpack.c.b16 %v3071, %v3068
      %v3090 = vpack.c.b16 %v3072, %v3069
      %v3091 = vpack.c.b16 %v3073, %v3070
      %3110 = vmatprep.subr.bf16.mxu0 0
      %3111 = vmatpush1.bf16.msra.mxu0 0
      %3112 = vmatprep.subr.bf16.mxu0 0
      %3113 = vmatpush1.bf16.msra.mxu0 0
      %3114 = vmatprep.subr.bf16.mxu0 %v3090
      %3115 = vmatpush1.bf16.msra.mxu0 %v3089
      %3116 = vmatprep.subr.bf16.mxu0 %v3087
      %3117 = vmatpush1.bf16.msra.mxu0 %v3086
      %3118 = vmatprep.subr.bf16.mxu0 %v3084
      %3119 = vmatpush1.bf16.msra.mxu0 %v3083
      %3120 = vmatprep.subr.bf16.mxu0 %v3081
      %3121 = vmatpush1.bf16.msra.mxu0 %v3080
      %3122 = vmatprep.subr.bf16.mxu0 %v3078
      %3123 = vmatpush1.bf16.msra.mxu0 %v3077
      %3124 = vmatprep.subr.bf16.mxu0 %v3075
      %3125 = vmatpush1.bf16.msra.mxu0 %v3074
      %3126 = vmatprep.subr.bf16.mxu0 0
      %3127 = vmatpush2.bf16.msra.mxu0 0
      %3128 = vmatprep.subr.bf16.mxu0 0
      %3129 = vmatpush2.bf16.msra.mxu0 0
      %3130 = vmatprep.subr.bf16.mxu0 0
      %3131 = vmatpush2.bf16.msra.mxu0 0
      %3132 = vmatprep.subr.bf16.mxu0 0
      %3133 = vmatpush2.bf16.msra.mxu0 0
      %3134 = vmatprep.subr.bf16.mxu0 0
      %3135 = vmatpush2.bf16.msra.mxu0 0
      %3136 = vmatprep.subr.bf16.mxu0 0
      %3137 = vmatpush2.bf16.msra.mxu0 0
      %3138 = vmatprep.subr.bf16.mxu0 0
      %3139 = vmatpush2.bf16.msra.mxu0 0
      %3140 = vmatprep.subr.bf16.mxu0 0
      %3141 = vmatpush2.bf16.msra.mxu0 0
      %3142 = vmatprep.mubr.bf16.mxu0 0
      %3143 = vmatmul.mubr.bf16.gmra.mxu0 %v2256
      %v3144 = vpop.f32.mrf.mxu0
      %v3145 = vadd.f32 %v2131, %v3144
      %v3146 = vpop.f32.mrf.mxu0
      %v3147 = vadd.f32 %v2131, %v3146
      %v3148 = vpop.f32.mrf.mxu0
      %v3149 = vadd.f32 %v2136, %v3148
      %v3150 = vpop.f32.mrf.mxu0
      %v3151 = vadd.f32 %v2136, %v3150
      %3152 = vmatprep.mubr.bf16.mxu0 0
      %3153 = vmatmul.mubr.bf16.gmra.mxu0 %v2259
      %v3154 = vpop.f32.mrf.mxu0
      %v3155 = vadd.f32 %v2141, %v3154
      %v3156 = vpop.f32.mrf.mxu0
      %v3157 = vadd.f32 %v2141, %v3156
      %v3158 = vpop.f32.mrf.mxu0
      %v3159 = vadd.f32 %v2146, %v3158
      %v3160 = vpop.f32.mrf.mxu0
      %v3161 = vadd.f32 %v2146, %v3160
      %3162 = vdwg.mxu0
      %3163 = vmatprep.subr.bf16.mxu0 0
      %3164 = vmatpush1.bf16.msra.mxu0 0
      %3165 = vmatprep.subr.bf16.mxu0 0
      %3166 = vmatpush1.bf16.msra.mxu0 0
      %3167 = vmatprep.subr.bf16.mxu0 0
      %3168 = vmatpush1.bf16.msra.mxu0 %v3091
      %3169 = vmatprep.subr.bf16.mxu0 0
      %3170 = vmatpush1.bf16.msra.mxu0 %v3088
      %3171 = vmatprep.subr.bf16.mxu0 0
      %3172 = vmatpush1.bf16.msra.mxu0 %v3085
      %3173 = vmatprep.subr.bf16.mxu0 0
      %3174 = vmatpush1.bf16.msra.mxu0 %v3082
      %3175 = vmatprep.subr.bf16.mxu0 0
      %3176 = vmatpush1.bf16.msra.mxu0 %v3079
      %3177 = vmatprep.subr.bf16.mxu0 0
      %3178 = vmatpush1.bf16.msra.mxu0 %v3076
      %3179 = vmatprep.subr.bf16.mxu0 0
      %3180 = vmatpush2.bf16.msra.mxu0 0
      %3181 = vmatprep.subr.bf16.mxu0 0
      %3182 = vmatpush2.bf16.msra.mxu0 0
      %3183 = vmatprep.subr.bf16.mxu0 0
      %3184 = vmatpush2.bf16.msra.mxu0 0
      %3185 = vmatprep.subr.bf16.mxu0 0
      %3186 = vmatpush2.bf16.msra.mxu0 0
      %3187 = vmatprep.subr.bf16.mxu0 0
      %3188 = vmatpush2.bf16.msra.mxu0 0
      %3189 = vmatprep.subr.bf16.mxu0 0
      %3190 = vmatpush2.bf16.msra.mxu0 0
      %3191 = vmatprep.subr.bf16.mxu0 0
      %3192 = vmatpush2.bf16.msra.mxu0 0
      %3193 = vmatprep.subr.bf16.mxu0 0
      %3194 = vmatpush2.bf16.msra.mxu0 0
      %3195 = vmatprep.mubr.bf16.mxu0 0
      %3196 = vmatmul.mubr.bf16.gmra.mxu0 %v2256
      %v3197 = vpop.f32.mrf.mxu0
      %v3198 = vadd.f32 %v2131, %v3197
      %v3199 = vpop.f32.mrf.mxu0
      %v3200 = vpop.f32.mrf.mxu0
      %v3201 = vadd.f32 %v2136, %v3200
      %v3202 = vpop.f32.mrf.mxu0
      %3203 = vmatprep.mubr.bf16.mxu0 0
      %3204 = vmatmul.mubr.bf16.gmra.mxu0 %v2259
      %v3205 = vpop.f32.mrf.mxu0
      %v3206 = vadd.f32 %v2141, %v3205
      %v3207 = vpop.f32.mrf.mxu0
      %v3208 = vpop.f32.mrf.mxu0
      %v3209 = vadd.f32 %v2146, %v3208
      %v3210 = vpop.f32.mrf.mxu0
      %3211 = vdwg.mxu0
      %v3212 = vmax.f32 %v3145, 0.0
      %v3213 = vmax.f32 %v3147, 0.0
      %v3214 = vmax.f32 %v3198, 0.0
      %v3215 = vmax.f32 %v3149, 0.0
      %v3216 = vmax.f32 %v3151, 0.0
      %v3217 = vmax.f32 %v3201, 0.0
      %v3218 = vmax.f32 %v3155, 0.0
      %v3219 = vmax.f32 %v3157, 0.0
      %v3220 = vmax.f32 %v3206, 0.0
      %v3221 = vmax.f32 %v3159, 0.0
      %v3222 = vmax.f32 %v3161, 0.0
      %v3223 = vmax.f32 %v3209, 0.0
      %v3224 = vpack.c.bf16 %v3215, %v3212
      %v3225 = vpack.c.bf16 %v3216, %v3213
      %v3226 = vpack.c.bf16 %v3217, %v3214
      %v3227 = vpack.c.bf16 %v3221, %v3218
      %v3228 = vpack.c.bf16 %v3222, %v3219
      %v3229 = vpack.c.bf16 %v3223, %v3220
      %3230 = vmatprep.subr.bf16.mxu0 0
      %3231 = vmatpush1.bf16.msra.mxu0 0
      %3232 = vmatprep.subr.bf16.mxu0 0
      %3233 = vmatpush1.bf16.msra.mxu0 0
      %3234 = vmatprep.subr.bf16.mxu0 0
      %3235 = vmatpush1.bf16.msra.mxu0 0
      %3236 = vmatprep.subr.bf16.mxu0 0
      %3237 = vmatpush1.bf16.msra.mxu0 0
      %3238 = vmatprep.subr.bf16.mxu0 0
      %3239 = vmatpush1.bf16.msra.mxu0 0
      %3240 = vmatprep.subr.bf16.mxu0 0
      %3241 = vmatpush1.bf16.msra.mxu0 0
      %3242 = vmatprep.subr.bf16.mxu0 %v3228
      %3243 = vmatpush1.bf16.msra.mxu0 %v3227
      %3244 = vmatprep.subr.bf16.mxu0 %v3225
      %3245 = vmatpush1.bf16.msra.mxu0 %v3224
      %3246 = vmatprep.subr.bf16.mxu0 0
      %3247 = vmatpush2.bf16.msra.mxu0 0
      %3248 = vmatprep.subr.bf16.mxu0 0
      %3249 = vmatpush2.bf16.msra.mxu0 0
      %3250 = vmatprep.subr.bf16.mxu0 0
      %3251 = vmatpush2.bf16.msra.mxu0 0
      %3252 = vmatprep.subr.bf16.mxu0 0
      %3253 = vmatpush2.bf16.msra.mxu0 0
      %3254 = vmatprep.subr.bf16.mxu0 0
      %3255 = vmatpush2.bf16.msra.mxu0 0
      %3256 = vmatprep.subr.bf16.mxu0 0
      %3257 = vmatpush2.bf16.msra.mxu0 0
      %3258 = vmatprep.subr.bf16.mxu0 0
      %3259 = vmatpush2.bf16.msra.mxu0 0
      %3260 = vmatprep.subr.bf16.mxu0 0
      %3261 = vmatpush2.bf16.msra.mxu0 0
      %3262 = vmatprep.mubr.bf16.mxu0 0
      %3263 = vmatmul.mubr.bf16.gmra.mxu0 %v2383
      %v3264 = vpop.f32.mrf.mxu0
      %v3265 = vadd.f32 0.0, %v3264
      %v3266 = vpop.f32.mrf.mxu0
      %v3267 = vadd.f32 0.0, %v3266
      %v3268 = vpop.f32.mrf.mxu0
      %v3269 = vpop.f32.mrf.mxu0
      %3270 = vdwg.mxu0
      %3271 = vmatprep.subr.bf16.mxu0 0
      %3272 = vmatpush1.bf16.msra.mxu0 0
      %3273 = vmatprep.subr.bf16.mxu0 0
      %3274 = vmatpush1.bf16.msra.mxu0 0
      %3275 = vmatprep.subr.bf16.mxu0 0
      %3276 = vmatpush1.bf16.msra.mxu0 0
      %3277 = vmatprep.subr.bf16.mxu0 0
      %3278 = vmatpush1.bf16.msra.mxu0 0
      %3279 = vmatprep.subr.bf16.mxu0 0
      %3280 = vmatpush1.bf16.msra.mxu0 0
      %3281 = vmatprep.subr.bf16.mxu0 0
      %3282 = vmatpush1.bf16.msra.mxu0 0
      %3283 = vmatprep.subr.bf16.mxu0 0
      %3284 = vmatpush1.bf16.msra.mxu0 %v3229
      %3285 = vmatprep.subr.bf16.mxu0 0
      %3286 = vmatpush1.bf16.msra.mxu0 %v3226
      %3287 = vmatprep.subr.bf16.mxu0 0
      %3288 = vmatpush2.bf16.msra.mxu0 0
      %3289 = vmatprep.subr.bf16.mxu0 0
      %3290 = vmatpush2.bf16.msra.mxu0 0
      %3291 = vmatprep.subr.bf16.mxu0 0
      %3292 = vmatpush2.bf16.msra.mxu0 0
      %3293 = vmatprep.subr.bf16.mxu0 0
      %3294 = vmatpush2.bf16.msra.mxu0 0
      %3295 = vmatprep.subr.bf16.mxu0 0
      %3296 = vmatpush2.bf16.msra.mxu0 0
      %3297 = vmatprep.subr.bf16.mxu0 0
      %3298 = vmatpush2.bf16.msra.mxu0 0
      %3299 = vmatprep.subr.bf16.mxu0 0
      %3300 = vmatpush2.bf16.msra.mxu0 0
      %3301 = vmatprep.subr.bf16.mxu0 0
      %3302 = vmatpush2.bf16.msra.mxu0 0
      %3303 = vmatprep.mubr.bf16.mxu0 0
      %3304 = vmatmul.mubr.bf16.gmra.mxu0 %v2383
      %v3305 = vpop.f32.mrf.mxu0
      %v3306 = vadd.f32 0.0, %v3305
      %v3307 = vpop.f32.mrf.mxu0
      %v3308 = vpop.f32.mrf.mxu0
      %v3309 = vpop.f32.mrf.mxu0
      %3310 = vdwg.mxu0
      %v3311 = vld [vmem:[#allocation2 + $0x90] sm:$0xff]
      %v3312 = vld [vmem:[#allocation2 + $0x98] sm:$0xf]
      %v3313 = vld [vmem:[#allocation2 + $0x9c] sm:$0xff]
      %v3314 = vld [vmem:[#allocation2 + $0xa4] sm:$0xf]
      %v3315 = vld [vmem:[#allocation2 + $0xa8] sm:$0xff]
      %v3316 = vld [vmem:[#allocation2 + $0xb0] sm:$0xf]
      %v3317 = vld [vmem:[#allocation2 + $0xb4] sm:$0xff]
      %v3318 = vld [vmem:[#allocation2 + $0xbc] sm:$0xf]
      %v3319 = vld [vmem:[#allocation2 + $0xc0] sm:$0xff]
      %v3320 = vld [vmem:[#allocation2 + $0xc8] sm:$0xf]
      %v3321 = vld [vmem:[#allocation2 + $0xcc] sm:$0xff]
      %v3322 = vld [vmem:[#allocation2 + $0xd4] sm:$0xf]
      %v3323 = vld [vmem:[#allocation2 + $0xd8] sm:$0xff]
      %v3324 = vld [vmem:[#allocation2 + $0xe0] sm:$0xf]
      %v3325 = vld [vmem:[#allocation2 + $0xe4] sm:$0xff]
      %v3326 = vld [vmem:[#allocation2 + $0xec] sm:$0xf]
      %v3327 = vld [vmem:[#allocation2 + $0xf0] sm:$0xff]
      %v3328 = vld [vmem:[#allocation2 + $0xf8] sm:$0xf]
      %v3329 = vld [vmem:[#allocation2 + $0xfc] sm:$0xff]
      %v3330 = vld [vmem:[#allocation2 + $0x104] sm:$0xf]
      %v3331 = vld [vmem:[#allocation2 + $0x108] sm:$0xff]
      %v3332 = vld [vmem:[#allocation2 + $0x110] sm:$0xf]
      %v3333 = vld [vmem:[#allocation2 + $0x114] sm:$0xff]
      %v3334 = vld [vmem:[#allocation2 + $0x11c] sm:$0xf]
      %v3359 = vunpack.c.l.b16 %v3311
      %v3360 = vunpack.c.h.b16 %v3311
      %v3361 = vunpack.c.l.b16 %v3312
      %v3362 = vunpack.c.l.b16 %v3313
      %v3363 = vunpack.c.h.b16 %v3313
      %v3364 = vunpack.c.l.b16 %v3314
      %v3365 = vunpack.c.l.b16 %v3315
      %v3366 = vunpack.c.h.b16 %v3315
      %v3367 = vunpack.c.l.b16 %v3316
      %v3368 = vunpack.c.l.b16 %v3317
      %v3369 = vunpack.c.h.b16 %v3317
      %v3370 = vunpack.c.l.b16 %v3318
      %v3371 = vunpack.c.l.b16 %v3319
      %v3372 = vunpack.c.h.b16 %v3319
      %v3373 = vunpack.c.l.b16 %v3320
      %v3374 = vunpack.c.l.b16 %v3321
      %v3375 = vunpack.c.h.b16 %v3321
      %v3376 = vunpack.c.l.b16 %v3322
      %v3377 = vunpack.c.l.b16 %v3323
      %v3378 = vunpack.c.h.b16 %v3323
      %v3379 = vunpack.c.l.b16 %v3324
      %v3380 = vunpack.c.l.b16 %v3325
      %v3381 = vunpack.c.h.b16 %v3325
      %v3382 = vunpack.c.l.b16 %v3326
      %v3383 = vunpack.c.l.b16 %v3327
      %v3384 = vunpack.c.h.b16 %v3327
      %v3385 = vunpack.c.l.b16 %v3328
      %v3386 = vunpack.c.l.b16 %v3329
      %v3387 = vunpack.c.h.b16 %v3329
      %v3388 = vunpack.c.l.b16 %v3330
      %v3389 = vunpack.c.l.b16 %v3331
      %v3390 = vunpack.c.h.b16 %v3331
      %v3391 = vunpack.c.l.b16 %v3332
      %v3392 = vunpack.c.l.b16 %v3333
      %v3393 = vunpack.c.h.b16 %v3333
      %v3394 = vunpack.c.l.b16 %v3334
      %v3395 = vpack.c.b16 %v3362, %v3359
      %v3396 = vpack.c.b16 %v3363, %v3360
      %v3397 = vpack.c.b16 %v3364, %v3361
      %v3398 = vpack.c.b16 %v3368, %v3365
      %v3399 = vpack.c.b16 %v3369, %v3366
      %v3400 = vpack.c.b16 %v3370, %v3367
      %v3401 = vpack.c.b16 %v3374, %v3371
      %v3402 = vpack.c.b16 %v3375, %v3372
      %v3403 = vpack.c.b16 %v3376, %v3373
      %v3404 = vpack.c.b16 %v3380, %v3377
      %v3405 = vpack.c.b16 %v3381, %v3378
      %v3406 = vpack.c.b16 %v3382, %v3379
      %v3407 = vpack.c.b16 %v3386, %v3383
      %v3408 = vpack.c.b16 %v3387, %v3384
      %v3409 = vpack.c.b16 %v3388, %v3385
      %v3410 = vpack.c.b16 %v3392, %v3389
      %v3411 = vpack.c.b16 %v3393, %v3390
      %v3412 = vpack.c.b16 %v3394, %v3391
      %3431 = vmatprep.subr.bf16.mxu0 0
      %3432 = vmatpush1.bf16.msra.mxu0 0
      %3433 = vmatprep.subr.bf16.mxu0 0
      %3434 = vmatpush1.bf16.msra.mxu0 0
      %3435 = vmatprep.subr.bf16.mxu0 %v3411
      %3436 = vmatpush1.bf16.msra.mxu0 %v3410
      %3437 = vmatprep.subr.bf16.mxu0 %v3408
      %3438 = vmatpush1.bf16.msra.mxu0 %v3407
      %3439 = vmatprep.subr.bf16.mxu0 %v3405
      %3440 = vmatpush1.bf16.msra.mxu0 %v3404
      %3441 = vmatprep.subr.bf16.mxu0 %v3402
      %3442 = vmatpush1.bf16.msra.mxu0 %v3401
      %3443 = vmatprep.subr.bf16.mxu0 %v3399
      %3444 = vmatpush1.bf16.msra.mxu0 %v3398
      %3445 = vmatprep.subr.bf16.mxu0 %v3396
      %3446 = vmatpush1.bf16.msra.mxu0 %v3395
      %3447 = vmatprep.subr.bf16.mxu0 0
      %3448 = vmatpush2.bf16.msra.mxu0 0
      %3449 = vmatprep.subr.bf16.mxu0 0
      %3450 = vmatpush2.bf16.msra.mxu0 0
      %3451 = vmatprep.subr.bf16.mxu0 0
      %3452 = vmatpush2.bf16.msra.mxu0 0
      %3453 = vmatprep.subr.bf16.mxu0 0
      %3454 = vmatpush2.bf16.msra.mxu0 0
      %3455 = vmatprep.subr.bf16.mxu0 0
      %3456 = vmatpush2.bf16.msra.mxu0 0
      %3457 = vmatprep.subr.bf16.mxu0 0
      %3458 = vmatpush2.bf16.msra.mxu0 0
      %3459 = vmatprep.subr.bf16.mxu0 0
      %3460 = vmatpush2.bf16.msra.mxu0 0
      %3461 = vmatprep.subr.bf16.mxu0 0
      %3462 = vmatpush2.bf16.msra.mxu0 0
      %3463 = vmatprep.mubr.bf16.mxu0 0
      %3464 = vmatmul.mubr.bf16.gmra.mxu0 %v2256
      %v3465 = vpop.f32.mrf.mxu0
      %v3466 = vadd.f32 %v2131, %v3465
      %v3467 = vpop.f32.mrf.mxu0
      %v3468 = vadd.f32 %v2131, %v3467
      %v3469 = vpop.f32.mrf.mxu0
      %v3470 = vadd.f32 %v2136, %v3469
      %v3471 = vpop.f32.mrf.mxu0
      %v3472 = vadd.f32 %v2136, %v3471
      %3473 = vmatprep.mubr.bf16.mxu0 0
      %3474 = vmatmul.mubr.bf16.gmra.mxu0 %v2259
      %v3475 = vpop.f32.mrf.mxu0
      %v3476 = vadd.f32 %v2141, %v3475
      %v3477 = vpop.f32.mrf.mxu0
      %v3478 = vadd.f32 %v2141, %v3477
      %v3479 = vpop.f32.mrf.mxu0
      %v3480 = vadd.f32 %v2146, %v3479
      %v3481 = vpop.f32.mrf.mxu0
      %v3482 = vadd.f32 %v2146, %v3481
      %3483 = vdwg.mxu0
      %3484 = vmatprep.subr.bf16.mxu0 0
      %3485 = vmatpush1.bf16.msra.mxu0 0
      %3486 = vmatprep.subr.bf16.mxu0 0
      %3487 = vmatpush1.bf16.msra.mxu0 0
      %3488 = vmatprep.subr.bf16.mxu0 0
      %3489 = vmatpush1.bf16.msra.mxu0 %v3412
      %3490 = vmatprep.subr.bf16.mxu0 0
      %3491 = vmatpush1.bf16.msra.mxu0 %v3409
      %3492 = vmatprep.subr.bf16.mxu0 0
      %3493 = vmatpush1.bf16.msra.mxu0 %v3406
      %3494 = vmatprep.subr.bf16.mxu0 0
      %3495 = vmatpush1.bf16.msra.mxu0 %v3403
      %3496 = vmatprep.subr.bf16.mxu0 0
      %3497 = vmatpush1.bf16.msra.mxu0 %v3400
      %3498 = vmatprep.subr.bf16.mxu0 0
      %3499 = vmatpush1.bf16.msra.mxu0 %v3397
      %3500 = vmatprep.subr.bf16.mxu0 0
      %3501 = vmatpush2.bf16.msra.mxu0 0
      %3502 = vmatprep.subr.bf16.mxu0 0
      %3503 = vmatpush2.bf16.msra.mxu0 0
      %3504 = vmatprep.subr.bf16.mxu0 0
      %3505 = vmatpush2.bf16.msra.mxu0 0
      %3506 = vmatprep.subr.bf16.mxu0 0
      %3507 = vmatpush2.bf16.msra.mxu0 0
      %3508 = vmatprep.subr.bf16.mxu0 0
      %3509 = vmatpush2.bf16.msra.mxu0 0
      %3510 = vmatprep.subr.bf16.mxu0 0
      %3511 = vmatpush2.bf16.msra.mxu0 0
      %3512 = vmatprep.subr.bf16.mxu0 0
      %3513 = vmatpush2.bf16.msra.mxu0 0
      %3514 = vmatprep.subr.bf16.mxu0 0
      %3515 = vmatpush2.bf16.msra.mxu0 0
      %3516 = vmatprep.mubr.bf16.mxu0 0
      %3517 = vmatmul.mubr.bf16.gmra.mxu0 %v2256
      %v3518 = vpop.f32.mrf.mxu0
      %v3519 = vadd.f32 %v2131, %v3518
      %v3520 = vpop.f32.mrf.mxu0
      %v3521 = vpop.f32.mrf.mxu0
      %v3522 = vadd.f32 %v2136, %v3521
      %v3523 = vpop.f32.mrf.mxu0
      %3524 = vmatprep.mubr.bf16.mxu0 0
      %3525 = vmatmul.mubr.bf16.gmra.mxu0 %v2259
      %v3526 = vpop.f32.mrf.mxu0
      %v3527 = vadd.f32 %v2141, %v3526
      %v3528 = vpop.f32.mrf.mxu0
      %v3529 = vpop.f32.mrf.mxu0
      %v3530 = vadd.f32 %v2146, %v3529
      %v3531 = vpop.f32.mrf.mxu0
      %3532 = vdwg.mxu0
      %v3533 = vmax.f32 %v3466, 0.0
      %v3534 = vmax.f32 %v3468, 0.0
      %v3535 = vmax.f32 %v3519, 0.0
      %v3536 = vmax.f32 %v3470, 0.0
      %v3537 = vmax.f32 %v3472, 0.0
      %v3538 = vmax.f32 %v3522, 0.0
      %v3539 = vmax.f32 %v3476, 0.0
      %v3540 = vmax.f32 %v3478, 0.0
      %v3541 = vmax.f32 %v3527, 0.0
      %v3542 = vmax.f32 %v3480, 0.0
      %v3543 = vmax.f32 %v3482, 0.0
      %v3544 = vmax.f32 %v3530, 0.0
      %v3545 = vpack.c.bf16 %v3536, %v3533
      %v3546 = vpack.c.bf16 %v3537, %v3534
      %v3547 = vpack.c.bf16 %v3538, %v3535
      %v3548 = vpack.c.bf16 %v3542, %v3539
      %v3549 = vpack.c.bf16 %v3543, %v3540
      %v3550 = vpack.c.bf16 %v3544, %v3541
      %3551 = vmatprep.subr.bf16.mxu0 0
      %3552 = vmatpush1.bf16.msra.mxu0 0
      %3553 = vmatprep.subr.bf16.mxu0 0
      %3554 = vmatpush1.bf16.msra.mxu0 0
      %3555 = vmatprep.subr.bf16.mxu0 0
      %3556 = vmatpush1.bf16.msra.mxu0 0
      %3557 = vmatprep.subr.bf16.mxu0 0
      %3558 = vmatpush1.bf16.msra.mxu0 0
      %3559 = vmatprep.subr.bf16.mxu0 0
      %3560 = vmatpush1.bf16.msra.mxu0 0
      %3561 = vmatprep.subr.bf16.mxu0 0
      %3562 = vmatpush1.bf16.msra.mxu0 0
      %3563 = vmatprep.subr.bf16.mxu0 %v3549
      %3564 = vmatpush1.bf16.msra.mxu0 %v3548
      %3565 = vmatprep.subr.bf16.mxu0 %v3546
      %3566 = vmatpush1.bf16.msra.mxu0 %v3545
      %3567 = vmatprep.subr.bf16.mxu0 0
      %3568 = vmatpush2.bf16.msra.mxu0 0
      %3569 = vmatprep.subr.bf16.mxu0 0
      %3570 = vmatpush2.bf16.msra.mxu0 0
      %3571 = vmatprep.subr.bf16.mxu0 0
      %3572 = vmatpush2.bf16.msra.mxu0 0
      %3573 = vmatprep.subr.bf16.mxu0 0
      %3574 = vmatpush2.bf16.msra.mxu0 0
      %3575 = vmatprep.subr.bf16.mxu0 0
      %3576 = vmatpush2.bf16.msra.mxu0 0
      %3577 = vmatprep.subr.bf16.mxu0 0
      %3578 = vmatpush2.bf16.msra.mxu0 0
      %3579 = vmatprep.subr.bf16.mxu0 0
      %3580 = vmatpush2.bf16.msra.mxu0 0
      %3581 = vmatprep.subr.bf16.mxu0 0
      %3582 = vmatpush2.bf16.msra.mxu0 0
      %3583 = vmatprep.mubr.bf16.mxu0 0
      %3584 = vmatmul.mubr.bf16.gmra.mxu0 %v2383
      %v3585 = vpop.f32.mrf.mxu0
      %v3586 = vadd.f32 0.0, %v3585
      %v3587 = vpop.f32.mrf.mxu0
      %v3588 = vadd.f32 0.0, %v3587
      %v3589 = vpop.f32.mrf.mxu0
      %v3590 = vpop.f32.mrf.mxu0
      %3591 = vdwg.mxu0
      %3592 = vmatprep.subr.bf16.mxu0 0
      %3593 = vmatpush1.bf16.msra.mxu0 0
      %3594 = vmatprep.subr.bf16.mxu0 0
      %3595 = vmatpush1.bf16.msra.mxu0 0
      %3596 = vmatprep.subr.bf16.mxu0 0
      %3597 = vmatpush1.bf16.msra.mxu0 0
      %3598 = vmatprep.subr.bf16.mxu0 0
      %3599 = vmatpush1.bf16.msra.mxu0 0
      %3600 = vmatprep.subr.bf16.mxu0 0
      %3601 = vmatpush1.bf16.msra.mxu0 0
      %3602 = vmatprep.subr.bf16.mxu0 0
      %3603 = vmatpush1.bf16.msra.mxu0 0
      %3604 = vmatprep.subr.bf16.mxu0 0
      %3605 = vmatpush1.bf16.msra.mxu0 %v3550
      %3606 = vmatprep.subr.bf16.mxu0 0
      %3607 = vmatpush1.bf16.msra.mxu0 %v3547
      %3608 = vmatprep.subr.bf16.mxu0 0
      %3609 = vmatpush2.bf16.msra.mxu0 0
      %3610 = vmatprep.subr.bf16.mxu0 0
      %3611 = vmatpush2.bf16.msra.mxu0 0
      %3612 = vmatprep.subr.bf16.mxu0 0
      %3613 = vmatpush2.bf16.msra.mxu0 0
      %3614 = vmatprep.subr.bf16.mxu0 0
      %3615 = vmatpush2.bf16.msra.mxu0 0
      %3616 = vmatprep.subr.bf16.mxu0 0
      %3617 = vmatpush2.bf16.msra.mxu0 0
      %3618 = vmatprep.subr.bf16.mxu0 0
      %3619 = vmatpush2.bf16.msra.mxu0 0
      %3620 = vmatprep.subr.bf16.mxu0 0
      %3621 = vmatpush2.bf16.msra.mxu0 0
      %3622 = vmatprep.subr.bf16.mxu0 0
      %3623 = vmatpush2.bf16.msra.mxu0 0
      %3624 = vmatprep.mubr.bf16.mxu0 0
      %3625 = vmatmul.mubr.bf16.gmra.mxu0 %v2383
      %v3626 = vpop.f32.mrf.mxu0
      %v3627 = vadd.f32 0.0, %v3626
      %v3628 = vpop.f32.mrf.mxu0
      %v3629 = vpop.f32.mrf.mxu0
      %v3630 = vpop.f32.mrf.mxu0
      %3631 = vdwg.mxu0
      %v3632 = vadd.f32 %v3265, %v3586
      %v3633 = vadd.f32 %v3267, %v3588
      %v3634 = vadd.f32 %v3306, %v3627
      %v3635 = vmul.f32 %v3632, 0.5
      %v3636 = vmul.f32 %v3633, 0.5
      %v3637 = vmul.f32 %v3634, 0.5
      %v3641 = vrot.slane %v3635, 3
      %v3642 = vrot.slane %v3636, 3
      %v3643 = vrot.slane %v3637, 3
      %3647 = vrot.lane.b32.xlu0 %v3641, 32
      %v3648 = vpop.permute.xlu0 %3647
      %v3649 = vsel %vm2802, %v3648, %v3643
      %3650 = vrot.lane.b32.xlu0 %v3642, 32
      %v3651 = vpop.permute.xlu0 %3650
      %3652 = vrot.lane.b32.xlu0 %v3649, 32
      %v3653 = vpop.permute.xlu0 %3652
      %v3654 = vsel %vm2802, %v3651, %v3648
      %v3655 = vsel %vm2802, %v3653, %v3651
      %3659 = vrot.lane.b32.xlu0 %v3649, 97
      %v3660 = vpop.permute.xlu0 %3659
      %3661 = vrot.lane.b32.xlu0 %v3654, 97
      %v3662 = vpop.permute.xlu0 %3661
      %3663 = vrot.lane.b32.xlu0 %v3655, 97
      %v3664 = vpop.permute.xlu0 %3663
      %v3665 = vsel %vm2837, %v3660, %v3662
      %v3666 = vsel %vm2837, %v3662, %v3664
      %3670 = vrot.lane.b32.xlu0 %v3641, 127
      %v3671 = vpop.permute.xlu0 %3670
      %3672 = vrot.lane.b32.xlu0 %v3642, 127
      %v3673 = vpop.permute.xlu0 %3672
      %3674 = vrot.lane.b32.xlu0 %v3649, 127
      %v3675 = vpop.permute.xlu0 %3674
      %v3676 = vsel %vm2849, %v3671, %v3673
      %v3677 = vsel %vm2849, %v3673, %v3675
      %v3681 = vsel %vm2825, %v3665, %v3676
      %v3682 = vsel %vm2826, %v3666, %v3677
      %v3683 = vsel %vm2827, %v3664, %v3675
      %v3687 = vrot.slane %v3681, 5
      %v3688 = vrot.slane %v3682, 5
      %v3689 = vrot.slane %v3683, 5
      %v3693 = vadd.f32 %v3635, %v3687
      %v3694 = vadd.f32 %v3636, %v3688
      %v3695 = vadd.f32 %v3637, %v3689
      %v3696 = vmul.f32 %v3693, 0.5
      %v3697 = vmul.f32 %v3694, 0.5
      %v3698 = vmul.f32 %v3695, 0.5
      %v3702 = vrot.slane %v3696, 3
      %v3703 = vrot.slane %v3697, 3
      %v3704 = vrot.slane %v3698, 3
      %3708 = vrot.lane.b32.xlu0 %v3702, 32
      %v3709 = vpop.permute.xlu0 %3708
      %v3710 = vsel %vm2802, %v3709, %v3704
      %3711 = vrot.lane.b32.xlu0 %v3703, 32
      %v3712 = vpop.permute.xlu0 %3711
      %3713 = vrot.lane.b32.xlu0 %v3710, 32
      %v3714 = vpop.permute.xlu0 %3713
      %v3715 = vsel %vm2802, %v3712, %v3709
      %v3716 = vsel %vm2802, %v3714, %v3712
      %3720 = vrot.lane.b32.xlu0 %v3710, 114
      %v3721 = vpop.permute.xlu0 %3720
      %3722 = vrot.lane.b32.xlu0 %v3715, 114
      %v3723 = vpop.permute.xlu0 %3722
      %3724 = vrot.lane.b32.xlu0 %v3716, 114
      %v3725 = vpop.permute.xlu0 %3724
      %v3726 = vsel %vm2916, %v3721, %v3723
      %v3727 = vsel %vm2916, %v3723, %v3725
      %3731 = vrot.lane.b32.xlu0 %v3702, 110
      %v3732 = vpop.permute.xlu0 %3731
      %3733 = vrot.lane.b32.xlu0 %v3703, 110
      %v3734 = vpop.permute.xlu0 %3733
      %3735 = vrot.lane.b32.xlu0 %v3710, 110
      %v3736 = vpop.permute.xlu0 %3735
      %v3737 = vsel %vm2928, %v3732, %v3734
      %v3738 = vsel %vm2928, %v3734, %v3736
      %v3742 = vsel %vm2904, %v3726, %v3737
      %v3743 = vsel %vm2905, %v3727, %v3738
      %v3744 = vsel %vm2906, %v3725, %v3736
      %v3748 = vrot.slane %v3742, 5
      %v3749 = vrot.slane %v3743, 5
      %v3750 = vrot.slane %v3744, 5
      %v3754 = vadd.f32 %v3696, %v3748
      %v3755 = vadd.f32 %v3697, %v3749
      %v3756 = vadd.f32 %v3698, %v3750
      %v3757 = vmul.f32 %v3754, 0.5
      %v3758 = vmul.f32 %v3755, 0.5
      %v3759 = vmul.f32 %v3756, 0.5
      %v3760 = vadd.f32 %v3757, %v2956
      %v3761 = vadd.f32 %v3758, %v2956
      %v3762 = vadd.f32 %v3759, %v2956
      %v3766 = vrot.slane %v3760, 3
      %v3767 = vrot.slane %v3761, 3
      %v3768 = vrot.slane %v3762, 3
      %v3772 = vadd.f32 %v3265, %v3766
      %v3773 = vadd.f32 %v3267, %v3767
      %v3774 = vadd.f32 %v3306, %v3768
      %v3777 = vcombine.low %v3772, %v3773
      %s3779 = scalar_lea.vmem %s393, 24
      %3780 = vst [vmem:[%s3779] sm:$0x77] %v3777
      %3781 = vst.msk [vmem:[%s3779 + $0x8] sm:$0x7] %vm2978, %v3774
      %v3782 = vadd.f32 %v3586, %v3766
      %v3783 = vadd.f32 %v3588, %v3767
      %v3784 = vadd.f32 %v3627, %v3768
      %v3787 = vcombine.low %v3782, %v3783
      %s3789 = scalar_lea.vmem %s393, 36
      %3790 = vst [vmem:[%s3789] sm:$0x77] %v3787
      %3791 = vst.msk [vmem:[%s3789 + $0x8] sm:$0x7] %vm2978, %v3784
      %v3792 = vld [vmem:[#allocation2 + $0xc0] sm:$0xff]
      %v3793 = vld [vmem:[#allocation2 + $0xc8] sm:$0xf]
      %v3794 = vld [vmem:[#allocation2 + $0xcc] sm:$0xff]
      %v3795 = vld [vmem:[#allocation2 + $0xd4] sm:$0xf]
      %v3796 = vld [vmem:[#allocation2 + $0xd8] sm:$0xff]
      %v3797 = vld [vmem:[#allocation2 + $0xe0] sm:$0xf]
      %v3798 = vld [vmem:[#allocation2 + $0xe4] sm:$0xff]
      %v3799 = vld [vmem:[#allocation2 + $0xec] sm:$0xf]
      %v3800 = vld [vmem:[#allocation2 + $0xf0] sm:$0xff]
      %v3801 = vld [vmem:[#allocation2 + $0xf8] sm:$0xf]
      %v3802 = vld [vmem:[#allocation2 + $0xfc] sm:$0xff]
      %v3803 = vld [vmem:[#allocation2 + $0x104] sm:$0xf]
      %v3804 = vld [vmem:[#allocation2 + $0x108] sm:$0xff]
      %v3805 = vld [vmem:[#allocation2 + $0x110] sm:$0xf]
      %v3806 = vld [vmem:[#allocation2 + $0x114] sm:$0xff]
      %v3807 = vld [vmem:[#allocation2 + $0x11c] sm:$0xf]
      %v3808 = vld [vmem:[#allocation2 + $0x120] sm:$0xff]
      %v3809 = vld [vmem:[#allocation2 + $0x128] sm:$0xf]
      %v3810 = vld [vmem:[#allocation2 + $0x12c] sm:$0xff]
      %v3811 = vld [vmem:[#allocation2 + $0x134] sm:$0xf]
      %v3812 = vld [vmem:[#allocation2 + $0x138] sm:$0xff]
      %v3813 = vld [vmem:[#allocation2 + $0x140] sm:$0xf]
      %v3814 = vld [vmem:[#allocation2 + $0x144] sm:$0xff]
      %v3815 = vld [vmem:[#allocation2 + $0x14c] sm:$0xf]
      %v3840 = vunpack.c.l.b16 %v3792
      %v3841 = vunpack.c.h.b16 %v3792
      %v3842 = vunpack.c.l.b16 %v3793
      %v3843 = vunpack.c.l.b16 %v3794
      %v3844 = vunpack.c.h.b16 %v3794
      %v3845 = vunpack.c.l.b16 %v3795
      %v3846 = vunpack.c.l.b16 %v3796
      %v3847 = vunpack.c.h.b16 %v3796
      %v3848 = vunpack.c.l.b16 %v3797
      %v3849 = vunpack.c.l.b16 %v3798
      %v3850 = vunpack.c.h.b16 %v3798
      %v3851 = vunpack.c.l.b16 %v3799
      %v3852 = vunpack.c.l.b16 %v3800
      %v3853 = vunpack.c.h.b16 %v3800
      %v3854 = vunpack.c.l.b16 %v3801
      %v3855 = vunpack.c.l.b16 %v3802
      %v3856 = vunpack.c.h.b16 %v3802
      %v3857 = vunpack.c.l.b16 %v3803
      %v3858 = vunpack.c.l.b16 %v3804
      %v3859 = vunpack.c.h.b16 %v3804
      %v3860 = vunpack.c.l.b16 %v3805
      %v3861 = vunpack.c.l.b16 %v3806
      %v3862 = vunpack.c.h.b16 %v3806
      %v3863 = vunpack.c.l.b16 %v3807
      %v3864 = vunpack.c.l.b16 %v3808
      %v3865 = vunpack.c.h.b16 %v3808
      %v3866 = vunpack.c.l.b16 %v3809
      %v3867 = vunpack.c.l.b16 %v3810
      %v3868 = vunpack.c.h.b16 %v3810
      %v3869 = vunpack.c.l.b16 %v3811
      %v3870 = vunpack.c.l.b16 %v3812
      %v3871 = vunpack.c.h.b16 %v3812
      %v3872 = vunpack.c.l.b16 %v3813
      %v3873 = vunpack.c.l.b16 %v3814
      %v3874 = vunpack.c.h.b16 %v3814
      %v3875 = vunpack.c.l.b16 %v3815
      %v3876 = vpack.c.b16 %v3843, %v3840
      %v3877 = vpack.c.b16 %v3844, %v3841
      %v3878 = vpack.c.b16 %v3845, %v3842
      %v3879 = vpack.c.b16 %v3849, %v3846
      %v3880 = vpack.c.b16 %v3850, %v3847
      %v3881 = vpack.c.b16 %v3851, %v3848
      %v3882 = vpack.c.b16 %v3855, %v3852
      %v3883 = vpack.c.b16 %v3856, %v3853
      %v3884 = vpack.c.b16 %v3857, %v3854
      %v3885 = vpack.c.b16 %v3861, %v3858
      %v3886 = vpack.c.b16 %v3862, %v3859
      %v3887 = vpack.c.b16 %v3863, %v3860
      %v3888 = vpack.c.b16 %v3867, %v3864
      %v3889 = vpack.c.b16 %v3868, %v3865
      %v3890 = vpack.c.b16 %v3869, %v3866
      %v3891 = vpack.c.b16 %v3873, %v3870
      %v3892 = vpack.c.b16 %v3874, %v3871
      %v3893 = vpack.c.b16 %v3875, %v3872
      %3912 = vmatprep.subr.bf16.mxu0 0
      %3913 = vmatpush1.bf16.msra.mxu0 0
      %3914 = vmatprep.subr.bf16.mxu0 0
      %3915 = vmatpush1.bf16.msra.mxu0 0
      %3916 = vmatprep.subr.bf16.mxu0 %v3892
      %3917 = vmatpush1.bf16.msra.mxu0 %v3891
      %3918 = vmatprep.subr.bf16.mxu0 %v3889
      %3919 = vmatpush1.bf16.msra.mxu0 %v3888
      %3920 = vmatprep.subr.bf16.mxu0 %v3886
      %3921 = vmatpush1.bf16.msra.mxu0 %v3885
      %3922 = vmatprep.subr.bf16.mxu0 %v3883
      %3923 = vmatpush1.bf16.msra.mxu0 %v3882
      %3924 = vmatprep.subr.bf16.mxu0 %v3880
      %3925 = vmatpush1.bf16.msra.mxu0 %v3879
      %3926 = vmatprep.subr.bf16.mxu0 %v3877
      %3927 = vmatpush1.bf16.msra.mxu0 %v3876
      %3928 = vmatprep.subr.bf16.mxu0 0
      %3929 = vmatpush2.bf16.msra.mxu0 0
      %3930 = vmatprep.subr.bf16.mxu0 0
      %3931 = vmatpush2.bf16.msra.mxu0 0
      %3932 = vmatprep.subr.bf16.mxu0 0
      %3933 = vmatpush2.bf16.msra.mxu0 0
      %3934 = vmatprep.subr.bf16.mxu0 0
      %3935 = vmatpush2.bf16.msra.mxu0 0
      %3936 = vmatprep.subr.bf16.mxu0 0
      %3937 = vmatpush2.bf16.msra.mxu0 0
      %3938 = vmatprep.subr.bf16.mxu0 0
      %3939 = vmatpush2.bf16.msra.mxu0 0
      %3940 = vmatprep.subr.bf16.mxu0 0
      %3941 = vmatpush2.bf16.msra.mxu0 0
      %3942 = vmatprep.subr.bf16.mxu0 0
      %3943 = vmatpush2.bf16.msra.mxu0 0
      %3944 = vmatprep.mubr.bf16.mxu0 0
      %3945 = vmatmul.mubr.bf16.gmra.mxu0 %v2256
      %v3946 = vpop.f32.mrf.mxu0
      %v3947 = vadd.f32 %v2131, %v3946
      %v3948 = vpop.f32.mrf.mxu0
      %v3949 = vadd.f32 %v2131, %v3948
      %v3950 = vpop.f32.mrf.mxu0
      %v3951 = vadd.f32 %v2136, %v3950
      %v3952 = vpop.f32.mrf.mxu0
      %v3953 = vadd.f32 %v2136, %v3952
      %3954 = vmatprep.mubr.bf16.mxu0 0
      %3955 = vmatmul.mubr.bf16.gmra.mxu0 %v2259
      %v3956 = vpop.f32.mrf.mxu0
      %v3957 = vadd.f32 %v2141, %v3956
      %v3958 = vpop.f32.mrf.mxu0
      %v3959 = vadd.f32 %v2141, %v3958
      %v3960 = vpop.f32.mrf.mxu0
      %v3961 = vadd.f32 %v2146, %v3960
      %v3962 = vpop.f32.mrf.mxu0
      %v3963 = vadd.f32 %v2146, %v3962
      %3964 = vdwg.mxu0
      %3965 = vmatprep.subr.bf16.mxu0 0
      %3966 = vmatpush1.bf16.msra.mxu0 0
      %3967 = vmatprep.subr.bf16.mxu0 0
      %3968 = vmatpush1.bf16.msra.mxu0 0
      %3969 = vmatprep.subr.bf16.mxu0 0
      %3970 = vmatpush1.bf16.msra.mxu0 %v3893
      %3971 = vmatprep.subr.bf16.mxu0 0
      %3972 = vmatpush1.bf16.msra.mxu0 %v3890
      %3973 = vmatprep.subr.bf16.mxu0 0
      %3974 = vmatpush1.bf16.msra.mxu0 %v3887
      %3975 = vmatprep.subr.bf16.mxu0 0
      %3976 = vmatpush1.bf16.msra.mxu0 %v3884
      %3977 = vmatprep.subr.bf16.mxu0 0
      %3978 = vmatpush1.bf16.msra.mxu0 %v3881
      %3979 = vmatprep.subr.bf16.mxu0 0
      %3980 = vmatpush1.bf16.msra.mxu0 %v3878
      %3981 = vmatprep.subr.bf16.mxu0 0
      %3982 = vmatpush2.bf16.msra.mxu0 0
      %3983 = vmatprep.subr.bf16.mxu0 0
      %3984 = vmatpush2.bf16.msra.mxu0 0
      %3985 = vmatprep.subr.bf16.mxu0 0
      %3986 = vmatpush2.bf16.msra.mxu0 0
      %3987 = vmatprep.subr.bf16.mxu0 0
      %3988 = vmatpush2.bf16.msra.mxu0 0
      %3989 = vmatprep.subr.bf16.mxu0 0
      %3990 = vmatpush2.bf16.msra.mxu0 0
      %3991 = vmatprep.subr.bf16.mxu0 0
      %3992 = vmatpush2.bf16.msra.mxu0 0
      %3993 = vmatprep.subr.bf16.mxu0 0
      %3994 = vmatpush2.bf16.msra.mxu0 0
      %3995 = vmatprep.subr.bf16.mxu0 0
      %3996 = vmatpush2.bf16.msra.mxu0 0
      %3997 = vmatprep.mubr.bf16.mxu0 0
      %3998 = vmatmul.mubr.bf16.gmra.mxu0 %v2256
      %v3999 = vpop.f32.mrf.mxu0
      %v4000 = vadd.f32 %v2131, %v3999
      %v4001 = vpop.f32.mrf.mxu0
      %v4002 = vpop.f32.mrf.mxu0
      %v4003 = vadd.f32 %v2136, %v4002
      %v4004 = vpop.f32.mrf.mxu0
      %4005 = vmatprep.mubr.bf16.mxu0 0
      %4006 = vmatmul.mubr.bf16.gmra.mxu0 %v2259
      %v4007 = vpop.f32.mrf.mxu0
      %v4008 = vadd.f32 %v2141, %v4007
      %v4009 = vpop.f32.mrf.mxu0
      %v4010 = vpop.f32.mrf.mxu0
      %v4011 = vadd.f32 %v2146, %v4010
      %v4012 = vpop.f32.mrf.mxu0
      %4013 = vdwg.mxu0
      %v4014 = vmax.f32 %v3947, 0.0
      %v4015 = vmax.f32 %v3949, 0.0
      %v4016 = vmax.f32 %v4000, 0.0
      %v4017 = vmax.f32 %v3951, 0.0
      %v4018 = vmax.f32 %v3953, 0.0
      %v4019 = vmax.f32 %v4003, 0.0
      %v4020 = vmax.f32 %v3957, 0.0
      %v4021 = vmax.f32 %v3959, 0.0
      %v4022 = vmax.f32 %v4008, 0.0
      %v4023 = vmax.f32 %v3961, 0.0
      %v4024 = vmax.f32 %v3963, 0.0
      %v4025 = vmax.f32 %v4011, 0.0
      %v4026 = vpack.c.bf16 %v4017, %v4014
      %v4027 = vpack.c.bf16 %v4018, %v4015
      %v4028 = vpack.c.bf16 %v4019, %v4016
      %v4029 = vpack.c.bf16 %v4023, %v4020
      %v4030 = vpack.c.bf16 %v4024, %v4021
      %v4031 = vpack.c.bf16 %v4025, %v4022
      %4032 = vmatprep.subr.bf16.mxu0 0
      %4033 = vmatpush1.bf16.msra.mxu0 0
      %4034 = vmatprep.subr.bf16.mxu0 0
      %4035 = vmatpush1.bf16.msra.mxu0 0
      %4036 = vmatprep.subr.bf16.mxu0 0
      %4037 = vmatpush1.bf16.msra.mxu0 0
      %4038 = vmatprep.subr.bf16.mxu0 0
      %4039 = vmatpush1.bf16.msra.mxu0 0
      %4040 = vmatprep.subr.bf16.mxu0 0
      %4041 = vmatpush1.bf16.msra.mxu0 0
      %4042 = vmatprep.subr.bf16.mxu0 0
      %4043 = vmatpush1.bf16.msra.mxu0 0
      %4044 = vmatprep.subr.bf16.mxu0 %v4030
      %4045 = vmatpush1.bf16.msra.mxu0 %v4029
      %4046 = vmatprep.subr.bf16.mxu0 %v4027
      %4047 = vmatpush1.bf16.msra.mxu0 %v4026
      %4048 = vmatprep.subr.bf16.mxu0 0
      %4049 = vmatpush2.bf16.msra.mxu0 0
      %4050 = vmatprep.subr.bf16.mxu0 0
      %4051 = vmatpush2.bf16.msra.mxu0 0
      %4052 = vmatprep.subr.bf16.mxu0 0
      %4053 = vmatpush2.bf16.msra.mxu0 0
      %4054 = vmatprep.subr.bf16.mxu0 0
      %4055 = vmatpush2.bf16.msra.mxu0 0
      %4056 = vmatprep.subr.bf16.mxu0 0
      %4057 = vmatpush2.bf16.msra.mxu0 0
      %4058 = vmatprep.subr.bf16.mxu0 0
      %4059 = vmatpush2.bf16.msra.mxu0 0
      %4060 = vmatprep.subr.bf16.mxu0 0
      %4061 = vmatpush2.bf16.msra.mxu0 0
      %4062 = vmatprep.subr.bf16.mxu0 0
      %4063 = vmatpush2.bf16.msra.mxu0 0
      %4064 = vmatprep.mubr.bf16.mxu0 0
      %4065 = vmatmul.mubr.bf16.gmra.mxu0 %v2383
      %v4066 = vpop.f32.mrf.mxu0
      %v4067 = vadd.f32 0.0, %v4066
      %v4068 = vpop.f32.mrf.mxu0
      %v4069 = vadd.f32 0.0, %v4068
      %v4070 = vpop.f32.mrf.mxu0
      %v4071 = vpop.f32.mrf.mxu0
      %4072 = vdwg.mxu0
      %4073 = vmatprep.subr.bf16.mxu0 0
      %4074 = vmatpush1.bf16.msra.mxu0 0
      %4075 = vmatprep.subr.bf16.mxu0 0
      %4076 = vmatpush1.bf16.msra.mxu0 0
      %4077 = vmatprep.subr.bf16.mxu0 0
      %4078 = vmatpush1.bf16.msra.mxu0 0
      %4079 = vmatprep.subr.bf16.mxu0 0
      %4080 = vmatpush1.bf16.msra.mxu0 0
      %4081 = vmatprep.subr.bf16.mxu0 0
      %4082 = vmatpush1.bf16.msra.mxu0 0
      %4083 = vmatprep.subr.bf16.mxu0 0
      %4084 = vmatpush1.bf16.msra.mxu0 0
      %4085 = vmatprep.subr.bf16.mxu0 0
      %4086 = vmatpush1.bf16.msra.mxu0 %v4031
      %4087 = vmatprep.subr.bf16.mxu0 0
      %4088 = vmatpush1.bf16.msra.mxu0 %v4028
      %4089 = vmatprep.subr.bf16.mxu0 0
      %4090 = vmatpush2.bf16.msra.mxu0 0
      %4091 = vmatprep.subr.bf16.mxu0 0
      %4092 = vmatpush2.bf16.msra.mxu0 0
      %4093 = vmatprep.subr.bf16.mxu0 0
      %4094 = vmatpush2.bf16.msra.mxu0 0
      %4095 = vmatprep.subr.bf16.mxu0 0
      %4096 = vmatpush2.bf16.msra.mxu0 0
      %4097 = vmatprep.subr.bf16.mxu0 0
      %4098 = vmatpush2.bf16.msra.mxu0 0
      %4099 = vmatprep.subr.bf16.mxu0 0
      %4100 = vmatpush2.bf16.msra.mxu0 0
      %4101 = vmatprep.subr.bf16.mxu0 0
      %4102 = vmatpush2.bf16.msra.mxu0 0
      %4103 = vmatprep.subr.bf16.mxu0 0
      %4104 = vmatpush2.bf16.msra.mxu0 0
      %4105 = vmatprep.mubr.bf16.mxu0 0
      %4106 = vmatmul.mubr.bf16.gmra.mxu0 %v2383
      %v4107 = vpop.f32.mrf.mxu0
      %v4108 = vadd.f32 0.0, %v4107
      %v4109 = vpop.f32.mrf.mxu0
      %v4110 = vpop.f32.mrf.mxu0
      %v4111 = vpop.f32.mrf.mxu0
      %4112 = vdwg.mxu0
      %v4113 = vld [vmem:[#allocation2 + $0xf0] sm:$0xff]
      %v4114 = vld [vmem:[#allocation2 + $0xf8] sm:$0xf]
      %v4115 = vld [vmem:[#allocation2 + $0xfc] sm:$0xff]
      %v4116 = vld [vmem:[#allocation2 + $0x104] sm:$0xf]
      %v4117 = vld [vmem:[#allocation2 + $0x108] sm:$0xff]
      %v4118 = vld [vmem:[#allocation2 + $0x110] sm:$0xf]
      %v4119 = vld [vmem:[#allocation2 + $0x114] sm:$0xff]
      %v4120 = vld [vmem:[#allocation2 + $0x11c] sm:$0xf]
      %v4121 = vld [vmem:[#allocation2 + $0x120] sm:$0xff]
      %v4122 = vld [vmem:[#allocation2 + $0x128] sm:$0xf]
      %v4123 = vld [vmem:[#allocation2 + $0x12c] sm:$0xff]
      %v4124 = vld [vmem:[#allocation2 + $0x134] sm:$0xf]
      %v4125 = vld [vmem:[#allocation2 + $0x138] sm:$0xff]
      %v4126 = vld [vmem:[#allocation2 + $0x140] sm:$0xf]
      %v4127 = vld [vmem:[#allocation2 + $0x144] sm:$0xff]
      %v4128 = vld [vmem:[#allocation2 + $0x14c] sm:$0xf]
      %v4129 = vld [vmem:[#allocation2 + $0x150] sm:$0xff]
      %v4130 = vld [vmem:[#allocation2 + $0x158] sm:$0xf]
      %v4131 = vld [vmem:[#allocation2 + $0x15c] sm:$0xff]
      %v4132 = vld [vmem:[#allocation2 + $0x164] sm:$0xf]
      %v4133 = vld [vmem:[#allocation2 + $0x168] sm:$0xff]
      %v4134 = vld [vmem:[#allocation2 + $0x170] sm:$0xf]
      %v4135 = vld [vmem:[#allocation2 + $0x174] sm:$0xff]
      %v4136 = vld [vmem:[#allocation2 + $0x17c] sm:$0xf]
      %v4161 = vunpack.c.l.b16 %v4113
      %v4162 = vunpack.c.h.b16 %v4113
      %v4163 = vunpack.c.l.b16 %v4114
      %v4164 = vunpack.c.l.b16 %v4115
      %v4165 = vunpack.c.h.b16 %v4115
      %v4166 = vunpack.c.l.b16 %v4116
      %v4167 = vunpack.c.l.b16 %v4117
      %v4168 = vunpack.c.h.b16 %v4117
      %v4169 = vunpack.c.l.b16 %v4118
      %v4170 = vunpack.c.l.b16 %v4119
      %v4171 = vunpack.c.h.b16 %v4119
      %v4172 = vunpack.c.l.b16 %v4120
      %v4173 = vunpack.c.l.b16 %v4121
      %v4174 = vunpack.c.h.b16 %v4121
      %v4175 = vunpack.c.l.b16 %v4122
      %v4176 = vunpack.c.l.b16 %v4123
      %v4177 = vunpack.c.h.b16 %v4123
      %v4178 = vunpack.c.l.b16 %v4124
      %v4179 = vunpack.c.l.b16 %v4125
      %v4180 = vunpack.c.h.b16 %v4125
      %v4181 = vunpack.c.l.b16 %v4126
      %v4182 = vunpack.c.l.b16 %v4127
      %v4183 = vunpack.c.h.b16 %v4127
      %v4184 = vunpack.c.l.b16 %v4128
      %v4185 = vunpack.c.l.b16 %v4129
      %v4186 = vunpack.c.h.b16 %v4129
      %v4187 = vunpack.c.l.b16 %v4130
      %v4188 = vunpack.c.l.b16 %v4131
      %v4189 = vunpack.c.h.b16 %v4131
      %v4190 = vunpack.c.l.b16 %v4132
      %v4191 = vunpack.c.l.b16 %v4133
      %v4192 = vunpack.c.h.b16 %v4133
      %v4193 = vunpack.c.l.b16 %v4134
      %v4194 = vunpack.c.l.b16 %v4135
      %v4195 = vunpack.c.h.b16 %v4135
      %v4196 = vunpack.c.l.b16 %v4136
      %v4197 = vpack.c.b16 %v4164, %v4161
      %v4198 = vpack.c.b16 %v4165, %v4162
      %v4199 = vpack.c.b16 %v4166, %v4163
      %v4200 = vpack.c.b16 %v4170, %v4167
      %v4201 = vpack.c.b16 %v4171, %v4168
      %v4202 = vpack.c.b16 %v4172, %v4169
      %v4203 = vpack.c.b16 %v4176, %v4173
      %v4204 = vpack.c.b16 %v4177, %v4174
      %v4205 = vpack.c.b16 %v4178, %v4175
      %v4206 = vpack.c.b16 %v4182, %v4179
      %v4207 = vpack.c.b16 %v4183, %v4180
      %v4208 = vpack.c.b16 %v4184, %v4181
      %v4209 = vpack.c.b16 %v4188, %v4185
      %v4210 = vpack.c.b16 %v4189, %v4186
      %v4211 = vpack.c.b16 %v4190, %v4187
      %v4212 = vpack.c.b16 %v4194, %v4191
      %v4213 = vpack.c.b16 %v4195, %v4192
      %v4214 = vpack.c.b16 %v4196, %v4193
      %4233 = vmatprep.subr.bf16.mxu0 0
      %4234 = vmatpush1.bf16.msra.mxu0 0
      %4235 = vmatprep.subr.bf16.mxu0 0
      %4236 = vmatpush1.bf16.msra.mxu0 0
      %4237 = vmatprep.subr.bf16.mxu0 %v4213
      %4238 = vmatpush1.bf16.msra.mxu0 %v4212
      %4239 = vmatprep.subr.bf16.mxu0 %v4210
      %4240 = vmatpush1.bf16.msra.mxu0 %v4209
      %4241 = vmatprep.subr.bf16.mxu0 %v4207
      %4242 = vmatpush1.bf16.msra.mxu0 %v4206
      %4243 = vmatprep.subr.bf16.mxu0 %v4204
      %4244 = vmatpush1.bf16.msra.mxu0 %v4203
      %4245 = vmatprep.subr.bf16.mxu0 %v4201
      %4246 = vmatpush1.bf16.msra.mxu0 %v4200
      %4247 = vmatprep.subr.bf16.mxu0 %v4198
      %4248 = vmatpush1.bf16.msra.mxu0 %v4197
      %4249 = vmatprep.subr.bf16.mxu0 0
      %4250 = vmatpush2.bf16.msra.mxu0 0
      %4251 = vmatprep.subr.bf16.mxu0 0
      %4252 = vmatpush2.bf16.msra.mxu0 0
      %4253 = vmatprep.subr.bf16.mxu0 0
      %4254 = vmatpush2.bf16.msra.mxu0 0
      %4255 = vmatprep.subr.bf16.mxu0 0
      %4256 = vmatpush2.bf16.msra.mxu0 0
      %4257 = vmatprep.subr.bf16.mxu0 0
      %4258 = vmatpush2.bf16.msra.mxu0 0
      %4259 = vmatprep.subr.bf16.mxu0 0
      %4260 = vmatpush2.bf16.msra.mxu0 0
      %4261 = vmatprep.subr.bf16.mxu0 0
      %4262 = vmatpush2.bf16.msra.mxu0 0
      %4263 = vmatprep.subr.bf16.mxu0 0
      %4264 = vmatpush2.bf16.msra.mxu0 0
      %4265 = vmatprep.mubr.bf16.mxu0 0
      %4266 = vmatmul.mubr.bf16.gmra.mxu0 %v2256
      %v4267 = vpop.f32.mrf.mxu0
      %v4268 = vadd.f32 %v2131, %v4267
      %v4269 = vpop.f32.mrf.mxu0
      %v4270 = vadd.f32 %v2131, %v4269
      %v4271 = vpop.f32.mrf.mxu0
      %v4272 = vadd.f32 %v2136, %v4271
      %v4273 = vpop.f32.mrf.mxu0
      %v4274 = vadd.f32 %v2136, %v4273
      %4275 = vmatprep.mubr.bf16.mxu0 0
      %4276 = vmatmul.mubr.bf16.gmra.mxu0 %v2259
      %v4277 = vpop.f32.mrf.mxu0
      %v4278 = vadd.f32 %v2141, %v4277
      %v4279 = vpop.f32.mrf.mxu0
      %v4280 = vadd.f32 %v2141, %v4279
      %v4281 = vpop.f32.mrf.mxu0
      %v4282 = vadd.f32 %v2146, %v4281
      %v4283 = vpop.f32.mrf.mxu0
      %v4284 = vadd.f32 %v2146, %v4283
      %4285 = vdwg.mxu0
      %4286 = vmatprep.subr.bf16.mxu0 0
      %4287 = vmatpush1.bf16.msra.mxu0 0
      %4288 = vmatprep.subr.bf16.mxu0 0
      %4289 = vmatpush1.bf16.msra.mxu0 0
      %4290 = vmatprep.subr.bf16.mxu0 0
      %4291 = vmatpush1.bf16.msra.mxu0 %v4214
      %4292 = vmatprep.subr.bf16.mxu0 0
      %4293 = vmatpush1.bf16.msra.mxu0 %v4211
      %4294 = vmatprep.subr.bf16.mxu0 0
      %4295 = vmatpush1.bf16.msra.mxu0 %v4208
      %4296 = vmatprep.subr.bf16.mxu0 0
      %4297 = vmatpush1.bf16.msra.mxu0 %v4205
      %4298 = vmatprep.subr.bf16.mxu0 0
      %4299 = vmatpush1.bf16.msra.mxu0 %v4202
      %4300 = vmatprep.subr.bf16.mxu0 0
      %4301 = vmatpush1.bf16.msra.mxu0 %v4199
      %4302 = vmatprep.subr.bf16.mxu0 0
      %4303 = vmatpush2.bf16.msra.mxu0 0
      %4304 = vmatprep.subr.bf16.mxu0 0
      %4305 = vmatpush2.bf16.msra.mxu0 0
      %4306 = vmatprep.subr.bf16.mxu0 0
      %4307 = vmatpush2.bf16.msra.mxu0 0
      %4308 = vmatprep.subr.bf16.mxu0 0
      %4309 = vmatpush2.bf16.msra.mxu0 0
      %4310 = vmatprep.subr.bf16.mxu0 0
      %4311 = vmatpush2.bf16.msra.mxu0 0
      %4312 = vmatprep.subr.bf16.mxu0 0
      %4313 = vmatpush2.bf16.msra.mxu0 0
      %4314 = vmatprep.subr.bf16.mxu0 0
      %4315 = vmatpush2.bf16.msra.mxu0 0
      %4316 = vmatprep.subr.bf16.mxu0 0
      %4317 = vmatpush2.bf16.msra.mxu0 0
      %4318 = vmatprep.mubr.bf16.mxu0 0
      %4319 = vmatmul.mubr.bf16.gmra.mxu0 %v2256
      %v4320 = vpop.f32.mrf.mxu0
      %v4321 = vadd.f32 %v2131, %v4320
      %v4322 = vpop.f32.mrf.mxu0
      %v4323 = vpop.f32.mrf.mxu0
      %v4324 = vadd.f32 %v2136, %v4323
      %v4325 = vpop.f32.mrf.mxu0
      %4326 = vmatprep.mubr.bf16.mxu0 0
      %4327 = vmatmul.mubr.bf16.gmra.mxu0 %v2259
      %v4328 = vpop.f32.mrf.mxu0
      %v4329 = vadd.f32 %v2141, %v4328
      %v4330 = vpop.f32.mrf.mxu0
      %v4331 = vpop.f32.mrf.mxu0
      %v4332 = vadd.f32 %v2146, %v4331
      %v4333 = vpop.f32.mrf.mxu0
      %4334 = vdwg.mxu0
      %v4335 = vmax.f32 %v4268, 0.0
      %v4336 = vmax.f32 %v4270, 0.0
      %v4337 = vmax.f32 %v4321, 0.0
      %v4338 = vmax.f32 %v4272, 0.0
      %v4339 = vmax.f32 %v4274, 0.0
      %v4340 = vmax.f32 %v4324, 0.0
      %v4341 = vmax.f32 %v4278, 0.0
      %v4342 = vmax.f32 %v4280, 0.0
      %v4343 = vmax.f32 %v4329, 0.0
      %v4344 = vmax.f32 %v4282, 0.0
      %v4345 = vmax.f32 %v4284, 0.0
      %v4346 = vmax.f32 %v4332, 0.0
      %v4347 = vpack.c.bf16 %v4338, %v4335
      %v4348 = vpack.c.bf16 %v4339, %v4336
      %v4349 = vpack.c.bf16 %v4340, %v4337
      %v4350 = vpack.c.bf16 %v4344, %v4341
      %v4351 = vpack.c.bf16 %v4345, %v4342
      %v4352 = vpack.c.bf16 %v4346, %v4343
      %4353 = vmatprep.subr.bf16.mxu0 0
      %4354 = vmatpush1.bf16.msra.mxu0 0
      %4355 = vmatprep.subr.bf16.mxu0 0
      %4356 = vmatpush1.bf16.msra.mxu0 0
      %4357 = vmatprep.subr.bf16.mxu0 0
      %4358 = vmatpush1.bf16.msra.mxu0 0
      %4359 = vmatprep.subr.bf16.mxu0 0
      %4360 = vmatpush1.bf16.msra.mxu0 0
      %4361 = vmatprep.subr.bf16.mxu0 0
      %4362 = vmatpush1.bf16.msra.mxu0 0
      %4363 = vmatprep.subr.bf16.mxu0 0
      %4364 = vmatpush1.bf16.msra.mxu0 0
      %4365 = vmatprep.subr.bf16.mxu0 %v4351
      %4366 = vmatpush1.bf16.msra.mxu0 %v4350
      %4367 = vmatprep.subr.bf16.mxu0 %v4348
      %4368 = vmatpush1.bf16.msra.mxu0 %v4347
      %4369 = vmatprep.subr.bf16.mxu0 0
      %4370 = vmatpush2.bf16.msra.mxu0 0
      %4371 = vmatprep.subr.bf16.mxu0 0
      %4372 = vmatpush2.bf16.msra.mxu0 0
      %4373 = vmatprep.subr.bf16.mxu0 0
      %4374 = vmatpush2.bf16.msra.mxu0 0
      %4375 = vmatprep.subr.bf16.mxu0 0
      %4376 = vmatpush2.bf16.msra.mxu0 0
      %4377 = vmatprep.subr.bf16.mxu0 0
      %4378 = vmatpush2.bf16.msra.mxu0 0
      %4379 = vmatprep.subr.bf16.mxu0 0
      %4380 = vmatpush2.bf16.msra.mxu0 0
      %4381 = vmatprep.subr.bf16.mxu0 0
      %4382 = vmatpush2.bf16.msra.mxu0 0
      %4383 = vmatprep.subr.bf16.mxu0 0
      %4384 = vmatpush2.bf16.msra.mxu0 0
      %4385 = vmatprep.mubr.bf16.mxu0 0
      %4386 = vmatmul.mubr.bf16.gmra.mxu0 %v2383
      %v4387 = vpop.f32.mrf.mxu0
      %v4388 = vadd.f32 0.0, %v4387
      %v4389 = vpop.f32.mrf.mxu0
      %v4390 = vadd.f32 0.0, %v4389
      %v4391 = vpop.f32.mrf.mxu0
      %v4392 = vpop.f32.mrf.mxu0
      %4393 = vdwg.mxu0
      %4394 = vmatprep.subr.bf16.mxu0 0
      %4395 = vmatpush1.bf16.msra.mxu0 0
      %4396 = vmatprep.subr.bf16.mxu0 0
      %4397 = vmatpush1.bf16.msra.mxu0 0
      %4398 = vmatprep.subr.bf16.mxu0 0
      %4399 = vmatpush1.bf16.msra.mxu0 0
      %4400 = vmatprep.subr.bf16.mxu0 0
      %4401 = vmatpush1.bf16.msra.mxu0 0
      %4402 = vmatprep.subr.bf16.mxu0 0
      %4403 = vmatpush1.bf16.msra.mxu0 0
      %4404 = vmatprep.subr.bf16.mxu0 0
      %4405 = vmatpush1.bf16.msra.mxu0 0
      %4406 = vmatprep.subr.bf16.mxu0 0
      %4407 = vmatpush1.bf16.msra.mxu0 %v4352
      %4408 = vmatprep.subr.bf16.mxu0 0
      %4409 = vmatpush1.bf16.msra.mxu0 %v4349
      %4410 = vmatprep.subr.bf16.mxu0 0
      %4411 = vmatpush2.bf16.msra.mxu0 0
      %4412 = vmatprep.subr.bf16.mxu0 0
      %4413 = vmatpush2.bf16.msra.mxu0 0
      %4414 = vmatprep.subr.bf16.mxu0 0
      %4415 = vmatpush2.bf16.msra.mxu0 0
      %4416 = vmatprep.subr.bf16.mxu0 0
      %4417 = vmatpush2.bf16.msra.mxu0 0
      %4418 = vmatprep.subr.bf16.mxu0 0
      %4419 = vmatpush2.bf16.msra.mxu0 0
      %4420 = vmatprep.subr.bf16.mxu0 0
      %4421 = vmatpush2.bf16.msra.mxu0 0
      %4422 = vmatprep.subr.bf16.mxu0 0
      %4423 = vmatpush2.bf16.msra.mxu0 0
      %4424 = vmatprep.subr.bf16.mxu0 0
      %4425 = vmatpush2.bf16.msra.mxu0 0
      %4426 = vmatprep.mubr.bf16.mxu0 0
      %4427 = vmatmul.mubr.bf16.gmra.mxu0 %v2383
      %v4428 = vpop.f32.mrf.mxu0
      %v4429 = vadd.f32 0.0, %v4428
      %v4430 = vpop.f32.mrf.mxu0
      %v4431 = vpop.f32.mrf.mxu0
      %v4432 = vpop.f32.mrf.mxu0
      %4433 = vdwg.mxu0
      %v4434 = vadd.f32 %v4067, %v4388
      %v4435 = vadd.f32 %v4069, %v4390
      %v4436 = vadd.f32 %v4108, %v4429
      %v4437 = vmul.f32 %v4434, 0.5
      %v4438 = vmul.f32 %v4435, 0.5
      %v4439 = vmul.f32 %v4436, 0.5
      %v4443 = vrot.slane %v4437, 3
      %v4444 = vrot.slane %v4438, 3
      %v4445 = vrot.slane %v4439, 3
      %4449 = vrot.lane.b32.xlu0 %v4443, 32
      %v4450 = vpop.permute.xlu0 %4449
      %v4451 = vsel %vm2802, %v4450, %v4445
      %4452 = vrot.lane.b32.xlu0 %v4444, 32
      %v4453 = vpop.permute.xlu0 %4452
      %4454 = vrot.lane.b32.xlu0 %v4451, 32
      %v4455 = vpop.permute.xlu0 %4454
      %v4456 = vsel %vm2802, %v4453, %v4450
      %v4457 = vsel %vm2802, %v4455, %v4453
      %4461 = vrot.lane.b32.xlu0 %v4451, 97
      %v4462 = vpop.permute.xlu0 %4461
      %4463 = vrot.lane.b32.xlu0 %v4456, 97
      %v4464 = vpop.permute.xlu0 %4463
      %4465 = vrot.lane.b32.xlu0 %v4457, 97
      %v4466 = vpop.permute.xlu0 %4465
      %v4467 = vsel %vm2837, %v4462, %v4464
      %v4468 = vsel %vm2837, %v4464, %v4466
      %4472 = vrot.lane.b32.xlu0 %v4443, 127
      %v4473 = vpop.permute.xlu0 %4472
      %4474 = vrot.lane.b32.xlu0 %v4444, 127
      %v4475 = vpop.permute.xlu0 %4474
      %4476 = vrot.lane.b32.xlu0 %v4451, 127
      %v4477 = vpop.permute.xlu0 %4476
      %v4478 = vsel %vm2849, %v4473, %v4475
      %v4479 = vsel %vm2849, %v4475, %v4477
      %v4483 = vsel %vm2825, %v4467, %v4478
      %v4484 = vsel %vm2826, %v4468, %v4479
      %v4485 = vsel %vm2827, %v4466, %v4477
      %v4489 = vrot.slane %v4483, 5
      %v4490 = vrot.slane %v4484, 5
      %v4491 = vrot.slane %v4485, 5
      %v4495 = vadd.f32 %v4437, %v4489
      %v4496 = vadd.f32 %v4438, %v4490
      %v4497 = vadd.f32 %v4439, %v4491
      %v4498 = vmul.f32 %v4495, 0.5
      %v4499 = vmul.f32 %v4496, 0.5
      %v4500 = vmul.f32 %v4497, 0.5
      %v4504 = vrot.slane %v4498, 3
      %v4505 = vrot.slane %v4499, 3
      %v4506 = vrot.slane %v4500, 3
      %4510 = vrot.lane.b32.xlu0 %v4504, 32
      %v4511 = vpop.permute.xlu0 %4510
      %v4512 = vsel %vm2802, %v4511, %v4506
      %4513 = vrot.lane.b32.xlu0 %v4505, 32
      %v4514 = vpop.permute.xlu0 %4513
      %4515 = vrot.lane.b32.xlu0 %v4512, 32
      %v4516 = vpop.permute.xlu0 %4515
      %v4517 = vsel %vm2802, %v4514, %v4511
      %v4518 = vsel %vm2802, %v4516, %v4514
      %4522 = vrot.lane.b32.xlu0 %v4512, 114
      %v4523 = vpop.permute.xlu0 %4522
      %4524 = vrot.lane.b32.xlu0 %v4517, 114
      %v4525 = vpop.permute.xlu0 %4524
      %4526 = vrot.lane.b32.xlu0 %v4518, 114
      %v4527 = vpop.permute.xlu0 %4526
      %v4528 = vsel %vm2916, %v4523, %v4525
      %v4529 = vsel %vm2916, %v4525, %v4527
      %4533 = vrot.lane.b32.xlu0 %v4504, 110
      %v4534 = vpop.permute.xlu0 %4533
      %4535 = vrot.lane.b32.xlu0 %v4505, 110
      %v4536 = vpop.permute.xlu0 %4535
      %4537 = vrot.lane.b32.xlu0 %v4512, 110
      %v4538 = vpop.permute.xlu0 %4537
      %v4539 = vsel %vm2928, %v4534, %v4536
      %v4540 = vsel %vm2928, %v4536, %v4538
      %v4544 = vsel %vm2904, %v4528, %v4539
      %v4545 = vsel %vm2905, %v4529, %v4540
      %v4546 = vsel %vm2906, %v4527, %v4538
      %v4550 = vrot.slane %v4544, 5
      %v4551 = vrot.slane %v4545, 5
      %v4552 = vrot.slane %v4546, 5
      %v4556 = vadd.f32 %v4498, %v4550
      %v4557 = vadd.f32 %v4499, %v4551
      %v4558 = vadd.f32 %v4500, %v4552
      %v4559 = vmul.f32 %v4556, 0.5
      %v4560 = vmul.f32 %v4557, 0.5
      %v4561 = vmul.f32 %v4558, 0.5
      %v4562 = vadd.f32 %v4559, %v2956
      %v4563 = vadd.f32 %v4560, %v2956
      %v4564 = vadd.f32 %v4561, %v2956
      %v4568 = vrot.slane %v4562, 3
      %v4569 = vrot.slane %v4563, 3
      %v4570 = vrot.slane %v4564, 3
      %v4574 = vadd.f32 %v4067, %v4568
      %v4575 = vadd.f32 %v4069, %v4569
      %v4576 = vadd.f32 %v4108, %v4570
      %v4579 = vcombine.low %v4574, %v4575
      %s4581 = scalar_lea.vmem %s393, 48
      %4582 = vst [vmem:[%s4581] sm:$0x77] %v4579
      %4583 = vst.msk [vmem:[%s4581 + $0x8] sm:$0x7] %vm2978, %v4576
      %v4584 = vadd.f32 %v4388, %v4568
      %v4585 = vadd.f32 %v4390, %v4569
      %v4586 = vadd.f32 %v4429, %v4570
      %v4589 = vcombine.low %v4584, %v4585
      %s4591 = scalar_lea.vmem %s393, 60
      %4592 = vst [vmem:[%s4591] sm:$0x77] %v4589
      %4593 = vst.msk [vmem:[%s4591 + $0x8] sm:$0x7] %vm2978, %v4586
      %v4594 = vld [vmem:[#allocation2 + $0x120] sm:$0xff]
      %v4595 = vld [vmem:[#allocation2 + $0x128] sm:$0xf]
      %v4596 = vld [vmem:[#allocation2 + $0x12c] sm:$0xff]
      %v4597 = vld [vmem:[#allocation2 + $0x134] sm:$0xf]
      %v4598 = vld [vmem:[#allocation2 + $0x138] sm:$0xff]
      %v4599 = vld [vmem:[#allocation2 + $0x140] sm:$0xf]
      %v4600 = vld [vmem:[#allocation2 + $0x144] sm:$0xff]
      %v4601 = vld [vmem:[#allocation2 + $0x14c] sm:$0xf]
      %v4602 = vld [vmem:[#allocation2 + $0x150] sm:$0xff]
      %v4603 = vld [vmem:[#allocation2 + $0x158] sm:$0xf]
      %v4604 = vld [vmem:[#allocation2 + $0x15c] sm:$0xff]
      %v4605 = vld [vmem:[#allocation2 + $0x164] sm:$0xf]
      %v4606 = vld [vmem:[#allocation2 + $0x168] sm:$0xff]
      %v4607 = vld [vmem:[#allocation2 + $0x170] sm:$0xf]
      %v4608 = vld [vmem:[#allocation2 + $0x174] sm:$0xff]
      %v4609 = vld [vmem:[#allocation2 + $0x17c] sm:$0xf]
      %v4610 = vld [vmem:[#allocation2 + $0x180] sm:$0xff]
      %v4611 = vld [vmem:[#allocation2 + $0x188] sm:$0xf]
      %v4612 = vld [vmem:[#allocation2 + $0x18c] sm:$0xff]
      %v4613 = vld [vmem:[#allocation2 + $0x194] sm:$0xf]
      %v4614 = vld [vmem:[#allocation2 + $0x198] sm:$0xff]
      %v4615 = vld [vmem:[#allocation2 + $0x1a0] sm:$0xf]
      %v4616 = vld [vmem:[#allocation2 + $0x1a4] sm:$0xff]
      %v4617 = vld [vmem:[#allocation2 + $0x1ac] sm:$0xf]
      %v4642 = vunpack.c.l.b16 %v4594
      %v4643 = vunpack.c.h.b16 %v4594
      %v4644 = vunpack.c.l.b16 %v4595
      %v4645 = vunpack.c.l.b16 %v4596
      %v4646 = vunpack.c.h.b16 %v4596
      %v4647 = vunpack.c.l.b16 %v4597
      %v4648 = vunpack.c.l.b16 %v4598
      %v4649 = vunpack.c.h.b16 %v4598
      %v4650 = vunpack.c.l.b16 %v4599
      %v4651 = vunpack.c.l.b16 %v4600
      %v4652 = vunpack.c.h.b16 %v4600
      %v4653 = vunpack.c.l.b16 %v4601
      %v4654 = vunpack.c.l.b16 %v4602
      %v4655 = vunpack.c.h.b16 %v4602
      %v4656 = vunpack.c.l.b16 %v4603
      %v4657 = vunpack.c.l.b16 %v4604
      %v4658 = vunpack.c.h.b16 %v4604
      %v4659 = vunpack.c.l.b16 %v4605
      %v4660 = vunpack.c.l.b16 %v4606
      %v4661 = vunpack.c.h.b16 %v4606
      %v4662 = vunpack.c.l.b16 %v4607
      %v4663 = vunpack.c.l.b16 %v4608
      %v4664 = vunpack.c.h.b16 %v4608
      %v4665 = vunpack.c.l.b16 %v4609
      %v4666 = vunpack.c.l.b16 %v4610
      %v4667 = vunpack.c.h.b16 %v4610
      %v4668 = vunpack.c.l.b16 %v4611
      %v4669 = vunpack.c.l.b16 %v4612
      %v4670 = vunpack.c.h.b16 %v4612
      %v4671 = vunpack.c.l.b16 %v4613
      %v4672 = vunpack.c.l.b16 %v4614
      %v4673 = vunpack.c.h.b16 %v4614
      %v4674 = vunpack.c.l.b16 %v4615
      %v4675 = vunpack.c.l.b16 %v4616
      %v4676 = vunpack.c.h.b16 %v4616
      %v4677 = vunpack.c.l.b16 %v4617
      %v4678 = vpack.c.b16 %v4645, %v4642
      %v4679 = vpack.c.b16 %v4646, %v4643
      %v4680 = vpack.c.b16 %v4647, %v4644
      %v4681 = vpack.c.b16 %v4651, %v4648
      %v4682 = vpack.c.b16 %v4652, %v4649
      %v4683 = vpack.c.b16 %v4653, %v4650
      %v4684 = vpack.c.b16 %v4657, %v4654
      %v4685 = vpack.c.b16 %v4658, %v4655
      %v4686 = vpack.c.b16 %v4659, %v4656
      %v4687 = vpack.c.b16 %v4663, %v4660
      %v4688 = vpack.c.b16 %v4664, %v4661
      %v4689 = vpack.c.b16 %v4665, %v4662
      %v4690 = vpack.c.b16 %v4669, %v4666
      %v4691 = vpack.c.b16 %v4670, %v4667
      %v4692 = vpack.c.b16 %v4671, %v4668
      %v4693 = vpack.c.b16 %v4675, %v4672
      %v4694 = vpack.c.b16 %v4676, %v4673
      %v4695 = vpack.c.b16 %v4677, %v4674
      %4714 = vmatprep.subr.bf16.mxu0 0
      %4715 = vmatpush1.bf16.msra.mxu0 0
      %4716 = vmatprep.subr.bf16.mxu0 0
      %4717 = vmatpush1.bf16.msra.mxu0 0
      %4718 = vmatprep.subr.bf16.mxu0 %v4694
      %4719 = vmatpush1.bf16.msra.mxu0 %v4693
      %4720 = vmatprep.subr.bf16.mxu0 %v4691
      %4721 = vmatpush1.bf16.msra.mxu0 %v4690
      %4722 = vmatprep.subr.bf16.mxu0 %v4688
      %4723 = vmatpush1.bf16.msra.mxu0 %v4687
      %4724 = vmatprep.subr.bf16.mxu0 %v4685
      %4725 = vmatpush1.bf16.msra.mxu0 %v4684
      %4726 = vmatprep.subr.bf16.mxu0 %v4682
      %4727 = vmatpush1.bf16.msra.mxu0 %v4681
      %4728 = vmatprep.subr.bf16.mxu0 %v4679
      %4729 = vmatpush1.bf16.msra.mxu0 %v4678
      %4730 = vmatprep.subr.bf16.mxu0 0
      %4731 = vmatpush2.bf16.msra.mxu0 0
      %4732 = vmatprep.subr.bf16.mxu0 0
      %4733 = vmatpush2.bf16.msra.mxu0 0
      %4734 = vmatprep.subr.bf16.mxu0 0
      %4735 = vmatpush2.bf16.msra.mxu0 0
      %4736 = vmatprep.subr.bf16.mxu0 0
      %4737 = vmatpush2.bf16.msra.mxu0 0
      %4738 = vmatprep.subr.bf16.mxu0 0
      %4739 = vmatpush2.bf16.msra.mxu0 0
      %4740 = vmatprep.subr.bf16.mxu0 0
      %4741 = vmatpush2.bf16.msra.mxu0 0
      %4742 = vmatprep.subr.bf16.mxu0 0
      %4743 = vmatpush2.bf16.msra.mxu0 0
      %4744 = vmatprep.subr.bf16.mxu0 0
      %4745 = vmatpush2.bf16.msra.mxu0 0
      %4746 = vmatprep.mubr.bf16.mxu0 0
      %4747 = vmatmul.mubr.bf16.gmra.mxu0 %v2256
      %v4748 = vpop.f32.mrf.mxu0
      %v4749 = vadd.f32 %v2131, %v4748
      %v4750 = vpop.f32.mrf.mxu0
      %v4751 = vadd.f32 %v2131, %v4750
      %v4752 = vpop.f32.mrf.mxu0
      %v4753 = vadd.f32 %v2136, %v4752
      %v4754 = vpop.f32.mrf.mxu0
      %v4755 = vadd.f32 %v2136, %v4754
      %4756 = vmatprep.mubr.bf16.mxu0 0
      %4757 = vmatmul.mubr.bf16.gmra.mxu0 %v2259
      %v4758 = vpop.f32.mrf.mxu0
      %v4759 = vadd.f32 %v2141, %v4758
      %v4760 = vpop.f32.mrf.mxu0
      %v4761 = vadd.f32 %v2141, %v4760
      %v4762 = vpop.f32.mrf.mxu0
      %v4763 = vadd.f32 %v2146, %v4762
      %v4764 = vpop.f32.mrf.mxu0
      %v4765 = vadd.f32 %v2146, %v4764
      %4766 = vdwg.mxu0
      %4767 = vmatprep.subr.bf16.mxu0 0
      %4768 = vmatpush1.bf16.msra.mxu0 0
      %4769 = vmatprep.subr.bf16.mxu0 0
      %4770 = vmatpush1.bf16.msra.mxu0 0
      %4771 = vmatprep.subr.bf16.mxu0 0
      %4772 = vmatpush1.bf16.msra.mxu0 %v4695
      %4773 = vmatprep.subr.bf16.mxu0 0
      %4774 = vmatpush1.bf16.msra.mxu0 %v4692
      %4775 = vmatprep.subr.bf16.mxu0 0
      %4776 = vmatpush1.bf16.msra.mxu0 %v4689
      %4777 = vmatprep.subr.bf16.mxu0 0
      %4778 = vmatpush1.bf16.msra.mxu0 %v4686
      %4779 = vmatprep.subr.bf16.mxu0 0
      %4780 = vmatpush1.bf16.msra.mxu0 %v4683
      %4781 = vmatprep.subr.bf16.mxu0 0
      %4782 = vmatpush1.bf16.msra.mxu0 %v4680
      %4783 = vmatprep.subr.bf16.mxu0 0
      %4784 = vmatpush2.bf16.msra.mxu0 0
      %4785 = vmatprep.subr.bf16.mxu0 0
      %4786 = vmatpush2.bf16.msra.mxu0 0
      %4787 = vmatprep.subr.bf16.mxu0 0
      %4788 = vmatpush2.bf16.msra.mxu0 0
      %4789 = vmatprep.subr.bf16.mxu0 0
      %4790 = vmatpush2.bf16.msra.mxu0 0
      %4791 = vmatprep.subr.bf16.mxu0 0
      %4792 = vmatpush2.bf16.msra.mxu0 0
      %4793 = vmatprep.subr.bf16.mxu0 0
      %4794 = vmatpush2.bf16.msra.mxu0 0
      %4795 = vmatprep.subr.bf16.mxu0 0
      %4796 = vmatpush2.bf16.msra.mxu0 0
      %4797 = vmatprep.subr.bf16.mxu0 0
      %4798 = vmatpush2.bf16.msra.mxu0 0
      %4799 = vmatprep.mubr.bf16.mxu0 0
      %4800 = vmatmul.mubr.bf16.gmra.mxu0 %v2256
      %v4801 = vpop.f32.mrf.mxu0
      %v4802 = vadd.f32 %v2131, %v4801
      %v4803 = vpop.f32.mrf.mxu0
      %v4804 = vpop.f32.mrf.mxu0
      %v4805 = vadd.f32 %v2136, %v4804
      %v4806 = vpop.f32.mrf.mxu0
      %4807 = vmatprep.mubr.bf16.mxu0 0
      %4808 = vmatmul.mubr.bf16.gmra.mxu0 %v2259
      %v4809 = vpop.f32.mrf.mxu0
      %v4810 = vadd.f32 %v2141, %v4809
      %v4811 = vpop.f32.mrf.mxu0
      %v4812 = vpop.f32.mrf.mxu0
      %v4813 = vadd.f32 %v2146, %v4812
      %v4814 = vpop.f32.mrf.mxu0
      %4815 = vdwg.mxu0
      %v4816 = vmax.f32 %v4749, 0.0
      %v4817 = vmax.f32 %v4751, 0.0
      %v4818 = vmax.f32 %v4802, 0.0
      %v4819 = vmax.f32 %v4753, 0.0
      %v4820 = vmax.f32 %v4755, 0.0
      %v4821 = vmax.f32 %v4805, 0.0
      %v4822 = vmax.f32 %v4759, 0.0
      %v4823 = vmax.f32 %v4761, 0.0
      %v4824 = vmax.f32 %v4810, 0.0
      %v4825 = vmax.f32 %v4763, 0.0
      %v4826 = vmax.f32 %v4765, 0.0
      %v4827 = vmax.f32 %v4813, 0.0
      %v4828 = vpack.c.bf16 %v4819, %v4816
      %v4829 = vpack.c.bf16 %v4820, %v4817
      %v4830 = vpack.c.bf16 %v4821, %v4818
      %v4831 = vpack.c.bf16 %v4825, %v4822
      %v4832 = vpack.c.bf16 %v4826, %v4823
      %v4833 = vpack.c.bf16 %v4827, %v4824
      %4834 = vmatprep.subr.bf16.mxu0 0
      %4835 = vmatpush1.bf16.msra.mxu0 0
      %4836 = vmatprep.subr.bf16.mxu0 0
      %4837 = vmatpush1.bf16.msra.mxu0 0
      %4838 = vmatprep.subr.bf16.mxu0 0
      %4839 = vmatpush1.bf16.msra.mxu0 0
      %4840 = vmatprep.subr.bf16.mxu0 0
      %4841 = vmatpush1.bf16.msra.mxu0 0
      %4842 = vmatprep.subr.bf16.mxu0 0
      %4843 = vmatpush1.bf16.msra.mxu0 0
      %4844 = vmatprep.subr.bf16.mxu0 0
      %4845 = vmatpush1.bf16.msra.mxu0 0
      %4846 = vmatprep.subr.bf16.mxu0 %v4832
      %4847 = vmatpush1.bf16.msra.mxu0 %v4831
      %4848 = vmatprep.subr.bf16.mxu0 %v4829
      %4849 = vmatpush1.bf16.msra.mxu0 %v4828
      %4850 = vmatprep.subr.bf16.mxu0 0
      %4851 = vmatpush2.bf16.msra.mxu0 0
      %4852 = vmatprep.subr.bf16.mxu0 0
      %4853 = vmatpush2.bf16.msra.mxu0 0
      %4854 = vmatprep.subr.bf16.mxu0 0
      %4855 = vmatpush2.bf16.msra.mxu0 0
      %4856 = vmatprep.subr.bf16.mxu0 0
      %4857 = vmatpush2.bf16.msra.mxu0 0
      %4858 = vmatprep.subr.bf16.mxu0 0
      %4859 = vmatpush2.bf16.msra.mxu0 0
      %4860 = vmatprep.subr.bf16.mxu0 0
      %4861 = vmatpush2.bf16.msra.mxu0 0
      %4862 = vmatprep.subr.bf16.mxu0 0
      %4863 = vmatpush2.bf16.msra.mxu0 0
      %4864 = vmatprep.subr.bf16.mxu0 0
      %4865 = vmatpush2.bf16.msra.mxu0 0
      %4866 = vmatprep.mubr.bf16.mxu0 0
      %4867 = vmatmul.mubr.bf16.gmra.mxu0 %v2383
      %v4868 = vpop.f32.mrf.mxu0
      %v4869 = vadd.f32 0.0, %v4868
      %v4870 = vpop.f32.mrf.mxu0
      %v4871 = vadd.f32 0.0, %v4870
      %v4872 = vpop.f32.mrf.mxu0
      %v4873 = vpop.f32.mrf.mxu0
      %4874 = vdwg.mxu0
      %4875 = vmatprep.subr.bf16.mxu0 0
      %4876 = vmatpush1.bf16.msra.mxu0 0
      %4877 = vmatprep.subr.bf16.mxu0 0
      %4878 = vmatpush1.bf16.msra.mxu0 0
      %4879 = vmatprep.subr.bf16.mxu0 0
      %4880 = vmatpush1.bf16.msra.mxu0 0
      %4881 = vmatprep.subr.bf16.mxu0 0
      %4882 = vmatpush1.bf16.msra.mxu0 0
      %4883 = vmatprep.subr.bf16.mxu0 0
      %4884 = vmatpush1.bf16.msra.mxu0 0
      %4885 = vmatprep.subr.bf16.mxu0 0
      %4886 = vmatpush1.bf16.msra.mxu0 0
      %4887 = vmatprep.subr.bf16.mxu0 0
      %4888 = vmatpush1.bf16.msra.mxu0 %v4833
      %4889 = vmatprep.subr.bf16.mxu0 0
      %4890 = vmatpush1.bf16.msra.mxu0 %v4830
      %4891 = vmatprep.subr.bf16.mxu0 0
      %4892 = vmatpush2.bf16.msra.mxu0 0
      %4893 = vmatprep.subr.bf16.mxu0 0
      %4894 = vmatpush2.bf16.msra.mxu0 0
      %4895 = vmatprep.subr.bf16.mxu0 0
      %4896 = vmatpush2.bf16.msra.mxu0 0
      %4897 = vmatprep.subr.bf16.mxu0 0
      %4898 = vmatpush2.bf16.msra.mxu0 0
      %4899 = vmatprep.subr.bf16.mxu0 0
      %4900 = vmatpush2.bf16.msra.mxu0 0
      %4901 = vmatprep.subr.bf16.mxu0 0
      %4902 = vmatpush2.bf16.msra.mxu0 0
      %4903 = vmatprep.subr.bf16.mxu0 0
      %4904 = vmatpush2.bf16.msra.mxu0 0
      %4905 = vmatprep.subr.bf16.mxu0 0
      %4906 = vmatpush2.bf16.msra.mxu0 0
      %4907 = vmatprep.mubr.bf16.mxu0 0
      %4908 = vmatmul.mubr.bf16.gmra.mxu0 %v2383
      %v4909 = vpop.f32.mrf.mxu0
      %v4910 = vadd.f32 0.0, %v4909
      %v4911 = vpop.f32.mrf.mxu0
      %v4912 = vpop.f32.mrf.mxu0
      %v4913 = vpop.f32.mrf.mxu0
      %4914 = vdwg.mxu0
      %v4915 = vld [vmem:[#allocation2 + $0x150] sm:$0xff]
      %v4916 = vld [vmem:[#allocation2 + $0x158] sm:$0xf]
      %v4917 = vld [vmem:[#allocation2 + $0x15c] sm:$0xff]
      %v4918 = vld [vmem:[#allocation2 + $0x164] sm:$0xf]
      %v4919 = vld [vmem:[#allocation2 + $0x168] sm:$0xff]
      %v4920 = vld [vmem:[#allocation2 + $0x170] sm:$0xf]
      %v4921 = vld [vmem:[#allocation2 + $0x174] sm:$0xff]
      %v4922 = vld [vmem:[#allocation2 + $0x17c] sm:$0xf]
      %v4923 = vld [vmem:[#allocation2 + $0x180] sm:$0xff]
      %v4924 = vld [vmem:[#allocation2 + $0x188] sm:$0xf]
      %v4925 = vld [vmem:[#allocation2 + $0x18c] sm:$0xff]
      %v4926 = vld [vmem:[#allocation2 + $0x194] sm:$0xf]
      %v4927 = vld [vmem:[#allocation2 + $0x198] sm:$0xff]
      %v4928 = vld [vmem:[#allocation2 + $0x1a0] sm:$0xf]
      %v4929 = vld [vmem:[#allocation2 + $0x1a4] sm:$0xff]
      %v4930 = vld [vmem:[#allocation2 + $0x1ac] sm:$0xf]
      %v4931 = vld [vmem:[#allocation2 + $0x1b0] sm:$0xff]
      %v4932 = vld [vmem:[#allocation2 + $0x1b8] sm:$0xf]
      %v4933 = vld [vmem:[#allocation2 + $0x1bc] sm:$0xff]
      %v4934 = vld [vmem:[#allocation2 + $0x1c4] sm:$0xf]
      %v4935 = vld [vmem:[#allocation2 + $0x1c8] sm:$0xff]
      %v4936 = vld [vmem:[#allocation2 + $0x1d0] sm:$0xf]
      %v4937 = vld [vmem:[#allocation2 + $0x1d4] sm:$0xff]
      %v4938 = vld [vmem:[#allocation2 + $0x1dc] sm:$0xf]
      %v4963 = vunpack.c.l.b16 %v4915
      %v4964 = vunpack.c.h.b16 %v4915
      %v4965 = vunpack.c.l.b16 %v4916
      %v4966 = vunpack.c.l.b16 %v4917
      %v4967 = vunpack.c.h.b16 %v4917
      %v4968 = vunpack.c.l.b16 %v4918
      %v4969 = vunpack.c.l.b16 %v4919
      %v4970 = vunpack.c.h.b16 %v4919
      %v4971 = vunpack.c.l.b16 %v4920
      %v4972 = vunpack.c.l.b16 %v4921
      %v4973 = vunpack.c.h.b16 %v4921
      %v4974 = vunpack.c.l.b16 %v4922
      %v4975 = vunpack.c.l.b16 %v4923
      %v4976 = vunpack.c.h.b16 %v4923
      %v4977 = vunpack.c.l.b16 %v4924
      %v4978 = vunpack.c.l.b16 %v4925
      %v4979 = vunpack.c.h.b16 %v4925
      %v4980 = vunpack.c.l.b16 %v4926
      %v4981 = vunpack.c.l.b16 %v4927
      %v4982 = vunpack.c.h.b16 %v4927
      %v4983 = vunpack.c.l.b16 %v4928
      %v4984 = vunpack.c.l.b16 %v4929
      %v4985 = vunpack.c.h.b16 %v4929
      %v4986 = vunpack.c.l.b16 %v4930
      %v4987 = vunpack.c.l.b16 %v4931
      %v4988 = vunpack.c.h.b16 %v4931
      %v4989 = vunpack.c.l.b16 %v4932
      %v4990 = vunpack.c.l.b16 %v4933
      %v4991 = vunpack.c.h.b16 %v4933
      %v4992 = vunpack.c.l.b16 %v4934
      %v4993 = vunpack.c.l.b16 %v4935
      %v4994 = vunpack.c.h.b16 %v4935
      %v4995 = vunpack.c.l.b16 %v4936
      %v4996 = vunpack.c.l.b16 %v4937
      %v4997 = vunpack.c.h.b16 %v4937
      %v4998 = vunpack.c.l.b16 %v4938
      %v4999 = vpack.c.b16 %v4966, %v4963
      %v5000 = vpack.c.b16 %v4967, %v4964
      %v5001 = vpack.c.b16 %v4968, %v4965
      %v5002 = vpack.c.b16 %v4972, %v4969
      %v5003 = vpack.c.b16 %v4973, %v4970
      %v5004 = vpack.c.b16 %v4974, %v4971
      %v5005 = vpack.c.b16 %v4978, %v4975
      %v5006 = vpack.c.b16 %v4979, %v4976
      %v5007 = vpack.c.b16 %v4980, %v4977
      %v5008 = vpack.c.b16 %v4984, %v4981
      %v5009 = vpack.c.b16 %v4985, %v4982
      %v5010 = vpack.c.b16 %v4986, %v4983
      %v5011 = vpack.c.b16 %v4990, %v4987
      %v5012 = vpack.c.b16 %v4991, %v4988
      %v5013 = vpack.c.b16 %v4992, %v4989
      %v5014 = vpack.c.b16 %v4996, %v4993
      %v5015 = vpack.c.b16 %v4997, %v4994
      %v5016 = vpack.c.b16 %v4998, %v4995
      %5035 = vmatprep.subr.bf16.mxu0 0
      %5036 = vmatpush1.bf16.msra.mxu0 0
      %5037 = vmatprep.subr.bf16.mxu0 0
      %5038 = vmatpush1.bf16.msra.mxu0 0
      %5039 = vmatprep.subr.bf16.mxu0 %v5015
      %5040 = vmatpush1.bf16.msra.mxu0 %v5014
      %5041 = vmatprep.subr.bf16.mxu0 %v5012
      %5042 = vmatpush1.bf16.msra.mxu0 %v5011
      %5043 = vmatprep.subr.bf16.mxu0 %v5009
      %5044 = vmatpush1.bf16.msra.mxu0 %v5008
      %5045 = vmatprep.subr.bf16.mxu0 %v5006
      %5046 = vmatpush1.bf16.msra.mxu0 %v5005
      %5047 = vmatprep.subr.bf16.mxu0 %v5003
      %5048 = vmatpush1.bf16.msra.mxu0 %v5002
      %5049 = vmatprep.subr.bf16.mxu0 %v5000
      %5050 = vmatpush1.bf16.msra.mxu0 %v4999
      %5051 = vmatprep.subr.bf16.mxu0 0
      %5052 = vmatpush2.bf16.msra.mxu0 0
      %5053 = vmatprep.subr.bf16.mxu0 0
      %5054 = vmatpush2.bf16.msra.mxu0 0
      %5055 = vmatprep.subr.bf16.mxu0 0
      %5056 = vmatpush2.bf16.msra.mxu0 0
      %5057 = vmatprep.subr.bf16.mxu0 0
      %5058 = vmatpush2.bf16.msra.mxu0 0
      %5059 = vmatprep.subr.bf16.mxu0 0
      %5060 = vmatpush2.bf16.msra.mxu0 0
      %5061 = vmatprep.subr.bf16.mxu0 0
      %5062 = vmatpush2.bf16.msra.mxu0 0
      %5063 = vmatprep.subr.bf16.mxu0 0
      %5064 = vmatpush2.bf16.msra.mxu0 0
      %5065 = vmatprep.subr.bf16.mxu0 0
      %5066 = vmatpush2.bf16.msra.mxu0 0
      %5067 = vmatprep.mubr.bf16.mxu0 0
      %5068 = vmatmul.mubr.bf16.gmra.mxu0 %v2256
      %v5069 = vpop.f32.mrf.mxu0
      %v5070 = vadd.f32 %v2131, %v5069
      %v5071 = vpop.f32.mrf.mxu0
      %v5072 = vadd.f32 %v2131, %v5071
      %v5073 = vpop.f32.mrf.mxu0
      %v5074 = vadd.f32 %v2136, %v5073
      %v5075 = vpop.f32.mrf.mxu0
      %v5076 = vadd.f32 %v2136, %v5075
      %5077 = vmatprep.mubr.bf16.mxu0 0
      %5078 = vmatmul.mubr.bf16.gmra.mxu0 %v2259
      %v5079 = vpop.f32.mrf.mxu0
      %v5080 = vadd.f32 %v2141, %v5079
      %v5081 = vpop.f32.mrf.mxu0
      %v5082 = vadd.f32 %v2141, %v5081
      %v5083 = vpop.f32.mrf.mxu0
      %v5084 = vadd.f32 %v2146, %v5083
      %v5085 = vpop.f32.mrf.mxu0
      %v5086 = vadd.f32 %v2146, %v5085
      %5087 = vdwg.mxu0
      %5088 = vmatprep.subr.bf16.mxu0 0
      %5089 = vmatpush1.bf16.msra.mxu0 0
      %5090 = vmatprep.subr.bf16.mxu0 0
      %5091 = vmatpush1.bf16.msra.mxu0 0
      %5092 = vmatprep.subr.bf16.mxu0 0
      %5093 = vmatpush1.bf16.msra.mxu0 %v5016
      %5094 = vmatprep.subr.bf16.mxu0 0
      %5095 = vmatpush1.bf16.msra.mxu0 %v5013
      %5096 = vmatprep.subr.bf16.mxu0 0
      %5097 = vmatpush1.bf16.msra.mxu0 %v5010
      %5098 = vmatprep.subr.bf16.mxu0 0
      %5099 = vmatpush1.bf16.msra.mxu0 %v5007
      %5100 = vmatprep.subr.bf16.mxu0 0
      %5101 = vmatpush1.bf16.msra.mxu0 %v5004
      %5102 = vmatprep.subr.bf16.mxu0 0
      %5103 = vmatpush1.bf16.msra.mxu0 %v5001
      %5104 = vmatprep.subr.bf16.mxu0 0
      %5105 = vmatpush2.bf16.msra.mxu0 0
      %5106 = vmatprep.subr.bf16.mxu0 0
      %5107 = vmatpush2.bf16.msra.mxu0 0
      %5108 = vmatprep.subr.bf16.mxu0 0
      %5109 = vmatpush2.bf16.msra.mxu0 0
      %5110 = vmatprep.subr.bf16.mxu0 0
      %5111 = vmatpush2.bf16.msra.mxu0 0
      %5112 = vmatprep.subr.bf16.mxu0 0
      %5113 = vmatpush2.bf16.msra.mxu0 0
      %5114 = vmatprep.subr.bf16.mxu0 0
      %5115 = vmatpush2.bf16.msra.mxu0 0
      %5116 = vmatprep.subr.bf16.mxu0 0
      %5117 = vmatpush2.bf16.msra.mxu0 0
      %5118 = vmatprep.subr.bf16.mxu0 0
      %5119 = vmatpush2.bf16.msra.mxu0 0
      %5120 = vmatprep.mubr.bf16.mxu0 0
      %5121 = vmatmul.mubr.bf16.gmra.mxu0 %v2256
      %v5122 = vpop.f32.mrf.mxu0
      %v5123 = vadd.f32 %v2131, %v5122
      %v5124 = vpop.f32.mrf.mxu0
      %v5125 = vpop.f32.mrf.mxu0
      %v5126 = vadd.f32 %v2136, %v5125
      %v5127 = vpop.f32.mrf.mxu0
      %5128 = vmatprep.mubr.bf16.mxu0 0
      %5129 = vmatmul.mubr.bf16.gmra.mxu0 %v2259
      %v5130 = vpop.f32.mrf.mxu0
      %v5131 = vadd.f32 %v2141, %v5130
      %v5132 = vpop.f32.mrf.mxu0
      %v5133 = vpop.f32.mrf.mxu0
      %v5134 = vadd.f32 %v2146, %v5133
      %v5135 = vpop.f32.mrf.mxu0
      %5136 = vdwg.mxu0
      %v5137 = vmax.f32 %v5070, 0.0
      %v5138 = vmax.f32 %v5072, 0.0
      %v5139 = vmax.f32 %v5123, 0.0
      %v5140 = vmax.f32 %v5074, 0.0
      %v5141 = vmax.f32 %v5076, 0.0
      %v5142 = vmax.f32 %v5126, 0.0
      %v5143 = vmax.f32 %v5080, 0.0
      %v5144 = vmax.f32 %v5082, 0.0
      %v5145 = vmax.f32 %v5131, 0.0
      %v5146 = vmax.f32 %v5084, 0.0
      %v5147 = vmax.f32 %v5086, 0.0
      %v5148 = vmax.f32 %v5134, 0.0
      %v5149 = vpack.c.bf16 %v5140, %v5137
      %v5150 = vpack.c.bf16 %v5141, %v5138
      %v5151 = vpack.c.bf16 %v5142, %v5139
      %v5152 = vpack.c.bf16 %v5146, %v5143
      %v5153 = vpack.c.bf16 %v5147, %v5144
      %v5154 = vpack.c.bf16 %v5148, %v5145
      %5155 = vmatprep.subr.bf16.mxu0 0
      %5156 = vmatpush1.bf16.msra.mxu0 0
      %5157 = vmatprep.subr.bf16.mxu0 0
      %5158 = vmatpush1.bf16.msra.mxu0 0
      %5159 = vmatprep.subr.bf16.mxu0 0
      %5160 = vmatpush1.bf16.msra.mxu0 0
      %5161 = vmatprep.subr.bf16.mxu0 0
      %5162 = vmatpush1.bf16.msra.mxu0 0
      %5163 = vmatprep.subr.bf16.mxu0 0
      %5164 = vmatpush1.bf16.msra.mxu0 0
      %5165 = vmatprep.subr.bf16.mxu0 0
      %5166 = vmatpush1.bf16.msra.mxu0 0
      %5167 = vmatprep.subr.bf16.mxu0 %v5153
      %5168 = vmatpush1.bf16.msra.mxu0 %v5152
      %5169 = vmatprep.subr.bf16.mxu0 %v5150
      %5170 = vmatpush1.bf16.msra.mxu0 %v5149
      %5171 = vmatprep.subr.bf16.mxu0 0
      %5172 = vmatpush2.bf16.msra.mxu0 0
      %5173 = vmatprep.subr.bf16.mxu0 0
      %5174 = vmatpush2.bf16.msra.mxu0 0
      %5175 = vmatprep.subr.bf16.mxu0 0
      %5176 = vmatpush2.bf16.msra.mxu0 0
      %5177 = vmatprep.subr.bf16.mxu0 0
      %5178 = vmatpush2.bf16.msra.mxu0 0
      %5179 = vmatprep.subr.bf16.mxu0 0
      %5180 = vmatpush2.bf16.msra.mxu0 0
      %5181 = vmatprep.subr.bf16.mxu0 0
      %5182 = vmatpush2.bf16.msra.mxu0 0
      %5183 = vmatprep.subr.bf16.mxu0 0
      %5184 = vmatpush2.bf16.msra.mxu0 0
      %5185 = vmatprep.subr.bf16.mxu0 0
      %5186 = vmatpush2.bf16.msra.mxu0 0
      %5187 = vmatprep.mubr.bf16.mxu0 0
      %5188 = vmatmul.mubr.bf16.gmra.mxu0 %v2383
      %v5189 = vpop.f32.mrf.mxu0
      %v5190 = vadd.f32 0.0, %v5189
      %v5191 = vpop.f32.mrf.mxu0
      %v5192 = vadd.f32 0.0, %v5191
      %v5193 = vpop.f32.mrf.mxu0
      %v5194 = vpop.f32.mrf.mxu0
      %5195 = vdwg.mxu0
      %5196 = vmatprep.subr.bf16.mxu0 0
      %5197 = vmatpush1.bf16.msra.mxu0 0
      %5198 = vmatprep.subr.bf16.mxu0 0
      %5199 = vmatpush1.bf16.msra.mxu0 0
      %5200 = vmatprep.subr.bf16.mxu0 0
      %5201 = vmatpush1.bf16.msra.mxu0 0
      %5202 = vmatprep.subr.bf16.mxu0 0
      %5203 = vmatpush1.bf16.msra.mxu0 0
      %5204 = vmatprep.subr.bf16.mxu0 0
      %5205 = vmatpush1.bf16.msra.mxu0 0
      %5206 = vmatprep.subr.bf16.mxu0 0
      %5207 = vmatpush1.bf16.msra.mxu0 0
      %5208 = vmatprep.subr.bf16.mxu0 0
      %5209 = vmatpush1.bf16.msra.mxu0 %v5154
      %5210 = vmatprep.subr.bf16.mxu0 0
      %5211 = vmatpush1.bf16.msra.mxu0 %v5151
      %5212 = vmatprep.subr.bf16.mxu0 0
      %5213 = vmatpush2.bf16.msra.mxu0 0
      %5214 = vmatprep.subr.bf16.mxu0 0
      %5215 = vmatpush2.bf16.msra.mxu0 0
      %5216 = vmatprep.subr.bf16.mxu0 0
      %5217 = vmatpush2.bf16.msra.mxu0 0
      %5218 = vmatprep.subr.bf16.mxu0 0
      %5219 = vmatpush2.bf16.msra.mxu0 0
      %5220 = vmatprep.subr.bf16.mxu0 0
      %5221 = vmatpush2.bf16.msra.mxu0 0
      %5222 = vmatprep.subr.bf16.mxu0 0
      %5223 = vmatpush2.bf16.msra.mxu0 0
      %5224 = vmatprep.subr.bf16.mxu0 0
      %5225 = vmatpush2.bf16.msra.mxu0 0
      %5226 = vmatprep.subr.bf16.mxu0 0
      %5227 = vmatpush2.bf16.msra.mxu0 0
      %5228 = vmatprep.mubr.bf16.mxu0 0
      %5229 = vmatmul.mubr.bf16.gmra.mxu0 %v2383
      %v5230 = vpop.f32.mrf.mxu0
      %v5231 = vadd.f32 0.0, %v5230
      %v5232 = vpop.f32.mrf.mxu0
      %v5233 = vpop.f32.mrf.mxu0
      %v5234 = vpop.f32.mrf.mxu0
      %5235 = vdwg.mxu0
      %v5236 = vadd.f32 %v4869, %v5190
      %v5237 = vadd.f32 %v4871, %v5192
      %v5238 = vadd.f32 %v4910, %v5231
      %v5239 = vmul.f32 %v5236, 0.5
      %v5240 = vmul.f32 %v5237, 0.5
      %v5241 = vmul.f32 %v5238, 0.5
      %v5245 = vrot.slane %v5239, 3
      %v5246 = vrot.slane %v5240, 3
      %v5247 = vrot.slane %v5241, 3
      %5251 = vrot.lane.b32.xlu0 %v5245, 32
      %v5252 = vpop.permute.xlu0 %5251
      %v5253 = vsel %vm2802, %v5252, %v5247
      %5254 = vrot.lane.b32.xlu0 %v5246, 32
      %v5255 = vpop.permute.xlu0 %5254
      %5256 = vrot.lane.b32.xlu0 %v5253, 32
      %v5257 = vpop.permute.xlu0 %5256
      %v5258 = vsel %vm2802, %v5255, %v5252
      %v5259 = vsel %vm2802, %v5257, %v5255
      %5263 = vrot.lane.b32.xlu0 %v5253, 97
      %v5264 = vpop.permute.xlu0 %5263
      %5265 = vrot.lane.b32.xlu0 %v5258, 97
      %v5266 = vpop.permute.xlu0 %5265
      %5267 = vrot.lane.b32.xlu0 %v5259, 97
      %v5268 = vpop.permute.xlu0 %5267
      %v5269 = vsel %vm2837, %v5264, %v5266
      %v5270 = vsel %vm2837, %v5266, %v5268
      %5274 = vrot.lane.b32.xlu0 %v5245, 127
      %v5275 = vpop.permute.xlu0 %5274
      %5276 = vrot.lane.b32.xlu0 %v5246, 127
      %v5277 = vpop.permute.xlu0 %5276
      %5278 = vrot.lane.b32.xlu0 %v5253, 127
      %v5279 = vpop.permute.xlu0 %5278
      %v5280 = vsel %vm2849, %v5275, %v5277
      %v5281 = vsel %vm2849, %v5277, %v5279
      %v5285 = vsel %vm2825, %v5269, %v5280
      %v5286 = vsel %vm2826, %v5270, %v5281
      %v5287 = vsel %vm2827, %v5268, %v5279
      %v5291 = vrot.slane %v5285, 5
      %v5292 = vrot.slane %v5286, 5
      %v5293 = vrot.slane %v5287, 5
      %v5297 = vadd.f32 %v5239, %v5291
      %v5298 = vadd.f32 %v5240, %v5292
      %v5299 = vadd.f32 %v5241, %v5293
      %v5300 = vmul.f32 %v5297, 0.5
      %v5301 = vmul.f32 %v5298, 0.5
      %v5302 = vmul.f32 %v5299, 0.5
      %v5306 = vrot.slane %v5300, 3
      %v5307 = vrot.slane %v5301, 3
      %v5308 = vrot.slane %v5302, 3
      %5312 = vrot.lane.b32.xlu0 %v5306, 32
      %v5313 = vpop.permute.xlu0 %5312
      %v5314 = vsel %vm2802, %v5313, %v5308
      %5315 = vrot.lane.b32.xlu0 %v5307, 32
      %v5316 = vpop.permute.xlu0 %5315
      %5317 = vrot.lane.b32.xlu0 %v5314, 32
      %v5318 = vpop.permute.xlu0 %5317
      %v5319 = vsel %vm2802, %v5316, %v5313
      %v5320 = vsel %vm2802, %v5318, %v5316
      %5324 = vrot.lane.b32.xlu0 %v5314, 114
      %v5325 = vpop.permute.xlu0 %5324
      %5326 = vrot.lane.b32.xlu0 %v5319, 114
      %v5327 = vpop.permute.xlu0 %5326
      %5328 = vrot.lane.b32.xlu0 %v5320, 114
      %v5329 = vpop.permute.xlu0 %5328
      %v5330 = vsel %vm2916, %v5325, %v5327
      %v5331 = vsel %vm2916, %v5327, %v5329
      %5335 = vrot.lane.b32.xlu0 %v5306, 110
      %v5336 = vpop.permute.xlu0 %5335
      %5337 = vrot.lane.b32.xlu0 %v5307, 110
      %v5338 = vpop.permute.xlu0 %5337
      %5339 = vrot.lane.b32.xlu0 %v5314, 110
      %v5340 = vpop.permute.xlu0 %5339
      %v5341 = vsel %vm2928, %v5336, %v5338
      %v5342 = vsel %vm2928, %v5338, %v5340
      %v5346 = vsel %vm2904, %v5330, %v5341
      %v5347 = vsel %vm2905, %v5331, %v5342
      %v5348 = vsel %vm2906, %v5329, %v5340
      %v5352 = vrot.slane %v5346, 5
      %v5353 = vrot.slane %v5347, 5
      %v5354 = vrot.slane %v5348, 5
      %v5358 = vadd.f32 %v5300, %v5352
      %v5359 = vadd.f32 %v5301, %v5353
      %v5360 = vadd.f32 %v5302, %v5354
      %v5361 = vmul.f32 %v5358, 0.5
      %v5362 = vmul.f32 %v5359, 0.5
      %v5363 = vmul.f32 %v5360, 0.5
      %v5364 = vadd.f32 %v5361, %v2956
      %v5365 = vadd.f32 %v5362, %v2956
      %v5366 = vadd.f32 %v5363, %v2956
      %v5370 = vrot.slane %v5364, 3
      %v5371 = vrot.slane %v5365, 3
      %v5372 = vrot.slane %v5366, 3
      %v5376 = vadd.f32 %v4869, %v5370
      %v5377 = vadd.f32 %v4871, %v5371
      %v5378 = vadd.f32 %v4910, %v5372
      %v5381 = vcombine.low %v5376, %v5377
      %s5383 = scalar_lea.vmem %s393, 72
      %5384 = vst [vmem:[%s5383] sm:$0x77] %v5381
      %5385 = vst.msk [vmem:[%s5383 + $0x8] sm:$0x7] %vm2978, %v5378
      %v5386 = vadd.f32 %v5190, %v5370
      %v5387 = vadd.f32 %v5192, %v5371
      %v5388 = vadd.f32 %v5231, %v5372
      %v5391 = vcombine.low %v5386, %v5387
      %s5393 = scalar_lea.vmem %s393, 84
      %5394 = vst [vmem:[%s5393] sm:$0x77] %v5391
      %5395 = vst.msk [vmem:[%s5393 + $0x8] sm:$0x7] %vm2978, %v5388
      %s5396 = smul.u32 8, %s23
      %p5397 = scmp.lt.s32.totalorder %s22, 1
      %s5398 = scalar_select %p5397, %s22, 1
      %p5399 = scmp.lt.s32.totalorder %s5396, 15
      %s5400 = scalar_select %p5399, %s5396, 15
      %s5401 = smul.addr %s5400, 3
      %s5402 = smul.addr %s5398, 48
      %s5403 = sadd.s32 %s5401, %s5402
      %s5404 = smul.addr %s5403, 4
      %s5405 = scalar_lea.vmem %s7, %s5404
      // Predicated region
      $region49: #{forward.1} parent=47 // pred_check
        %p5406 = pneg %p215
      $region50: #{forward.1} parent=47 // pred_check_branch
        %5408 = sbr.rel (%p5406) target = $region52
      $region51: #{forward.1} parent=47 // pred_region
        %s5409 = smul.u32 8, %s23
      $region52: #{forward.1} parent=47 // pred_fallthru
        _
    $region48: #{forward.1} parent=5 // pred_fallthru
      _
    %p5410 = scmp.le.s32.totalorder 2, %s13
    // Predicated region
    $region53: #{forward.1} parent=5 // pred_check
      %p5411 = pneg %p5410
    $region54: #{forward.1} parent=5 // pred_check_branch
      %5413 = sbr.rel (%p5411) target = $region56
    $region55: #{forward.1} parent=5 // pred_region
      %s5414 = ssub.s32 %s13, 2
      // Predicated region
      $region57: #{forward.1} parent=55 // pred_check
        %p5415 = pneg %p221
      $region58: #{forward.1} parent=55 // pred_check_branch
        %5417 = sbr.rel (%p5415) target = $region60
      $region59: #{forward.1} parent=55 // pred_region
        %s5418 = smul.u32 8, %s25
        %p5419 = scmp.lt.s32.totalorder %s24, 1
        %s5420 = scalar_select %p5419, %s24, 1
        %p5421 = scmp.lt.s32.totalorder %s5418, 15
        %s5422 = scalar_select %p5421, %s5418, 15
        %s5423 = smul.addr %s5422, 3
        %s5424 = smul.addr %s5420, 48
        %s5425 = sadd.s32 %s5423, %s5424
        %s5426 = smul.addr %s5425, 4
        %s5427 = scalar_lea.vmem %s7, %s5426
      $region60: #{forward.1} parent=55 // pred_fallthru
        _
    $region56: #{forward.1} parent=5 // pred_fallthru
      _
  $region6: #{forward.1} parent=0 // loop_footer
    %s17 = sadd.s32 1, %s13
  $region7: #{forward.1} parent=0 // loop_footer_branch
    %12 = sbr.rel target = $region3
  $region8: #{forward.1} parent=0 // loop_exit
    _

</llo_original>
